<compile_context>
chip_gen: v5e
topology: v5e:2x2
jax: 0.10.0
libtpu: 0.0.40
codegen_flags: <defaults>
</compile_context>

<pallas_src>
import functools

import jax
import jax.numpy as jnp
from jax.experimental import pallas as pl
from jax.experimental.pallas import tpu as pltpu

_VMEM_LIMIT_BYTES = 32 * 1024 * 1024  # safe on v5e/v6e/v7x; tiles below use far less


def _cdiv(a, b):
    return (a + b - 1) // b


def _round_up(x, m):
    return _cdiv(x, m) * m


def _choose_bm(m, block_m):
    """Balanced row-tile size: even tiles, minimal padding, 8-sublane aligned."""
    n_tiles = max(1, _cdiv(m, block_m))
    return _round_up(_cdiv(m, n_tiles), 8)


# ---------------------------------------------------------------------------
# Pallas kernel: y = act(x @ w + b), tiled over rows of x.
# ---------------------------------------------------------------------------
def _linear_kernel(x_ref, w_ref, b_ref, o_ref, *, apply_relu):
    y = jnp.dot(x_ref[...], w_ref[...], preferred_element_type=jnp.float32)
    y = y + b_ref[...]                      # b is (1, N) -> broadcast over rows
    if apply_relu:
        y = jnp.maximum(y, 0.0)
    o_ref[...] = y.astype(o_ref.dtype)


def pallas_linear(x, w, b, *, apply_relu, out_dtype, block_m=512):
    """x: (M, K) bf16/f32, w: (K, N), b: (1, N) f32 -> (M, N) out_dtype.

    Grid over M with balanced row tiles (parallel -> megacore on v7x).  The
    weight / bias block indices are grid-invariant so they stay resident in
    VMEM; x / out blocks are double-buffered by the Pallas pipeline.
    """
    M, K = x.shape
    N = w.shape[1]

    bm = _choose_bm(M, block_m)
    m_pad = _round_up(M, bm)
    if m_pad != M:
        x = jnp.pad(x, ((0, m_pad - M), (0, 0)))
    grid = (m_pad // bm,)

    kernel = functools.partial(_linear_kernel, apply_relu=apply_relu)
    out = pl.pallas_call(
        kernel,
        out_shape=jax.ShapeDtypeStruct((m_pad, N), out_dtype),
        grid_spec=pltpu.PrefetchScalarGridSpec(
            num_scalar_prefetch=0,
            grid=grid,
            in_specs=[
                pl.BlockSpec((bm, K), lambda i: (i, 0)),
                pl.BlockSpec((K, N), lambda i: (0, 0)),
                pl.BlockSpec((1, N), lambda i: (0, 0)),
            ],
            out_specs=pl.BlockSpec((bm, N), lambda i: (i, 0)),
        ),
        compiler_params=pltpu.CompilerParams(
            dimension_semantics=("parallel",),
            vmem_limit_bytes=_VMEM_LIMIT_BYTES,
        ),
    )(x, w, b)
    return out[:M] if m_pad != M else out


# ---------------------------------------------------------------------------
# Fused FC + critic head:  feats = relu(x @ w_fc + b_fc); value = feats @ w_cr + b_cr
# ---------------------------------------------------------------------------
def _fc_critic_kernel(x_ref, wf_ref, bf_ref, wc_ref, bc_ref, feat_ref, val_ref):
    h = jnp.dot(x_ref[...], wf_ref[...], preferred_element_type=jnp.float32)
    h = jnp.maximum(h + bf_ref[...], 0.0)            # (bm, hidden) f32
    feat_ref[...] = h.astype(feat_ref.dtype)
    v = jnp.dot(h, wc_ref[...], preferred_element_type=jnp.float32)
    val_ref[...] = (v + bc_ref[...]).astype(val_ref.dtype)


def pallas_fc_critic(x, w_fc, b_fc, w_cr, b_cr, *, block_m=512):
    M, K = x.shape
    H = w_fc.shape[1]

    bm = _choose_bm(M, block_m)
    m_pad = _round_up(M, bm)
    if m_pad != M:
        x = jnp.pad(x, ((0, m_pad - M), (0, 0)))
    grid = (m_pad // bm,)

    feats, value = pl.pallas_call(
        _fc_critic_kernel,
        out_shape=(
            jax.ShapeDtypeStruct((m_pad, H), jnp.float32),
            jax.ShapeDtypeStruct((m_pad, 1), jnp.float32),
        ),
        grid_spec=pltpu.PrefetchScalarGridSpec(
            num_scalar_prefetch=0,
            grid=grid,
            in_specs=[
                pl.BlockSpec((bm, K), lambda i: (i, 0)),
                pl.BlockSpec((K, H), lambda i: (0, 0)),
                pl.BlockSpec((1, H), lambda i: (0, 0)),
                pl.BlockSpec((H, 1), lambda i: (0, 0)),
                pl.BlockSpec((1, 1), lambda i: (0, 0)),
            ],
            out_specs=(
                pl.BlockSpec((bm, H), lambda i: (i, 0)),
                pl.BlockSpec((bm, 1), lambda i: (i, 0)),
            ),
        ),
        compiler_params=pltpu.CompilerParams(
            dimension_semantics=("parallel",),
            vmem_limit_bytes=_VMEM_LIMIT_BYTES,
        ),
    )(x, w_fc, b_fc, w_cr, b_cr)
    if m_pad != M:
        feats, value = feats[:M], value[:M]
    return feats, value


# ---------------------------------------------------------------------------
# Conv2d (stride, no padding) = NHWC im2col (glue) + tiled Pallas GEMM
# ---------------------------------------------------------------------------
def _im2col_nhwc(x, kh, kw, stride):
    """x: (N, H, W, C) -> patches (N*OH*OW, KH*KW*C); ordering KH-major, KW, C
    (matches weights converted as w.transpose(2, 3, 1, 0).reshape(-1, OC))."""
    n, h, w, c = x.shape
    oh = (h - kh) // stride + 1
    ow = (w - kw) // stride + 1
    cols = []
    for i in range(kh):
        for j in range(kw):
            cols.append(x[:, i:i + stride * oh:stride, j:j + stride * ow:stride, :])
    p = jnp.concatenate(cols, axis=-1)               # (N, OH, OW, KH*KW*C) — no transpose
    return p.reshape(n * oh * ow, kh * kw * c), oh, ow


def conv2d_relu(x, w_km, b, *, kh, kw, stride):
    """x: (N, H, W, C) bf16; w_km: (KH*KW*C, OC) bf16; b: (1, OC) f32 -> NHWC bf16."""
    n = x.shape[0]
    patches, oh, ow = _im2col_nhwc(x, kh, kw, stride)
    y = pallas_linear(patches, w_km, b, apply_relu=True, out_dtype=jnp.bfloat16)
    return y.reshape(n, oh, ow, w_km.shape[1])


# ---------------------------------------------------------------------------
# Parameters: synthetic PyTorch-layout weights, converted once to TPU layout
# ---------------------------------------------------------------------------
def init_params_torch_layout(key, num_inputs, hidden_size=512):
    """Deterministic synthetic parameters in PyTorch layout (checkpoint-like)."""
    ks = jax.random.split(key, 5)

    def w(k, shape, scale):
        return scale * jax.random.normal(k, shape, dtype=jnp.float32)

    return {
        "c1_w": w(ks[0], (32, num_inputs, 8, 8), 0.05),
        "c1_b": jnp.zeros((32,), jnp.float32),
        "c2_w": w(ks[1], (64, 32, 4, 4), 0.05),
        "c2_b": jnp.zeros((64,), jnp.float32),
        "c3_w": w(ks[2], (32, 64, 3, 3), 0.05),
        "c3_b": jnp.zeros((32,), jnp.float32),
        "fc_w": w(ks[3], (hidden_size, 32 * 7 * 7), 0.02),
        "fc_b": jnp.zeros((hidden_size,), jnp.float32),
        "cr_w": w(ks[4], (1, hidden_size), 0.02),
        "cr_b": jnp.zeros((1,), jnp.float32),
    }


def convert_params(pt):
    """One-time layout/dtype conversion done at init (NOT per forward pass):
    conv weights (OC,C,KH,KW) -> (KH*KW*C, OC) bf16; fc weight reordered for the
    NHWC flatten; biases as (1, OC) f32; /255 folded into conv1 weights."""
    def conv_w(w):
        oc, c, kh, kw = w.shape
        return w.transpose(2, 3, 1, 0).reshape(kh * kw * c, oc)

    hs = pt["fc_w"].shape[0]
    fc_w = (pt["fc_w"].reshape(hs, 32, 7, 7)        # torch flatten order was (C, H, W)
            .transpose(2, 3, 1, 0)                  # -> (H, W, C, hidden)
            .reshape(7 * 7 * 32, hs))               # matches NHWC flatten order
    return {
        "c1_w": (conv_w(pt["c1_w"]) / 255.0).astype(jnp.bfloat16),   # fold /255 (exact)
        "c1_b": pt["c1_b"].reshape(1, -1).astype(jnp.float32),
        "c2_w": conv_w(pt["c2_w"]).astype(jnp.bfloat16),
        "c2_b": pt["c2_b"].reshape(1, -1).astype(jnp.float32),
        "c3_w": conv_w(pt["c3_w"]).astype(jnp.bfloat16),
        "c3_b": pt["c3_b"].reshape(1, -1).astype(jnp.float32),
        "fc_w": fc_w.astype(jnp.bfloat16),
        "fc_b": pt["fc_b"].reshape(1, -1).astype(jnp.float32),
        "cr_w": pt["cr_w"].T.astype(jnp.float32),                    # (hidden, 1)
        "cr_b": pt["cr_b"].reshape(1, 1).astype(jnp.float32),
    }


# ---------------------------------------------------------------------------
# CNNBase forward (recurrent=False)
# ---------------------------------------------------------------------------
def cnn_base_forward(params, inputs, rnn_hxs, masks):
    """inputs: (N, num_inputs, 84, 84) NCHW with values in [0, 255] (the /255 of
    the original module is folded into conv1 weights).  Returns (value, x, rnn_hxs)."""
    x = inputs.astype(jnp.bfloat16).transpose(0, 2, 3, 1)                     # NHWC bf16
    x = conv2d_relu(x, params["c1_w"], params["c1_b"], kh=8, kw=8, stride=4)  # (N,20,20,32)
    x = conv2d_relu(x, params["c2_w"], params["c2_b"], kh=4, kw=4, stride=2)  # (N, 9, 9,64)
    x = conv2d_relu(x, params["c3_w"], params["c3_b"], kh=3, kw=3, stride=1)  # (N, 7, 7,32)
    n = x.shape[0]
    x = x.reshape(n, -1)                                                      # (N, 1568) NHWC flatten
    feats, value = pallas_fc_critic(x, params["fc_w"], params["fc_b"],
                                    params["cr_w"], params["cr_b"])
    # Non-recurrent path (CNNBase default): rnn_hxs passes through, masks unused.
    # TODO(synk): recurrent GRU path (_forward_gru) not implemented (recurrent=False).
    return value, feats, rnn_hxs


if __name__ == "__main__":
    key = jax.random.PRNGKey(0)
    k_params, k_in = jax.random.split(key)

    batch = 2
    num_inputs = 4      # e.g. 4 stacked Atari frames
    hidden_size = 512
    H = W = 84          # spatial size implied by the 32*7*7 flatten in the module

    params = convert_params(init_params_torch_layout(k_params, num_inputs, hidden_size))

    inputs = jax.random.uniform(k_in, (batch, num_inputs, H, W),
                                dtype=jnp.float32, minval=0.0, maxval=255.0)
    rnn_hxs = jnp.zeros((batch, 1), jnp.float32)   # recurrent_hidden_state_size == 1
    masks = jnp.ones((batch, 1), jnp.float32)

    fwd = jax.jit(cnn_base_forward)
    value, feats, rnn_hxs_out = fwd(params, inputs, rnn_hxs, masks)
    jax.block_until_ready((value, feats, rnn_hxs_out))

    assert value.shape == (batch, 1)
    assert feats.shape == (batch, hidden_size)
    assert rnn_hxs_out.shape == (batch, 1)
    print("KERNEL_OK")
</pallas_src>

<mosaic_0001>
module attributes {stable_mosaic.version = 11 : i64} {
  func.func @_linear_kernel(%arg0: i32, %arg1: memref<400x256xbf16, #tpu.memory_space<vmem>>, %arg2: memref<256x32xbf16, #tpu.memory_space<vmem>>, %arg3: memref<1x32xf32, #tpu.memory_space<vmem>>, %arg4: memref<400x32xbf16, #tpu.memory_space<vmem>>) attributes {dimension_semantics = [#tpu.dimension_semantics<parallel>], iteration_bounds = array<i64: 2>, scalar_prefetch = 0 : i64, scratch_operands = 0 : i64, tpu.core_type = #tpu.core_type<tc>, window_params = [{transform_indices = @transform_0, window_bounds = array<i64: 400, 256>}, {pipeline_mode = #tpu.pipeline_mode<synchronous>, transform_indices = @transform_1, window_bounds = array<i64: 256, 32>}, {pipeline_mode = #tpu.pipeline_mode<synchronous>, transform_indices = @transform_2, window_bounds = array<i64: 1, 32>}, {transform_indices = @transform_3, window_bounds = array<i64: 400, 32>}]} {
    %c0 = arith.constant 0 : index
    %c0_0 = arith.constant 0 : index
    %0 = vector.load %arg1[%c0, %c0_0] : memref<400x256xbf16, #tpu.memory_space<vmem>>, vector<400x256xbf16>
    %c0_1 = arith.constant 0 : index
    %c0_2 = arith.constant 0 : index
    %1 = vector.load %arg2[%c0_1, %c0_2] : memref<256x32xbf16, #tpu.memory_space<vmem>>, vector<256x32xbf16>
    %cst = arith.constant dense<0.000000e+00> : vector<400x32xf32>
    %2 = tpu.matmul %0, %1, %cst {dimension_numbers = #tpu.dot_dimension_numbers<[1], [0], [0], [1], [0, 0, 1, 1], [], []>} : vector<400x256xbf16>, vector<256x32xbf16>, vector<400x32xf32> -> vector<400x32xf32>
    %c0_3 = arith.constant 0 : index
    %c0_4 = arith.constant 0 : index
    %3 = vector.load %arg3[%c0_3, %c0_4] : memref<1x32xf32, #tpu.memory_space<vmem>>, vector<1x32xf32>
    %4 = vector.broadcast %3 : vector<1x32xf32> to vector<400x32xf32>
    %5 = arith.addf %2, %4 : vector<400x32xf32>
    %cst_5 = arith.constant 0.000000e+00 : f32
    %6 = vector.broadcast %cst_5 : f32 to vector<400x32xf32>
    %7 = arith.maximumf %5, %6 : vector<400x32xf32>
    %8 = arith.truncf %7 : vector<400x32xf32> to vector<400x32xbf16>
    %c0_6 = arith.constant 0 : index
    %c0_7 = arith.constant 0 : index
    %9 = vector.load %arg4[%c0_6, %c0_7] : memref<400x32xbf16, #tpu.memory_space<vmem>>, vector<400x32xbf16>
    tpu.vector_store %arg4[%c0_6, %c0_7], %8 {strides = array<i32>} : memref<400x32xbf16, #tpu.memory_space<vmem>>, vector<400x32xbf16>,
    return
  }
  func.func @transform_0(%arg0: i32) -> (i32, i32) {
    %c0_i32 = arith.constant 0 : i32
    %c0_i32_0 = arith.constant 0 : i32
    return %arg0, %c0_i32 : i32, i32
  }
  func.func @transform_1(%arg0: i32) -> (i32, i32) {
    %c0_i32 = arith.constant 0 : i32
    %c0_i32_0 = arith.constant 0 : i32
    %c0_i32_1 = arith.constant 0 : i32
    return %c0_i32, %c0_i32_0 : i32, i32
  }
  func.func @transform_2(%arg0: i32) -> (i32, i32) {
    %c0_i32 = arith.constant 0 : i32
    %c0_i32_0 = arith.constant 0 : i32
    %c0_i32_1 = arith.constant 0 : i32
    return %c0_i32, %c0_i32_0 : i32, i32
  }
  func.func @transform_3(%arg0: i32) -> (i32, i32) {
    %c0_i32 = arith.constant 0 : i32
    %c0_i32_0 = arith.constant 0 : i32
    return %arg0, %c0_i32 : i32, i32
  }
}

module attributes {stable_mosaic.version = 11 : i64} {
  func.func @_linear_kernel(%arg0: i32, %arg1: memref<168x512xbf16, #tpu.memory_space<vmem>>, %arg2: memref<512x64xbf16, #tpu.memory_space<vmem>>, %arg3: memref<1x64xf32, #tpu.memory_space<vmem>>, %arg4: memref<168x64xbf16, #tpu.memory_space<vmem>>) attributes {dimension_semantics = [#tpu.dimension_semantics<parallel>], iteration_bounds = array<i64: 1>, scalar_prefetch = 0 : i64, scratch_operands = 0 : i64, tpu.core_type = #tpu.core_type<tc>, window_params = [{transform_indices = @transform_0, window_bounds = array<i64: 168, 512>}, {pipeline_mode = #tpu.pipeline_mode<synchronous>, transform_indices = @transform_1, window_bounds = array<i64: 512, 64>}, {pipeline_mode = #tpu.pipeline_mode<synchronous>, transform_indices = @transform_2, window_bounds = array<i64: 1, 64>}, {transform_indices = @transform_3, window_bounds = array<i64: 168, 64>}]} {
    %c0 = arith.constant 0 : index
    %c0_0 = arith.constant 0 : index
    %0 = vector.load %arg1[%c0, %c0_0] : memref<168x512xbf16, #tpu.memory_space<vmem>>, vector<168x512xbf16>
    %c0_1 = arith.constant 0 : index
    %c0_2 = arith.constant 0 : index
    %1 = vector.load %arg2[%c0_1, %c0_2] : memref<512x64xbf16, #tpu.memory_space<vmem>>, vector<512x64xbf16>
    %cst = arith.constant dense<0.000000e+00> : vector<168x64xf32>
    %2 = tpu.matmul %0, %1, %cst {dimension_numbers = #tpu.dot_dimension_numbers<[1], [0], [0], [1], [0, 0, 1, 1], [], []>} : vector<168x512xbf16>, vector<512x64xbf16>, vector<168x64xf32> -> vector<168x64xf32>
    %c0_3 = arith.constant 0 : index
    %c0_4 = arith.constant 0 : index
    %3 = vector.load %arg3[%c0_3, %c0_4] : memref<1x64xf32, #tpu.memory_space<vmem>>, vector<1x64xf32>
    %4 = vector.broadcast %3 : vector<1x64xf32> to vector<168x64xf32>
    %5 = arith.addf %2, %4 : vector<168x64xf32>
    %cst_5 = arith.constant 0.000000e+00 : f32
    %6 = vector.broadcast %cst_5 : f32 to vector<168x64xf32>
    %7 = arith.maximumf %5, %6 : vector<168x64xf32>
    %8 = arith.truncf %7 : vector<168x64xf32> to vector<168x64xbf16>
    %c0_6 = arith.constant 0 : index
    %c0_7 = arith.constant 0 : index
    %9 = vector.load %arg4[%c0_6, %c0_7] : memref<168x64xbf16, #tpu.memory_space<vmem>>, vector<168x64xbf16>
    tpu.vector_store %arg4[%c0_6, %c0_7], %8 {strides = array<i32>} : memref<168x64xbf16, #tpu.memory_space<vmem>>, vector<168x64xbf16>,
    return
  }
  func.func @transform_0(%arg0: i32) -> (i32, i32) {
    %c0_i32 = arith.constant 0 : i32
    %c0_i32_0 = arith.constant 0 : i32
    return %arg0, %c0_i32 : i32, i32
  }
  func.func @transform_1(%arg0: i32) -> (i32, i32) {
    %c0_i32 = arith.constant 0 : i32
    %c0_i32_0 = arith.constant 0 : i32
    %c0_i32_1 = arith.constant 0 : i32
    return %c0_i32, %c0_i32_0 : i32, i32
  }
  func.func @transform_2(%arg0: i32) -> (i32, i32) {
    %c0_i32 = arith.constant 0 : i32
    %c0_i32_0 = arith.constant 0 : i32
    %c0_i32_1 = arith.constant 0 : i32
    return %c0_i32, %c0_i32_0 : i32, i32
  }
  func.func @transform_3(%arg0: i32) -> (i32, i32) {
    %c0_i32 = arith.constant 0 : i32
    %c0_i32_0 = arith.constant 0 : i32
    return %arg0, %c0_i32 : i32, i32
  }
}

module attributes {stable_mosaic.version = 11 : i64} {
  func.func @_linear_kernel(%arg0: i32, %arg1: memref<104x576xbf16, #tpu.memory_space<vmem>>, %arg2: memref<576x32xbf16, #tpu.memory_space<vmem>>, %arg3: memref<1x32xf32, #tpu.memory_space<vmem>>, %arg4: memref<104x32xbf16, #tpu.memory_space<vmem>>) attributes {dimension_semantics = [#tpu.dimension_semantics<parallel>], iteration_bounds = array<i64: 1>, scalar_prefetch = 0 : i64, scratch_operands = 0 : i64, tpu.core_type = #tpu.core_type<tc>, window_params = [{transform_indices = @transform_0, window_bounds = array<i64: 104, 576>}, {pipeline_mode = #tpu.pipeline_mode<synchronous>, transform_indices = @transform_1, window_bounds = array<i64: 576, 32>}, {pipeline_mode = #tpu.pipeline_mode<synchronous>, transform_indices = @transform_2, window_bounds = array<i64: 1, 32>}, {transform_indices = @transform_3, window_bounds = array<i64: 104, 32>}]} {
    %c0 = arith.constant 0 : index
    %c0_0 = arith.constant 0 : index
    %0 = vector.load %arg1[%c0, %c0_0] : memref<104x576xbf16, #tpu.memory_space<vmem>>, vector<104x576xbf16>
    %c0_1 = arith.constant 0 : index
    %c0_2 = arith.constant 0 : index
    %1 = vector.load %arg2[%c0_1, %c0_2] : memref<576x32xbf16, #tpu.memory_space<vmem>>, vector<576x32xbf16>
    %cst = arith.constant dense<0.000000e+00> : vector<104x32xf32>
    %2 = tpu.matmul %0, %1, %cst {dimension_numbers = #tpu.dot_dimension_numbers<[1], [0], [0], [1], [0, 0, 1, 1], [], []>} : vector<104x576xbf16>, vector<576x32xbf16>, vector<104x32xf32> -> vector<104x32xf32>
    %c0_3 = arith.constant 0 : index
    %c0_4 = arith.constant 0 : index
    %3 = vector.load %arg3[%c0_3, %c0_4] : memref<1x32xf32, #tpu.memory_space<vmem>>, vector<1x32xf32>
    %4 = vector.broadcast %3 : vector<1x32xf32> to vector<104x32xf32>
    %5 = arith.addf %2, %4 : vector<104x32xf32>
    %cst_5 = arith.constant 0.000000e+00 : f32
    %6 = vector.broadcast %cst_5 : f32 to vector<104x32xf32>
    %7 = arith.maximumf %5, %6 : vector<104x32xf32>
    %8 = arith.truncf %7 : vector<104x32xf32> to vector<104x32xbf16>
    %c0_6 = arith.constant 0 : index
    %c0_7 = arith.constant 0 : index
    %9 = vector.load %arg4[%c0_6, %c0_7] : memref<104x32xbf16, #tpu.memory_space<vmem>>, vector<104x32xbf16>
    tpu.vector_store %arg4[%c0_6, %c0_7], %8 {strides = array<i32>} : memref<104x32xbf16, #tpu.memory_space<vmem>>, vector<104x32xbf16>,
    return
  }
  func.func @transform_0(%arg0: i32) -> (i32, i32) {
    %c0_i32 = arith.constant 0 : i32
    %c0_i32_0 = arith.constant 0 : i32
    return %arg0, %c0_i32 : i32, i32
  }
  func.func @transform_1(%arg0: i32) -> (i32, i32) {
    %c0_i32 = arith.constant 0 : i32
    %c0_i32_0 = arith.constant 0 : i32
    %c0_i32_1 = arith.constant 0 : i32
    return %c0_i32, %c0_i32_0 : i32, i32
  }
  func.func @transform_2(%arg0: i32) -> (i32, i32) {
    %c0_i32 = arith.constant 0 : i32
    %c0_i32_0 = arith.constant 0 : i32
    %c0_i32_1 = arith.constant 0 : i32
    return %c0_i32, %c0_i32_0 : i32, i32
  }
  func.func @transform_3(%arg0: i32) -> (i32, i32) {
    %c0_i32 = arith.constant 0 : i32
    %c0_i32_0 = arith.constant 0 : i32
    return %arg0, %c0_i32 : i32, i32
  }
}

module attributes {stable_mosaic.version = 11 : i64} {
  func.func @_fc_critic_kernel(%arg0: i32, %arg1: memref<8x1568xbf16, #tpu.memory_space<vmem>>, %arg2: memref<1568x512xbf16, #tpu.memory_space<vmem>>, %arg3: memref<1x512xf32, #tpu.memory_space<vmem>>, %arg4: memref<512x1xf32, #tpu.memory_space<vmem>>, %arg5: memref<1x1xf32, #tpu.memory_space<vmem>>, %arg6: memref<8x512xf32, #tpu.memory_space<vmem>>, %arg7: memref<8x1xf32, #tpu.memory_space<vmem>>) attributes {dimension_semantics = [#tpu.dimension_semantics<parallel>], iteration_bounds = array<i64: 1>, scalar_prefetch = 0 : i64, scratch_operands = 0 : i64, tpu.core_type = #tpu.core_type<tc>, window_params = [{transform_indices = @transform_0, window_bounds = array<i64: 8, 1568>}, {pipeline_mode = #tpu.pipeline_mode<synchronous>, transform_indices = @transform_1, window_bounds = array<i64: 1568, 512>}, {pipeline_mode = #tpu.pipeline_mode<synchronous>, transform_indices = @transform_2, window_bounds = array<i64: 1, 512>}, {pipeline_mode = #tpu.pipeline_mode<synchronous>, transform_indices = @transform_3, window_bounds = array<i64: 512, 1>}, {pipeline_mode = #tpu.pipeline_mode<synchronous>, transform_indices = @transform_4, window_bounds = array<i64: 1, 1>}, {transform_indices = @transform_5, window_bounds = array<i64: 8, 512>}, {transform_indices = @transform_6, window_bounds = array<i64: 8, 1>}]} {
    %c0 = arith.constant 0 : index
    %c0_0 = arith.constant 0 : index
    %0 = vector.load %arg1[%c0, %c0_0] : memref<8x1568xbf16, #tpu.memory_space<vmem>>, vector<8x1568xbf16>
    %c0_1 = arith.constant 0 : index
    %c0_2 = arith.constant 0 : index
    %1 = vector.load %arg2[%c0_1, %c0_2] : memref<1568x512xbf16, #tpu.memory_space<vmem>>, vector<1568x512xbf16>
    %cst = arith.constant dense<0.000000e+00> : vector<8x512xf32>
    %2 = tpu.matmul %0, %1, %cst {dimension_numbers = #tpu.dot_dimension_numbers<[1], [0], [0], [1], [0, 0, 1, 1], [], []>} : vector<8x1568xbf16>, vector<1568x512xbf16>, vector<8x512xf32> -> vector<8x512xf32>
    %c0_3 = arith.constant 0 : index
    %c0_4 = arith.constant 0 : index
    %3 = vector.load %arg3[%c0_3, %c0_4] : memref<1x512xf32, #tpu.memory_space<vmem>>, vector<1x512xf32>
    %4 = vector.broadcast %3 : vector<1x512xf32> to vector<8x512xf32>
    %5 = arith.addf %2, %4 : vector<8x512xf32>
    %cst_5 = arith.constant 0.000000e+00 : f32
    %6 = vector.broadcast %cst_5 : f32 to vector<8x512xf32>
    %7 = arith.maximumf %5, %6 : vector<8x512xf32>
    %c0_6 = arith.constant 0 : index
    %c0_7 = arith.constant 0 : index
    %8 = vector.load %arg6[%c0_6, %c0_7] : memref<8x512xf32, #tpu.memory_space<vmem>>, vector<8x512xf32>
    tpu.vector_store %arg6[%c0_6, %c0_7], %7 {strides = array<i32>} : memref<8x512xf32, #tpu.memory_space<vmem>>, vector<8x512xf32>,
    %c0_8 = arith.constant 0 : index
    %c0_9 = arith.constant 0 : index
    %9 = vector.load %arg4[%c0_8, %c0_9] : memref<512x1xf32, #tpu.memory_space<vmem>>, vector<512x1xf32>
    %cst_10 = arith.constant dense<0.000000e+00> : vector<8x1xf32>
    %10 = tpu.matmul %7, %9, %cst_10 {dimension_numbers = #tpu.dot_dimension_numbers<[1], [0], [0], [1], [0, 0, 1, 1], [], []>} : vector<8x512xf32>, vector<512x1xf32>, vector<8x1xf32> -> vector<8x1xf32>
    %c0_11 = arith.constant 0 : index
    %c0_12 = arith.constant 0 : index
    %11 = vector.load %arg5[%c0_11, %c0_12] : memref<1x1xf32, #tpu.memory_space<vmem>>, vector<1x1xf32>
    %12 = vector.broadcast %11 : vector<1x1xf32> to vector<8x1xf32>
    %13 = arith.addf %10, %12 : vector<8x1xf32>
    %c0_13 = arith.constant 0 : index
    %c0_14 = arith.constant 0 : index
    %14 = vector.load %arg7[%c0_13, %c0_14] : memref<8x1xf32, #tpu.memory_space<vmem>>, vector<8x1xf32>
    tpu.vector_store %arg7[%c0_13, %c0_14], %13 {strides = array<i32>} : memref<8x1xf32, #tpu.memory_space<vmem>>, vector<8x1xf32>,
    return
  }
  func.func @transform_0(%arg0: i32) -> (i32, i32) {
    %c0_i32 = arith.constant 0 : i32
    %c0_i32_0 = arith.constant 0 : i32
    return %arg0, %c0_i32 : i32, i32
  }
  func.func @transform_1(%arg0: i32) -> (i32, i32) {
    %c0_i32 = arith.constant 0 : i32
    %c0_i32_0 = arith.constant 0 : i32
    %c0_i32_1 = arith.constant 0 : i32
    return %c0_i32, %c0_i32_0 : i32, i32
  }
  func.func @transform_2(%arg0: i32) -> (i32, i32) {
    %c0_i32 = arith.constant 0 : i32
    %c0_i32_0 = arith.constant 0 : i32
    %c0_i32_1 = arith.constant 0 : i32
    return %c0_i32, %c0_i32_0 : i32, i32
  }
  func.func @transform_3(%arg0: i32) -> (i32, i32) {
    %c0_i32 = arith.constant 0 : i32
    %c0_i32_0 = arith.constant 0 : i32
    %c0_i32_1 = arith.constant 0 : i32
    return %c0_i32, %c0_i32_0 : i32, i32
  }
  func.func @transform_4(%arg0: i32) -> (i32, i32) {
    %c0_i32 = arith.constant 0 : i32
    %c0_i32_0 = arith.constant 0 : i32
    %c0_i32_1 = arith.constant 0 : i32
    return %c0_i32, %c0_i32_0 : i32, i32
  }
  func.func @transform_5(%arg0: i32) -> (i32, i32) {
    %c0_i32 = arith.constant 0 : i32
    %c0_i32_0 = arith.constant 0 : i32
    return %arg0, %c0_i32 : i32, i32
  }
  func.func @transform_6(%arg0: i32) -> (i32, i32) {
    %c0_i32 = arith.constant 0 : i32
    %c0_i32_0 = arith.constant 0 : i32
    return %arg0, %c0_i32 : i32, i32
  }
}

</mosaic_0001>

<llo_original>
// kernel: cnn_base_forward.4
$region0: #{cnn_base_forward.4}
  #allocation0 [shape = 'u32[]', space=smem, size = 0x4, offset = 0x4, fixed_abs, tag = 'smem constant byte address 0x4 - core index']
  #allocation1 [shape = 'u32[72,128]{1,0:T(1,128)}', space=vmem, size = 0x9000, scoped, tag = 'internal scratch']
  %s0 = inlined_call_operand.vmem [shape: bf16[800,256], index: 0, kind: input, shape index: {}]
  %s1 = inlined_call_operand.vmem [shape: bf16[256,32], index: 1, kind: input, shape index: {}]
  %s2 = inlined_call_operand.vmem [shape: f32[1,32], index: 2, kind: input, shape index: {}]
  %s3 = inlined_call_operand.vmem [shape: bf16[800,32], index: 3, kind: output, shape index: {}]
  %s4 = sld [smem:[#allocation0]]
  $region45: #{cnn_base_forward.4} parent=0
    _
  %s6 = ssub.s32 1, %s4
  %s7 = scalar_select 0, %s6, %s4
  loop: start=0, step=1, limit=4
  $region2: #{cnn_base_forward.4} parent=0 // loop_pre_header
    _
  $region3: #{cnn_base_forward.4} parent=0 // loop_header
    %s9 = sphi 0, %s13
    %p10 = scmp.ge.s32.totalorder %s9, 4
    %s19 = sphi 0, %s21
    %s22 = sphi 0, %s19
    %s23 = sphi 0, %s22
    %s39 = sphi 0, %s23
    %s43 = sphi 0, %s43
    %s45 = sphi 0, %s43
    %s46 = sphi 0, %s45
    %s60 = sphi 0, %s46
    %s64 = sphi 0, %s64
    %s66 = sphi 0, %s64
    %s67 = sphi 0, %s66
    %s81 = sphi 0, %s67
    %s87 = sphi 0, %s89
    %s90 = sphi 0, %s87
    %s91 = sphi 0, %s90
    %s107 = sphi 0, %s91
  $region4: #{cnn_base_forward.4} parent=0 // loop_header_branch
    %12 = sbr.rel (%p10) target = $region8
  $region5: #{cnn_base_forward.4} parent=0 // loop_body
    %s14 = ssub.s32 %s9, 1
    %s15 = ssub.s32 %s9, 2
    %s16 = sadd.s32 %s9, 1
    %s17 = ssub.s32 %s9, %s16
    %p18 = scmp.eq.s32.totalorder %s17, 0
    %s20 = sadd.s32 %s19, 1
    %s21 = scalar_select %p18, %s19, %s20
    %p24 = pneg %p18
    %p25 = scmp.eq.s32.totalorder %s9, 1
    %p26 = por %p24, %p25
    %p27 = scmp.ne.s32.totalorder %s19, %s22
    %p28 = scmp.eq.s32.totalorder %s9, 0
    %p29 = por %p27, %p28
    %p30 = scmp.ne.s32.totalorder %s19, %s22
    %p31 = scmp.eq.s32.totalorder %s14, 1
    %p32 = por %p30, %p31
    %p33 = scmp.ne.s32.totalorder %s22, %s23
    %p34 = scmp.eq.s32.totalorder %s14, 0
    %p35 = por %p33, %p34
    %p36 = scmp.ne.s32.totalorder %s22, %s23
    %p37 = scmp.eq.s32.totalorder %s15, 1
    %p38 = por %p36, %p37
    %p40 = scmp.ne.s32.totalorder %s23, %s39
    %p41 = scmp.eq.s32.totalorder %s15, 0
    %p42 = por %p40, %p41
    %s44 = sadd.s32 %s43, 1
    %p47 = scmp.eq.s32.totalorder %s9, 1
    %p48 = scmp.ne.s32.totalorder %s43, %s45
    %p49 = scmp.eq.s32.totalorder %s9, 0
    %p50 = por %p48, %p49
    %p51 = scmp.ne.s32.totalorder %s43, %s45
    %p52 = scmp.eq.s32.totalorder %s14, 1
    %p53 = por %p51, %p52
    %p54 = scmp.ne.s32.totalorder %s45, %s46
    %p55 = scmp.eq.s32.totalorder %s14, 0
    %p56 = por %p54, %p55
    %p57 = scmp.ne.s32.totalorder %s45, %s46
    %p58 = scmp.eq.s32.totalorder %s15, 1
    %p59 = por %p57, %p58
    %p61 = scmp.ne.s32.totalorder %s46, %s60
    %p62 = scmp.eq.s32.totalorder %s15, 0
    %p63 = por %p61, %p62
    %s65 = sadd.s32 %s64, 1
    %p68 = scmp.eq.s32.totalorder %s9, 1
    %p69 = scmp.ne.s32.totalorder %s64, %s66
    %p70 = scmp.eq.s32.totalorder %s9, 0
    %p71 = por %p69, %p70
    %p72 = scmp.ne.s32.totalorder %s64, %s66
    %p73 = scmp.eq.s32.totalorder %s14, 1
    %p74 = por %p72, %p73
    %p75 = scmp.ne.s32.totalorder %s66, %s67
    %p76 = scmp.eq.s32.totalorder %s14, 0
    %p77 = por %p75, %p76
    %p78 = scmp.ne.s32.totalorder %s66, %s67
    %p79 = scmp.eq.s32.totalorder %s15, 1
    %p80 = por %p78, %p79
    %p82 = scmp.ne.s32.totalorder %s67, %s81
    %p83 = scmp.eq.s32.totalorder %s15, 0
    %p84 = por %p82, %p83
    %s85 = ssub.s32 %s9, %s16
    %p86 = scmp.eq.s32.totalorder %s85, 0
    %s88 = sadd.s32 %s87, 1
    %s89 = scalar_select %p86, %s87, %s88
    %p92 = pneg %p86
    %p93 = scmp.eq.s32.totalorder %s9, 1
    %p94 = por %p92, %p93
    %p95 = scmp.ne.s32.totalorder %s87, %s90
    %p96 = scmp.eq.s32.totalorder %s9, 0
    %p97 = por %p95, %p96
    %p98 = scmp.ne.s32.totalorder %s87, %s90
    %p99 = scmp.eq.s32.totalorder %s14, 1
    %p100 = por %p98, %p99
    %p101 = scmp.ne.s32.totalorder %s90, %s91
    %p102 = scmp.eq.s32.totalorder %s14, 0
    %p103 = por %p101, %p102
    %p104 = scmp.ne.s32.totalorder %s90, %s91
    %p105 = scmp.eq.s32.totalorder %s15, 1
    %p106 = por %p104, %p105
    %p108 = scmp.ne.s32.totalorder %s91, %s107
    %p109 = scmp.eq.s32.totalorder %s15, 0
    %p110 = por %p108, %p109
    %p111 = scmp.le.s32.totalorder 1, %s9
    %p112 = scmp.lt.s32.totalorder %s9, 3
    %p113 = pnand %p111, %p112
    %p114 = pneg %p113
    // Predicated region
    $region9: #{cnn_base_forward.4} parent=5 // pred_check
      _
    $region10: #{cnn_base_forward.4} parent=5 // pred_check_branch
      %116 = sbr.rel (%p113) target = $region12
    $region11: #{cnn_base_forward.4} parent=5 // pred_region
      %s117 = ssub.s32 %s9, 1
      // Predicated region
      $region13: #{cnn_base_forward.4} parent=11 // pred_check
        %p118 = pneg %p56
      $region14: #{cnn_base_forward.4} parent=11 // pred_check_branch
        %120 = sbr.rel (%p118) target = $region16
      $region15: #{cnn_base_forward.4} parent=11 // pred_region
        _
      $region16: #{cnn_base_forward.4} parent=11 // pred_fallthru
        _
      // Predicated region
      $region17: #{cnn_base_forward.4} parent=11 // pred_check
        %p121 = pneg %p77
      $region18: #{cnn_base_forward.4} parent=11 // pred_check_branch
        %123 = sbr.rel (%p121) target = $region20
      $region19: #{cnn_base_forward.4} parent=11 // pred_region
        _
      $region20: #{cnn_base_forward.4} parent=11 // pred_fallthru
        _
    $region12: #{cnn_base_forward.4} parent=5 // pred_fallthru
      _
    %p124 = scmp.lt.s32.totalorder %s9, 2
    // Predicated region
    $region21: #{cnn_base_forward.4} parent=5 // pred_check
      %p125 = pneg %p124
    $region22: #{cnn_base_forward.4} parent=5 // pred_check_branch
      %127 = sbr.rel (%p125) target = $region24
    $region23: #{cnn_base_forward.4} parent=5 // pred_region
      // Predicated region
      $region25: #{cnn_base_forward.4} parent=23 // pred_check
        %p128 = pneg %p29
      $region26: #{cnn_base_forward.4} parent=23 // pred_check_branch
        %130 = sbr.rel (%p128) target = $region28
      $region27: #{cnn_base_forward.4} parent=23 // pred_region
        %s131 = smul.u32 50, %s9
        %p132 = scmp.lt.s32.totalorder %s131, 99
        %s133 = scalar_select %p132, %s131, 99
        %s134 = smul.addr %s133, 2
        %s135 = smul.addr %s134, 4
        %s136 = scalar_lea.vmem %s0, %s135
        %s137 = smul.u32 50, %s9
      $region28: #{cnn_base_forward.4} parent=23 // pred_fallthru
        _
    $region24: #{cnn_base_forward.4} parent=5 // pred_fallthru
      _
    %p138 = scmp.le.s32.totalorder 1, %s9
    %p139 = scmp.lt.s32.totalorder %s9, 3
    %p140 = pnand %p138, %p139
    %p141 = pneg %p140
    // Predicated region
    $region29: #{cnn_base_forward.4} parent=5 // pred_check
      _
    $region30: #{cnn_base_forward.4} parent=5 // pred_check_branch
      %143 = sbr.rel (%p140) target = $region32
    $region31: #{cnn_base_forward.4} parent=5 // pred_region
      %s144 = ssub.s32 %s9, 1
      %s145 = smul.u32 50, %s14
      %p146 = scmp.lt.s32.totalorder %s145, 99
      %s147 = scalar_select %p146, %s145, 99
      %s148 = smul.addr %s147, 2
      %s149 = smul.addr %s148, 4
      %s150 = scalar_lea.vmem %s0, %s149
      %p151 = pneg %p35
      %p152 = pneg %p32
      %p153 = pneg %p56
      %p154 = pneg %p53
      %p155 = pneg %p77
      %p156 = pneg %p74
      %p157 = pneg %p103
      %p158 = pneg %p100
      %s159 = smul.u32 50, %s14
      %p160 = scmp.lt.s32.totalorder %s159, 99
      %s161 = scalar_select %p160, %s159, 99
      %s162 = smul.addr %s161, 4
      %s163 = scalar_lea.vmem %s3, %s162
      %s164 = smul.u32 50, %s14
      %p165 = scmp.lt.s32.totalorder %s164, 99
      %s166 = scalar_select %p165, %s164, 99
      %s167 = smul.addr %s166, 2
      %s168 = smul.addr %s167, 4
      %s169 = scalar_lea.vmem %s0, %s168
      %s170 = smul.u32 50, %s14
      %s171 = smul.u32 50, %s14
      %p172 = scmp.lt.s32.totalorder %s171, 99
      %s173 = scalar_select %p172, %s171, 99
      %s174 = smul.addr %s173, 4
      %s175 = scalar_lea.vmem %s3, %s174
      %s176 = smul.u32 50, %s14
      %v177 = vld [vmem:[%s169] sm:$0xff]
      %v178 = vld [vmem:[%s169 + $0x8] sm:$0xff]
      %v179 = vld [vmem:[%s169 + $0x10] sm:$0xff]
      %v180 = vld [vmem:[%s169 + $0x18] sm:$0xff]
      %v181 = vld [vmem:[%s169 + $0x20] sm:$0xff]
      %v182 = vld [vmem:[%s169 + $0x28] sm:$0xff]
      %v183 = vld [vmem:[%s169 + $0x30] sm:$0xff]
      %v184 = vld [vmem:[%s169 + $0x38] sm:$0xff]
      %v185 = vld [vmem:[%s169 + $0x40] sm:$0xff]
      %v186 = vld [vmem:[%s169 + $0x48] sm:$0xff]
      %v187 = vld [vmem:[%s169 + $0x50] sm:$0xff]
      %v188 = vld [vmem:[%s169 + $0x58] sm:$0xff]
      %v189 = vld [vmem:[%s169 + $0x60] sm:$0xff]
      %v190 = vld [vmem:[%s169 + $0x68] sm:$0xff]
      %v191 = vld [vmem:[%s169 + $0x70] sm:$0xff]
      %v192 = vld [vmem:[%s169 + $0x78] sm:$0xff]
      %v193 = vld [vmem:[%s169 + $0x80] sm:$0xff]
      %v194 = vld [vmem:[%s169 + $0x88] sm:$0xff]
      %v195 = vld [vmem:[%s169 + $0x90] sm:$0xff]
      %v196 = vld [vmem:[%s169 + $0x98] sm:$0xff]
      %v197 = vld [vmem:[%s169 + $0xa0] sm:$0xff]
      %v198 = vld [vmem:[%s169 + $0xa8] sm:$0xff]
      %v199 = vld [vmem:[%s169 + $0xb0] sm:$0xff]
      %v200 = vld [vmem:[%s169 + $0xb8] sm:$0xff]
      %v201 = vld [vmem:[%s169 + $0xc0] sm:$0xff]
      %v202 = vld [vmem:[%s169 + $0xc8] sm:$0xff]
      %v203 = vld [vmem:[%s169 + $0xd0] sm:$0xff]
      %v204 = vld [vmem:[%s169 + $0xd8] sm:$0xff]
      %v205 = vld [vmem:[%s169 + $0xe0] sm:$0xff]
      %v206 = vld [vmem:[%s169 + $0xe8] sm:$0xff]
      %v207 = vld [vmem:[%s169 + $0xf0] sm:$0xff]
      %v208 = vld [vmem:[%s169 + $0xf8] sm:$0xff]
      %v209 = vld [vmem:[%s169 + $0x100] sm:$0xff]
      %v210 = vld [vmem:[%s169 + $0x108] sm:$0xff]
      %v211 = vld [vmem:[%s169 + $0x110] sm:$0xff]
      %v212 = vld [vmem:[%s169 + $0x118] sm:$0xff]
      %v213 = vld [vmem:[%s169 + $0x120] sm:$0xff]
      %v214 = vld [vmem:[%s169 + $0x128] sm:$0xff]
      %v215 = vld [vmem:[%s169 + $0x130] sm:$0xff]
      %v216 = vld [vmem:[%s169 + $0x138] sm:$0xff]
      %v217 = vld [vmem:[%s169 + $0x140] sm:$0xff]
      %v218 = vld [vmem:[%s169 + $0x148] sm:$0xff]
      %v219 = vld [vmem:[%s169 + $0x150] sm:$0xff]
      %v220 = vld [vmem:[%s169 + $0x158] sm:$0xff]
      %v221 = vld [vmem:[%s169 + $0x160] sm:$0xff]
      %v222 = vld [vmem:[%s169 + $0x168] sm:$0xff]
      %v223 = vld [vmem:[%s169 + $0x170] sm:$0xff]
      %v224 = vld [vmem:[%s169 + $0x178] sm:$0xff]
      %v225 = vld [vmem:[%s169 + $0x180] sm:$0xff]
      %v226 = vld [vmem:[%s169 + $0x188] sm:$0xff]
      %v227 = vld [vmem:[%s1] sm:$0xf]
      %v228 = vld [vmem:[%s1 + $0x4] sm:$0xf]
      %v229 = vld [vmem:[%s1 + $0x8] sm:$0xf]
      %v230 = vld [vmem:[%s1 + $0xc] sm:$0xf]
      %v231 = vld [vmem:[%s1 + $0x10] sm:$0xf]
      %v232 = vld [vmem:[%s1 + $0x14] sm:$0xf]
      %v233 = vld [vmem:[%s1 + $0x18] sm:$0xf]
      %v234 = vld [vmem:[%s1 + $0x1c] sm:$0xf]
      %v235 = vld [vmem:[%s1 + $0x20] sm:$0xf]
      %v236 = vld [vmem:[%s1 + $0x24] sm:$0xf]
      %v237 = vld [vmem:[%s1 + $0x28] sm:$0xf]
      %v238 = vld [vmem:[%s1 + $0x2c] sm:$0xf]
      %v239 = vld [vmem:[%s1 + $0x30] sm:$0xf]
      %v240 = vld [vmem:[%s1 + $0x34] sm:$0xf]
      %v241 = vld [vmem:[%s1 + $0x38] sm:$0xf]
      %v242 = vld [vmem:[%s1 + $0x3c] sm:$0xf]
      %v243 = vld [vmem:[%s1 + $0x40] sm:$0xf]
      %v244 = vld [vmem:[%s1 + $0x44] sm:$0xf]
      %v245 = vld [vmem:[%s1 + $0x48] sm:$0xf]
      %v246 = vld [vmem:[%s1 + $0x4c] sm:$0xf]
      %v247 = vld [vmem:[%s1 + $0x50] sm:$0xf]
      %v248 = vld [vmem:[%s1 + $0x54] sm:$0xf]
      %v249 = vld [vmem:[%s1 + $0x58] sm:$0xf]
      %v250 = vld [vmem:[%s1 + $0x5c] sm:$0xf]
      %v251 = vld [vmem:[%s1 + $0x60] sm:$0xf]
      %v252 = vld [vmem:[%s1 + $0x64] sm:$0xf]
      %v253 = vld [vmem:[%s1 + $0x68] sm:$0xf]
      %v254 = vld [vmem:[%s1 + $0x6c] sm:$0xf]
      %v255 = vld [vmem:[%s1 + $0x70] sm:$0xf]
      %v256 = vld [vmem:[%s1 + $0x74] sm:$0xf]
      %v257 = vld [vmem:[%s1 + $0x78] sm:$0xf]
      %v258 = vld [vmem:[%s1 + $0x7c] sm:$0xf]
      %v259 = vld [vmem:[%s2] sm:$0x1]
      %v261 = vperm.slane %v259, 0
      %v313 = vunpack.c.l.b16 %v177
      %v314 = vunpack.c.h.b16 %v177
      %v315 = vunpack.c.l.b16 %v178
      %v316 = vunpack.c.h.b16 %v178
      %v317 = vunpack.c.l.b16 %v179
      %v318 = vunpack.c.h.b16 %v179
      %v319 = vunpack.c.l.b16 %v180
      %v320 = vunpack.c.h.b16 %v180
      %v321 = vunpack.c.l.b16 %v181
      %v322 = vunpack.c.h.b16 %v181
      %v323 = vunpack.c.l.b16 %v182
      %v324 = vunpack.c.h.b16 %v182
      %v325 = vunpack.c.l.b16 %v183
      %v326 = vunpack.c.h.b16 %v183
      %v327 = vunpack.c.l.b16 %v184
      %v328 = vunpack.c.h.b16 %v184
      %v329 = vunpack.c.l.b16 %v185
      %v330 = vunpack.c.h.b16 %v185
      %v331 = vunpack.c.l.b16 %v186
      %v332 = vunpack.c.h.b16 %v186
      %v333 = vunpack.c.l.b16 %v187
      %v334 = vunpack.c.h.b16 %v187
      %v335 = vunpack.c.l.b16 %v188
      %v336 = vunpack.c.h.b16 %v188
      %v337 = vunpack.c.l.b16 %v189
      %v338 = vunpack.c.h.b16 %v189
      %v339 = vunpack.c.l.b16 %v190
      %v340 = vunpack.c.h.b16 %v190
      %v341 = vunpack.c.l.b16 %v191
      %v342 = vunpack.c.h.b16 %v191
      %v343 = vunpack.c.l.b16 %v192
      %v344 = vunpack.c.h.b16 %v192
      %v345 = vunpack.c.l.b16 %v193
      %v346 = vunpack.c.h.b16 %v193
      %v347 = vunpack.c.l.b16 %v194
      %v348 = vunpack.c.h.b16 %v194
      %v349 = vunpack.c.l.b16 %v195
      %v350 = vunpack.c.h.b16 %v195
      %v351 = vunpack.c.l.b16 %v196
      %v352 = vunpack.c.h.b16 %v196
      %v353 = vunpack.c.l.b16 %v197
      %v354 = vunpack.c.h.b16 %v197
      %v355 = vunpack.c.l.b16 %v198
      %v356 = vunpack.c.h.b16 %v198
      %v357 = vunpack.c.l.b16 %v199
      %v358 = vunpack.c.h.b16 %v199
      %v359 = vunpack.c.l.b16 %v200
      %v360 = vunpack.c.h.b16 %v200
      %v361 = vunpack.c.l.b16 %v201
      %v362 = vunpack.c.h.b16 %v201
      %v363 = vunpack.c.l.b16 %v202
      %v364 = vunpack.c.h.b16 %v202
      %v365 = vunpack.c.l.b16 %v203
      %v366 = vunpack.c.h.b16 %v203
      %v367 = vunpack.c.l.b16 %v204
      %v368 = vunpack.c.h.b16 %v204
      %v369 = vunpack.c.l.b16 %v205
      %v370 = vunpack.c.h.b16 %v205
      %v371 = vunpack.c.l.b16 %v206
      %v372 = vunpack.c.h.b16 %v206
      %v373 = vunpack.c.l.b16 %v207
      %v374 = vunpack.c.h.b16 %v207
      %v375 = vunpack.c.l.b16 %v208
      %v376 = vunpack.c.h.b16 %v208
      %v377 = vunpack.c.l.b16 %v209
      %v378 = vunpack.c.h.b16 %v209
      %v379 = vunpack.c.l.b16 %v210
      %v380 = vunpack.c.h.b16 %v210
      %v381 = vunpack.c.l.b16 %v211
      %v382 = vunpack.c.h.b16 %v211
      %v383 = vunpack.c.l.b16 %v212
      %v384 = vunpack.c.h.b16 %v212
      %v385 = vunpack.c.l.b16 %v213
      %v386 = vunpack.c.h.b16 %v213
      %v387 = vunpack.c.l.b16 %v214
      %v388 = vunpack.c.h.b16 %v214
      %v389 = vunpack.c.l.b16 %v215
      %v390 = vunpack.c.h.b16 %v215
      %v391 = vunpack.c.l.b16 %v216
      %v392 = vunpack.c.h.b16 %v216
      %v393 = vunpack.c.l.b16 %v217
      %v394 = vunpack.c.h.b16 %v217
      %v395 = vunpack.c.l.b16 %v218
      %v396 = vunpack.c.h.b16 %v218
      %v397 = vunpack.c.l.b16 %v219
      %v398 = vunpack.c.h.b16 %v219
      %v399 = vunpack.c.l.b16 %v220
      %v400 = vunpack.c.h.b16 %v220
      %v401 = vunpack.c.l.b16 %v221
      %v402 = vunpack.c.h.b16 %v221
      %v403 = vunpack.c.l.b16 %v222
      %v404 = vunpack.c.h.b16 %v222
      %v405 = vunpack.c.l.b16 %v223
      %v406 = vunpack.c.h.b16 %v223
      %v407 = vunpack.c.l.b16 %v224
      %v408 = vunpack.c.h.b16 %v224
      %v409 = vunpack.c.l.b16 %v225
      %v410 = vunpack.c.h.b16 %v225
      %v411 = vunpack.c.l.b16 %v226
      %v412 = vunpack.c.h.b16 %v226
      %v413 = vpack.c.b16 %v315, %v313
      %v414 = vpack.c.b16 %v316, %v314
      %v415 = vpack.c.b16 %v319, %v317
      %v416 = vpack.c.b16 %v320, %v318
      %v417 = vpack.c.b16 %v323, %v321
      %v418 = vpack.c.b16 %v324, %v322
      %v419 = vpack.c.b16 %v327, %v325
      %v420 = vpack.c.b16 %v328, %v326
      %v421 = vpack.c.b16 %v331, %v329
      %v422 = vpack.c.b16 %v332, %v330
      %v423 = vpack.c.b16 %v335, %v333
      %v424 = vpack.c.b16 %v336, %v334
      %v425 = vpack.c.b16 %v339, %v337
      %v426 = vpack.c.b16 %v340, %v338
      %v427 = vpack.c.b16 %v343, %v341
      %v428 = vpack.c.b16 %v344, %v342
      %v429 = vpack.c.b16 %v347, %v345
      %v430 = vpack.c.b16 %v348, %v346
      %v431 = vpack.c.b16 %v351, %v349
      %v432 = vpack.c.b16 %v352, %v350
      %v433 = vpack.c.b16 %v355, %v353
      %v434 = vpack.c.b16 %v356, %v354
      %v435 = vpack.c.b16 %v359, %v357
      %v436 = vpack.c.b16 %v360, %v358
      %v437 = vpack.c.b16 %v363, %v361
      %v438 = vpack.c.b16 %v364, %v362
      %v439 = vpack.c.b16 %v367, %v365
      %v440 = vpack.c.b16 %v368, %v366
      %v441 = vpack.c.b16 %v371, %v369
      %v442 = vpack.c.b16 %v372, %v370
      %v443 = vpack.c.b16 %v375, %v373
      %v444 = vpack.c.b16 %v376, %v374
      %v445 = vpack.c.b16 %v379, %v377
      %v446 = vpack.c.b16 %v380, %v378
      %v447 = vpack.c.b16 %v383, %v381
      %v448 = vpack.c.b16 %v384, %v382
      %v449 = vpack.c.b16 %v387, %v385
      %v450 = vpack.c.b16 %v388, %v386
      %v451 = vpack.c.b16 %v391, %v389
      %v452 = vpack.c.b16 %v392, %v390
      %v453 = vpack.c.b16 %v395, %v393
      %v454 = vpack.c.b16 %v396, %v394
      %v455 = vpack.c.b16 %v399, %v397
      %v456 = vpack.c.b16 %v400, %v398
      %v457 = vpack.c.b16 %v403, %v401
      %v458 = vpack.c.b16 %v404, %v402
      %v459 = vpack.c.b16 %v407, %v405
      %v460 = vpack.c.b16 %v408, %v406
      %v461 = vpack.c.b16 %v411, %v409
      %v462 = vpack.c.b16 %v412, %v410
      %v545 = vunpack.c.l.b16 %v227
      %v546 = vunpack.c.l.b16 %v228
      %v547 = vunpack.c.l.b16 %v229
      %v548 = vunpack.c.l.b16 %v230
      %v549 = vunpack.c.l.b16 %v231
      %v550 = vunpack.c.l.b16 %v232
      %v551 = vunpack.c.l.b16 %v233
      %v552 = vunpack.c.l.b16 %v234
      %v553 = vunpack.c.l.b16 %v235
      %v554 = vunpack.c.l.b16 %v236
      %v555 = vunpack.c.l.b16 %v237
      %v556 = vunpack.c.l.b16 %v238
      %v557 = vunpack.c.l.b16 %v239
      %v558 = vunpack.c.l.b16 %v240
      %v559 = vunpack.c.l.b16 %v241
      %v560 = vunpack.c.l.b16 %v242
      %v561 = vunpack.c.l.b16 %v243
      %v562 = vunpack.c.l.b16 %v244
      %v563 = vunpack.c.l.b16 %v245
      %v564 = vunpack.c.l.b16 %v246
      %v565 = vunpack.c.l.b16 %v247
      %v566 = vunpack.c.l.b16 %v248
      %v567 = vunpack.c.l.b16 %v249
      %v568 = vunpack.c.l.b16 %v250
      %v569 = vunpack.c.l.b16 %v251
      %v570 = vunpack.c.l.b16 %v252
      %v571 = vunpack.c.l.b16 %v253
      %v572 = vunpack.c.l.b16 %v254
      %v573 = vunpack.c.l.b16 %v255
      %v574 = vunpack.c.l.b16 %v256
      %v575 = vunpack.c.l.b16 %v257
      %v576 = vunpack.c.l.b16 %v258
      %v577 = vpack.c.b16 %v546, %v545
      %v578 = vpack.c.b16 %v548, %v547
      %v579 = vpack.c.b16 %v550, %v549
      %v580 = vpack.c.b16 %v552, %v551
      %v581 = vpack.c.b16 %v554, %v553
      %v582 = vpack.c.b16 %v556, %v555
      %v583 = vpack.c.b16 %v558, %v557
      %v584 = vpack.c.b16 %v560, %v559
      %v585 = vpack.c.b16 %v562, %v561
      %v586 = vpack.c.b16 %v564, %v563
      %v587 = vpack.c.b16 %v566, %v565
      %v588 = vpack.c.b16 %v568, %v567
      %v589 = vpack.c.b16 %v570, %v569
      %v590 = vpack.c.b16 %v572, %v571
      %v591 = vpack.c.b16 %v574, %v573
      %v592 = vpack.c.b16 %v576, %v575
      %609 = vmatpush.bf16.msra.mxu0 %v584
      %610 = vmatpush.bf16.msra.mxu0 %v583
      %611 = vmatpush.bf16.msra.mxu0 %v582
      %612 = vmatpush.bf16.msra.mxu0 %v581
      %613 = vmatpush.bf16.msra.mxu0 %v580
      %614 = vmatpush.bf16.msra.mxu0 %v579
      %615 = vmatpush.bf16.msra.mxu0 %v578
      %616 = vmatpush.bf16.msra.mxu0 %v577
      %617 = vmatmul.bf16.gmra.mxu0 %v413
      %v618 = vpop.f32.mrf.mxu0
      %v619 = vadd.f32 %v261, %v618
      %v620 = vpop.f32.mrf.mxu0
      %v621 = vadd.f32 %v261, %v620
      %622 = vmatmul.bf16.gmra.mxu0 %v415
      %v623 = vpop.f32.mrf.mxu0
      %v624 = vadd.f32 %v261, %v623
      %v625 = vpop.f32.mrf.mxu0
      %v626 = vadd.f32 %v261, %v625
      %627 = vmatmul.bf16.gmra.mxu0 %v417
      %v628 = vpop.f32.mrf.mxu0
      %v629 = vadd.f32 %v261, %v628
      %v630 = vpop.f32.mrf.mxu0
      %v631 = vadd.f32 %v261, %v630
      %632 = vmatmul.bf16.gmra.mxu0 %v419
      %v633 = vpop.f32.mrf.mxu0
      %v634 = vadd.f32 %v261, %v633
      %v635 = vpop.f32.mrf.mxu0
      %v636 = vadd.f32 %v261, %v635
      %637 = vmatmul.bf16.gmra.mxu0 %v421
      %v638 = vpop.f32.mrf.mxu0
      %v639 = vadd.f32 %v261, %v638
      %v640 = vpop.f32.mrf.mxu0
      %v641 = vadd.f32 %v261, %v640
      %642 = vmatmul.bf16.gmra.mxu0 %v423
      %v643 = vpop.f32.mrf.mxu0
      %v644 = vadd.f32 %v261, %v643
      %v645 = vpop.f32.mrf.mxu0
      %v646 = vadd.f32 %v261, %v645
      %647 = vmatmul.bf16.gmra.mxu0 %v425
      %v648 = vpop.f32.mrf.mxu0
      %v649 = vadd.f32 %v261, %v648
      %v650 = vpop.f32.mrf.mxu0
      %v651 = vadd.f32 %v261, %v650
      %652 = vmatmul.bf16.gmra.mxu0 %v427
      %v653 = vpop.f32.mrf.mxu0
      %v654 = vadd.f32 %v261, %v653
      %v655 = vpop.f32.mrf.mxu0
      %v656 = vadd.f32 %v261, %v655
      %657 = vmatmul.bf16.gmra.mxu0 %v429
      %v658 = vpop.f32.mrf.mxu0
      %v659 = vadd.f32 %v261, %v658
      %v660 = vpop.f32.mrf.mxu0
      %v661 = vadd.f32 %v261, %v660
      %662 = vmatmul.bf16.gmra.mxu0 %v431
      %v663 = vpop.f32.mrf.mxu0
      %v664 = vadd.f32 %v261, %v663
      %v665 = vpop.f32.mrf.mxu0
      %v666 = vadd.f32 %v261, %v665
      %667 = vmatmul.bf16.gmra.mxu0 %v433
      %v668 = vpop.f32.mrf.mxu0
      %v669 = vadd.f32 %v261, %v668
      %v670 = vpop.f32.mrf.mxu0
      %v671 = vadd.f32 %v261, %v670
      %672 = vmatmul.bf16.gmra.mxu0 %v435
      %v673 = vpop.f32.mrf.mxu0
      %v674 = vadd.f32 %v261, %v673
      %v675 = vpop.f32.mrf.mxu0
      %v676 = vadd.f32 %v261, %v675
      %677 = vmatmul.bf16.gmra.mxu0 %v437
      %v678 = vpop.f32.mrf.mxu0
      %v679 = vadd.f32 %v261, %v678
      %v680 = vpop.f32.mrf.mxu0
      %v681 = vadd.f32 %v261, %v680
      %682 = vmatmul.bf16.gmra.mxu0 %v439
      %v683 = vpop.f32.mrf.mxu0
      %v684 = vadd.f32 %v261, %v683
      %v685 = vpop.f32.mrf.mxu0
      %v686 = vadd.f32 %v261, %v685
      %687 = vmatmul.bf16.gmra.mxu0 %v441
      %v688 = vpop.f32.mrf.mxu0
      %v689 = vadd.f32 %v261, %v688
      %v690 = vpop.f32.mrf.mxu0
      %v691 = vadd.f32 %v261, %v690
      %692 = vmatmul.bf16.gmra.mxu0 %v443
      %v693 = vpop.f32.mrf.mxu0
      %v694 = vadd.f32 %v261, %v693
      %v695 = vpop.f32.mrf.mxu0
      %v696 = vadd.f32 %v261, %v695
      %697 = vmatmul.bf16.gmra.mxu0 %v445
      %v698 = vpop.f32.mrf.mxu0
      %v699 = vadd.f32 %v261, %v698
      %v700 = vpop.f32.mrf.mxu0
      %v701 = vadd.f32 %v261, %v700
      %702 = vmatmul.bf16.gmra.mxu0 %v447
      %v703 = vpop.f32.mrf.mxu0
      %v704 = vadd.f32 %v261, %v703
      %v705 = vpop.f32.mrf.mxu0
      %v706 = vadd.f32 %v261, %v705
      %707 = vmatmul.bf16.gmra.mxu0 %v449
      %v708 = vpop.f32.mrf.mxu0
      %v709 = vadd.f32 %v261, %v708
      %v710 = vpop.f32.mrf.mxu0
      %v711 = vadd.f32 %v261, %v710
      %712 = vmatmul.bf16.gmra.mxu0 %v451
      %v713 = vpop.f32.mrf.mxu0
      %v714 = vadd.f32 %v261, %v713
      %v715 = vpop.f32.mrf.mxu0
      %v716 = vadd.f32 %v261, %v715
      %717 = vmatmul.bf16.gmra.mxu0 %v453
      %v718 = vpop.f32.mrf.mxu0
      %v719 = vadd.f32 %v261, %v718
      %v720 = vpop.f32.mrf.mxu0
      %v721 = vadd.f32 %v261, %v720
      %722 = vmatmul.bf16.gmra.mxu0 %v455
      %v723 = vpop.f32.mrf.mxu0
      %v724 = vadd.f32 %v261, %v723
      %v725 = vpop.f32.mrf.mxu0
      %v726 = vadd.f32 %v261, %v725
      %727 = vmatmul.bf16.gmra.mxu0 %v457
      %v728 = vpop.f32.mrf.mxu0
      %v729 = vadd.f32 %v261, %v728
      %v730 = vpop.f32.mrf.mxu0
      %v731 = vadd.f32 %v261, %v730
      %732 = vmatmul.bf16.gmra.mxu0 %v459
      %v733 = vpop.f32.mrf.mxu0
      %v734 = vadd.f32 %v261, %v733
      %v735 = vpop.f32.mrf.mxu0
      %v736 = vadd.f32 %v261, %v735
      %737 = vmatmul.bf16.gmra.mxu0 %v461
      %v738 = vpop.f32.mrf.mxu0
      %v739 = vadd.f32 %v261, %v738
      %v740 = vpop.f32.mrf.mxu0
      %v741 = vadd.f32 %v261, %v740
      %742 = vdwg.mxu0
      %743 = vmatpush.bf16.msra.mxu0 %v592
      %744 = vmatpush.bf16.msra.mxu0 %v591
      %745 = vmatpush.bf16.msra.mxu0 %v590
      %746 = vmatpush.bf16.msra.mxu0 %v589
      %747 = vmatpush.bf16.msra.mxu0 %v588
      %748 = vmatpush.bf16.msra.mxu0 %v587
      %749 = vmatpush.bf16.msra.mxu0 %v586
      %750 = vmatpush.bf16.msra.mxu0 %v585
      %751 = vmatmul.bf16.gmra.mxu0 %v414
      %v752 = vpop.f32.mrf.mxu0
      %v753 = vadd.f32 %v619, %v752
      %v754 = vpop.f32.mrf.mxu0
      %v755 = vadd.f32 %v621, %v754
      %756 = vmatmul.bf16.gmra.mxu0 %v416
      %v757 = vpop.f32.mrf.mxu0
      %v758 = vadd.f32 %v624, %v757
      %v759 = vpop.f32.mrf.mxu0
      %v760 = vadd.f32 %v626, %v759
      %761 = vmatmul.bf16.gmra.mxu0 %v418
      %v762 = vpop.f32.mrf.mxu0
      %v763 = vadd.f32 %v629, %v762
      %v764 = vpop.f32.mrf.mxu0
      %v765 = vadd.f32 %v631, %v764
      %766 = vmatmul.bf16.gmra.mxu0 %v420
      %v767 = vpop.f32.mrf.mxu0
      %v768 = vadd.f32 %v634, %v767
      %v769 = vpop.f32.mrf.mxu0
      %v770 = vadd.f32 %v636, %v769
      %771 = vmatmul.bf16.gmra.mxu0 %v422
      %v772 = vpop.f32.mrf.mxu0
      %v773 = vadd.f32 %v639, %v772
      %v774 = vpop.f32.mrf.mxu0
      %v775 = vadd.f32 %v641, %v774
      %776 = vmatmul.bf16.gmra.mxu0 %v424
      %v777 = vpop.f32.mrf.mxu0
      %v778 = vadd.f32 %v644, %v777
      %v779 = vpop.f32.mrf.mxu0
      %v780 = vadd.f32 %v646, %v779
      %781 = vmatmul.bf16.gmra.mxu0 %v426
      %v782 = vpop.f32.mrf.mxu0
      %v783 = vadd.f32 %v649, %v782
      %v784 = vpop.f32.mrf.mxu0
      %v785 = vadd.f32 %v651, %v784
      %786 = vmatmul.bf16.gmra.mxu0 %v428
      %v787 = vpop.f32.mrf.mxu0
      %v788 = vadd.f32 %v654, %v787
      %v789 = vpop.f32.mrf.mxu0
      %v790 = vadd.f32 %v656, %v789
      %791 = vmatmul.bf16.gmra.mxu0 %v430
      %v792 = vpop.f32.mrf.mxu0
      %v793 = vadd.f32 %v659, %v792
      %v794 = vpop.f32.mrf.mxu0
      %v795 = vadd.f32 %v661, %v794
      %796 = vmatmul.bf16.gmra.mxu0 %v432
      %v797 = vpop.f32.mrf.mxu0
      %v798 = vadd.f32 %v664, %v797
      %v799 = vpop.f32.mrf.mxu0
      %v800 = vadd.f32 %v666, %v799
      %801 = vmatmul.bf16.gmra.mxu0 %v434
      %v802 = vpop.f32.mrf.mxu0
      %v803 = vadd.f32 %v669, %v802
      %v804 = vpop.f32.mrf.mxu0
      %v805 = vadd.f32 %v671, %v804
      %806 = vmatmul.bf16.gmra.mxu0 %v436
      %v807 = vpop.f32.mrf.mxu0
      %v808 = vadd.f32 %v674, %v807
      %v809 = vpop.f32.mrf.mxu0
      %v810 = vadd.f32 %v676, %v809
      %811 = vmatmul.bf16.gmra.mxu0 %v438
      %v812 = vpop.f32.mrf.mxu0
      %v813 = vadd.f32 %v679, %v812
      %v814 = vpop.f32.mrf.mxu0
      %v815 = vadd.f32 %v681, %v814
      %816 = vmatmul.bf16.gmra.mxu0 %v440
      %v817 = vpop.f32.mrf.mxu0
      %v818 = vadd.f32 %v684, %v817
      %v819 = vpop.f32.mrf.mxu0
      %v820 = vadd.f32 %v686, %v819
      %821 = vmatmul.bf16.gmra.mxu0 %v442
      %v822 = vpop.f32.mrf.mxu0
      %v823 = vadd.f32 %v689, %v822
      %v824 = vpop.f32.mrf.mxu0
      %v825 = vadd.f32 %v691, %v824
      %826 = vmatmul.bf16.gmra.mxu0 %v444
      %v827 = vpop.f32.mrf.mxu0
      %v828 = vadd.f32 %v694, %v827
      %v829 = vpop.f32.mrf.mxu0
      %v830 = vadd.f32 %v696, %v829
      %831 = vmatmul.bf16.gmra.mxu0 %v446
      %v832 = vpop.f32.mrf.mxu0
      %v833 = vadd.f32 %v699, %v832
      %v834 = vpop.f32.mrf.mxu0
      %v835 = vadd.f32 %v701, %v834
      %836 = vmatmul.bf16.gmra.mxu0 %v448
      %v837 = vpop.f32.mrf.mxu0
      %v838 = vadd.f32 %v704, %v837
      %v839 = vpop.f32.mrf.mxu0
      %v840 = vadd.f32 %v706, %v839
      %841 = vmatmul.bf16.gmra.mxu0 %v450
      %v842 = vpop.f32.mrf.mxu0
      %v843 = vadd.f32 %v709, %v842
      %v844 = vpop.f32.mrf.mxu0
      %v845 = vadd.f32 %v711, %v844
      %846 = vmatmul.bf16.gmra.mxu0 %v452
      %v847 = vpop.f32.mrf.mxu0
      %v848 = vadd.f32 %v714, %v847
      %v849 = vpop.f32.mrf.mxu0
      %v850 = vadd.f32 %v716, %v849
      %851 = vmatmul.bf16.gmra.mxu0 %v454
      %v852 = vpop.f32.mrf.mxu0
      %v853 = vadd.f32 %v719, %v852
      %v854 = vpop.f32.mrf.mxu0
      %v855 = vadd.f32 %v721, %v854
      %856 = vmatmul.bf16.gmra.mxu0 %v456
      %v857 = vpop.f32.mrf.mxu0
      %v858 = vadd.f32 %v724, %v857
      %v859 = vpop.f32.mrf.mxu0
      %v860 = vadd.f32 %v726, %v859
      %861 = vmatmul.bf16.gmra.mxu0 %v458
      %v862 = vpop.f32.mrf.mxu0
      %v863 = vadd.f32 %v729, %v862
      %v864 = vpop.f32.mrf.mxu0
      %v865 = vadd.f32 %v731, %v864
      %866 = vmatmul.bf16.gmra.mxu0 %v460
      %v867 = vpop.f32.mrf.mxu0
      %v868 = vadd.f32 %v734, %v867
      %v869 = vpop.f32.mrf.mxu0
      %v870 = vadd.f32 %v736, %v869
      %871 = vmatmul.bf16.gmra.mxu0 %v462
      %v872 = vpop.f32.mrf.mxu0
      %v873 = vadd.f32 %v739, %v872
      %v874 = vpop.f32.mrf.mxu0
      %v875 = vadd.f32 %v741, %v874
      %876 = vdwg.mxu0
      %v877 = vmax.f32 %v753, 0.0
      %v878 = vmax.f32 %v755, 0.0
      %v879 = vmax.f32 %v758, 0.0
      %v880 = vmax.f32 %v760, 0.0
      %v881 = vmax.f32 %v763, 0.0
      %v882 = vmax.f32 %v765, 0.0
      %v883 = vmax.f32 %v768, 0.0
      %v884 = vmax.f32 %v770, 0.0
      %v885 = vmax.f32 %v773, 0.0
      %v886 = vmax.f32 %v775, 0.0
      %v887 = vmax.f32 %v778, 0.0
      %v888 = vmax.f32 %v780, 0.0
      %v889 = vmax.f32 %v783, 0.0
      %v890 = vmax.f32 %v785, 0.0
      %v891 = vmax.f32 %v788, 0.0
      %v892 = vmax.f32 %v790, 0.0
      %v893 = vmax.f32 %v793, 0.0
      %v894 = vmax.f32 %v795, 0.0
      %v895 = vmax.f32 %v798, 0.0
      %v896 = vmax.f32 %v800, 0.0
      %v897 = vmax.f32 %v803, 0.0
      %v898 = vmax.f32 %v805, 0.0
      %v899 = vmax.f32 %v808, 0.0
      %v900 = vmax.f32 %v810, 0.0
      %v901 = vmax.f32 %v813, 0.0
      %v902 = vmax.f32 %v815, 0.0
      %v903 = vmax.f32 %v818, 0.0
      %v904 = vmax.f32 %v820, 0.0
      %v905 = vmax.f32 %v823, 0.0
      %v906 = vmax.f32 %v825, 0.0
      %v907 = vmax.f32 %v828, 0.0
      %v908 = vmax.f32 %v830, 0.0
      %v909 = vmax.f32 %v833, 0.0
      %v910 = vmax.f32 %v835, 0.0
      %v911 = vmax.f32 %v838, 0.0
      %v912 = vmax.f32 %v840, 0.0
      %v913 = vmax.f32 %v843, 0.0
      %v914 = vmax.f32 %v845, 0.0
      %v915 = vmax.f32 %v848, 0.0
      %v916 = vmax.f32 %v850, 0.0
      %v917 = vmax.f32 %v853, 0.0
      %v918 = vmax.f32 %v855, 0.0
      %v919 = vmax.f32 %v858, 0.0
      %v920 = vmax.f32 %v860, 0.0
      %v921 = vmax.f32 %v863, 0.0
      %v922 = vmax.f32 %v865, 0.0
      %v923 = vmax.f32 %v868, 0.0
      %v924 = vmax.f32 %v870, 0.0
      %v925 = vmax.f32 %v873, 0.0
      %v926 = vmax.f32 %v875, 0.0
      %v927 = vpack.c.bf16 %v877, %v877
      %v928 = vpack.c.bf16 %v878, %v878
      %v929 = vpack.c.bf16 %v879, %v879
      %v930 = vpack.c.bf16 %v880, %v880
      %v931 = vpack.c.bf16 %v881, %v881
      %v932 = vpack.c.bf16 %v882, %v882
      %v933 = vpack.c.bf16 %v883, %v883
      %v934 = vpack.c.bf16 %v884, %v884
      %v935 = vpack.c.bf16 %v885, %v885
      %v936 = vpack.c.bf16 %v886, %v886
      %v937 = vpack.c.bf16 %v887, %v887
      %v938 = vpack.c.bf16 %v888, %v888
      %v939 = vpack.c.bf16 %v889, %v889
      %v940 = vpack.c.bf16 %v890, %v890
      %v941 = vpack.c.bf16 %v891, %v891
      %v942 = vpack.c.bf16 %v892, %v892
      %v943 = vpack.c.bf16 %v893, %v893
      %v944 = vpack.c.bf16 %v894, %v894
      %v945 = vpack.c.bf16 %v895, %v895
      %v946 = vpack.c.bf16 %v896, %v896
      %v947 = vpack.c.bf16 %v897, %v897
      %v948 = vpack.c.bf16 %v898, %v898
      %v949 = vpack.c.bf16 %v899, %v899
      %v950 = vpack.c.bf16 %v900, %v900
      %v951 = vpack.c.bf16 %v901, %v901
      %v952 = vpack.c.bf16 %v902, %v902
      %v953 = vpack.c.bf16 %v903, %v903
      %v954 = vpack.c.bf16 %v904, %v904
      %v955 = vpack.c.bf16 %v905, %v905
      %v956 = vpack.c.bf16 %v906, %v906
      %v957 = vpack.c.bf16 %v907, %v907
      %v958 = vpack.c.bf16 %v908, %v908
      %v959 = vpack.c.bf16 %v909, %v909
      %v960 = vpack.c.bf16 %v910, %v910
      %v961 = vpack.c.bf16 %v911, %v911
      %v962 = vpack.c.bf16 %v912, %v912
      %v963 = vpack.c.bf16 %v913, %v913
      %v964 = vpack.c.bf16 %v914, %v914
      %v965 = vpack.c.bf16 %v915, %v915
      %v966 = vpack.c.bf16 %v916, %v916
      %v967 = vpack.c.bf16 %v917, %v917
      %v968 = vpack.c.bf16 %v918, %v918
      %v969 = vpack.c.bf16 %v919, %v919
      %v970 = vpack.c.bf16 %v920, %v920
      %v971 = vpack.c.bf16 %v921, %v921
      %v972 = vpack.c.bf16 %v922, %v922
      %v973 = vpack.c.bf16 %v923, %v923
      %v974 = vpack.c.bf16 %v924, %v924
      %v975 = vpack.c.bf16 %v925, %v925
      %v976 = vpack.c.bf16 %v926, %v926
      %vm977 = vcmask 257024
      %978 = vst.msk [vmem:[%s175] sm:$0xf] %vm977, %v927
      %979 = vst.msk [vmem:[%s175 + $0x4] sm:$0xf] %vm977, %v928
      %980 = vst.msk [vmem:[%s175 + $0x8] sm:$0xf] %vm977, %v929
      %981 = vst.msk [vmem:[%s175 + $0xc] sm:$0xf] %vm977, %v930
      %982 = vst.msk [vmem:[%s175 + $0x10] sm:$0xf] %vm977, %v931
      %983 = vst.msk [vmem:[%s175 + $0x14] sm:$0xf] %vm977, %v932
      %984 = vst.msk [vmem:[%s175 + $0x18] sm:$0xf] %vm977, %v933
      %985 = vst.msk [vmem:[%s175 + $0x1c] sm:$0xf] %vm977, %v934
      %986 = vst.msk [vmem:[%s175 + $0x20] sm:$0xf] %vm977, %v935
      %987 = vst.msk [vmem:[%s175 + $0x24] sm:$0xf] %vm977, %v936
      %988 = vst.msk [vmem:[%s175 + $0x28] sm:$0xf] %vm977, %v937
      %989 = vst.msk [vmem:[%s175 + $0x2c] sm:$0xf] %vm977, %v938
      %990 = vst.msk [vmem:[%s175 + $0x30] sm:$0xf] %vm977, %v939
      %991 = vst.msk [vmem:[%s175 + $0x34] sm:$0xf] %vm977, %v940
      %992 = vst.msk [vmem:[%s175 + $0x38] sm:$0xf] %vm977, %v941
      %993 = vst.msk [vmem:[%s175 + $0x3c] sm:$0xf] %vm977, %v942
      %994 = vst.msk [vmem:[%s175 + $0x40] sm:$0xf] %vm977, %v943
      %995 = vst.msk [vmem:[%s175 + $0x44] sm:$0xf] %vm977, %v944
      %996 = vst.msk [vmem:[%s175 + $0x48] sm:$0xf] %vm977, %v945
      %997 = vst.msk [vmem:[%s175 + $0x4c] sm:$0xf] %vm977, %v946
      %998 = vst.msk [vmem:[%s175 + $0x50] sm:$0xf] %vm977, %v947
      %999 = vst.msk [vmem:[%s175 + $0x54] sm:$0xf] %vm977, %v948
      %1000 = vst.msk [vmem:[%s175 + $0x58] sm:$0xf] %vm977, %v949
      %1001 = vst.msk [vmem:[%s175 + $0x5c] sm:$0xf] %vm977, %v950
      %1002 = vst.msk [vmem:[%s175 + $0x60] sm:$0xf] %vm977, %v951
      %1003 = vst.msk [vmem:[%s175 + $0x64] sm:$0xf] %vm977, %v952
      %1004 = vst.msk [vmem:[%s175 + $0x68] sm:$0xf] %vm977, %v953
      %1005 = vst.msk [vmem:[%s175 + $0x6c] sm:$0xf] %vm977, %v954
      %1006 = vst.msk [vmem:[%s175 + $0x70] sm:$0xf] %vm977, %v955
      %1007 = vst.msk [vmem:[%s175 + $0x74] sm:$0xf] %vm977, %v956
      %1008 = vst.msk [vmem:[%s175 + $0x78] sm:$0xf] %vm977, %v957
      %1009 = vst.msk [vmem:[%s175 + $0x7c] sm:$0xf] %vm977, %v958
      %1010 = vst.msk [vmem:[%s175 + $0x80] sm:$0xf] %vm977, %v959
      %1011 = vst.msk [vmem:[%s175 + $0x84] sm:$0xf] %vm977, %v960
      %1012 = vst.msk [vmem:[%s175 + $0x88] sm:$0xf] %vm977, %v961
      %1013 = vst.msk [vmem:[%s175 + $0x8c] sm:$0xf] %vm977, %v962
      %1014 = vst.msk [vmem:[%s175 + $0x90] sm:$0xf] %vm977, %v963
      %1015 = vst.msk [vmem:[%s175 + $0x94] sm:$0xf] %vm977, %v964
      %1016 = vst.msk [vmem:[%s175 + $0x98] sm:$0xf] %vm977, %v965
      %1017 = vst.msk [vmem:[%s175 + $0x9c] sm:$0xf] %vm977, %v966
      %1018 = vst.msk [vmem:[%s175 + $0xa0] sm:$0xf] %vm977, %v967
      %1019 = vst.msk [vmem:[%s175 + $0xa4] sm:$0xf] %vm977, %v968
      %1020 = vst.msk [vmem:[%s175 + $0xa8] sm:$0xf] %vm977, %v969
      %1021 = vst.msk [vmem:[%s175 + $0xac] sm:$0xf] %vm977, %v970
      %1022 = vst.msk [vmem:[%s175 + $0xb0] sm:$0xf] %vm977, %v971
      %1023 = vst.msk [vmem:[%s175 + $0xb4] sm:$0xf] %vm977, %v972
      %1024 = vst.msk [vmem:[%s175 + $0xb8] sm:$0xf] %vm977, %v973
      %1025 = vst.msk [vmem:[%s175 + $0xbc] sm:$0xf] %vm977, %v974
      %1026 = vst.msk [vmem:[%s175 + $0xc0] sm:$0xf] %vm977, %v975
      %1027 = vst.msk [vmem:[%s175 + $0xc4] sm:$0xf] %vm977, %v976
      %s1028 = smul.u32 50, %s14
      %p1029 = scmp.lt.s32.totalorder %s1028, 99
      %s1030 = scalar_select %p1029, %s1028, 99
      %s1031 = smul.addr %s1030, 4
      %s1032 = scalar_lea.vmem %s3, %s1031
      // Predicated region
      $region33: #{cnn_base_forward.4} parent=31 // pred_check
        %p1033 = pneg %p100
      $region34: #{cnn_base_forward.4} parent=31 // pred_check_branch
        %1035 = sbr.rel (%p1033) target = $region36
      $region35: #{cnn_base_forward.4} parent=31 // pred_region
        %s1036 = smul.u32 50, %s14
      $region36: #{cnn_base_forward.4} parent=31 // pred_fallthru
        _
    $region32: #{cnn_base_forward.4} parent=5 // pred_fallthru
      _
    %p1037 = scmp.le.s32.totalorder 2, %s9
    // Predicated region
    $region37: #{cnn_base_forward.4} parent=5 // pred_check
      %p1038 = pneg %p1037
    $region38: #{cnn_base_forward.4} parent=5 // pred_check_branch
      %1040 = sbr.rel (%p1038) target = $region40
    $region39: #{cnn_base_forward.4} parent=5 // pred_region
      %s1041 = ssub.s32 %s9, 2
      // Predicated region
      $region41: #{cnn_base_forward.4} parent=39 // pred_check
        %p1042 = pneg %p106
      $region42: #{cnn_base_forward.4} parent=39 // pred_check_branch
        %1044 = sbr.rel (%p1042) target = $region44
      $region43: #{cnn_base_forward.4} parent=39 // pred_region
        %s1045 = smul.u32 50, %s15
        %p1046 = scmp.lt.s32.totalorder %s1045, 99
        %s1047 = scalar_select %p1046, %s1045, 99
        %s1048 = smul.addr %s1047, 4
        %s1049 = scalar_lea.vmem %s3, %s1048
      $region44: #{cnn_base_forward.4} parent=39 // pred_fallthru
        _
    $region40: #{cnn_base_forward.4} parent=5 // pred_fallthru
      _
  $region6: #{cnn_base_forward.4} parent=0 // loop_footer
    %s13 = sadd.s32 1, %s9
  $region7: #{cnn_base_forward.4} parent=0 // loop_footer_branch
    %8 = sbr.rel target = $region3
  $region8: #{cnn_base_forward.4} parent=0 // loop_exit
    _

// kernel: cnn_base_forward.5
$region0: #{cnn_base_forward.5}
  #allocation0 [shape = 'u32[]', space=smem, size = 0x4, offset = 0x4, fixed_abs, tag = 'smem constant byte address 0x4 - core index']
  #allocation1 [shape = 'u32[72,128]{1,0:T(1,128)}', space=vmem, size = 0x9000, scoped, tag = 'internal scratch']
  %s0 = inlined_call_operand.vmem [shape: bf16[168,512], index: 0, kind: input, shape index: {}]
  %s1 = inlined_call_operand.vmem [shape: bf16[512,64], index: 1, kind: input, shape index: {}]
  %s2 = inlined_call_operand.vmem [shape: f32[1,64], index: 2, kind: input, shape index: {}]
  %s3 = inlined_call_operand.vmem [shape: bf16[168,64], index: 3, kind: output, shape index: {}]
  %s4 = sld [smem:[#allocation0]]
  $region22: #{cnn_base_forward.5} parent=0
    _
  %s6 = ssub.s32 1, %s4
  %s7 = scalar_select 0, %s6, %s4
  // Predicated region
  $region2: #{cnn_base_forward.5} parent=0 // pred_check
    _
  $region3: #{cnn_base_forward.5} parent=0 // pred_check_branch
    %9 = sbr.rel (0) target = $region5
  $region4: #{cnn_base_forward.5} parent=0 // pred_region
    _
  $region5: #{cnn_base_forward.5} parent=0 // pred_fallthru
    _
  // Predicated region
  $region6: #{cnn_base_forward.5} parent=0 // pred_check
    _
  $region7: #{cnn_base_forward.5} parent=0 // pred_check_branch
    %11 = sbr.rel (0) target = $region9
  $region8: #{cnn_base_forward.5} parent=0 // pred_region
    _
  $region9: #{cnn_base_forward.5} parent=0 // pred_fallthru
    _
  // Predicated region
  $region10: #{cnn_base_forward.5} parent=0 // pred_check
    _
  $region11: #{cnn_base_forward.5} parent=0 // pred_check_branch
    %13 = sbr.rel (0) target = $region13
  $region12: #{cnn_base_forward.5} parent=0 // pred_region
    _
  $region13: #{cnn_base_forward.5} parent=0 // pred_fallthru
    _
  %v14 = vld [vmem:[%s0] sm:$0xff]
  %v15 = vld [vmem:[%s0 + $0x8] sm:$0xff]
  %v16 = vld [vmem:[%s0 + $0x10] sm:$0xff]
  %v17 = vld [vmem:[%s0 + $0x18] sm:$0xff]
  %v18 = vld [vmem:[%s0 + $0x20] sm:$0xff]
  %v19 = vld [vmem:[%s0 + $0x28] sm:$0xff]
  %v20 = vld [vmem:[%s0 + $0x30] sm:$0xff]
  %v21 = vld [vmem:[%s0 + $0x38] sm:$0xff]
  %v22 = vld [vmem:[%s0 + $0x40] sm:$0xff]
  %v23 = vld [vmem:[%s0 + $0x48] sm:$0xff]
  %v24 = vld [vmem:[%s0 + $0x50] sm:$0xff]
  %v25 = vld [vmem:[%s0 + $0x58] sm:$0xff]
  %v26 = vld [vmem:[%s0 + $0x60] sm:$0xff]
  %v27 = vld [vmem:[%s0 + $0x68] sm:$0xff]
  %v28 = vld [vmem:[%s0 + $0x70] sm:$0xff]
  %v29 = vld [vmem:[%s0 + $0x78] sm:$0xff]
  %v30 = vld [vmem:[%s0 + $0x80] sm:$0xff]
  %v31 = vld [vmem:[%s0 + $0x88] sm:$0xff]
  %v32 = vld [vmem:[%s0 + $0x90] sm:$0xff]
  %v33 = vld [vmem:[%s0 + $0x98] sm:$0xff]
  %v34 = vld [vmem:[%s0 + $0xa0] sm:$0xff]
  %v35 = vld [vmem:[%s0 + $0xa8] sm:$0xff]
  %v36 = vld [vmem:[%s0 + $0xb0] sm:$0xff]
  %v37 = vld [vmem:[%s0 + $0xb8] sm:$0xff]
  %v38 = vld [vmem:[%s0 + $0xc0] sm:$0xff]
  %v39 = vld [vmem:[%s0 + $0xc8] sm:$0xff]
  %v40 = vld [vmem:[%s0 + $0xd0] sm:$0xff]
  %v41 = vld [vmem:[%s0 + $0xd8] sm:$0xff]
  %v42 = vld [vmem:[%s0 + $0xe0] sm:$0xff]
  %v43 = vld [vmem:[%s0 + $0xe8] sm:$0xff]
  %v44 = vld [vmem:[%s0 + $0xf0] sm:$0xff]
  %v45 = vld [vmem:[%s0 + $0xf8] sm:$0xff]
  %v46 = vld [vmem:[%s0 + $0x100] sm:$0xff]
  %v47 = vld [vmem:[%s0 + $0x108] sm:$0xff]
  %v48 = vld [vmem:[%s0 + $0x110] sm:$0xff]
  %v49 = vld [vmem:[%s0 + $0x118] sm:$0xff]
  %v50 = vld [vmem:[%s0 + $0x120] sm:$0xff]
  %v51 = vld [vmem:[%s0 + $0x128] sm:$0xff]
  %v52 = vld [vmem:[%s0 + $0x130] sm:$0xff]
  %v53 = vld [vmem:[%s0 + $0x138] sm:$0xff]
  %v54 = vld [vmem:[%s0 + $0x140] sm:$0xff]
  %v55 = vld [vmem:[%s0 + $0x148] sm:$0xff]
  %v56 = vld [vmem:[%s1] sm:$0xf]
  %v57 = vld [vmem:[%s1 + $0x4] sm:$0xf]
  %v58 = vld [vmem:[%s1 + $0x8] sm:$0xf]
  %v59 = vld [vmem:[%s1 + $0xc] sm:$0xf]
  %v60 = vld [vmem:[%s1 + $0x10] sm:$0xf]
  %v61 = vld [vmem:[%s1 + $0x14] sm:$0xf]
  %v62 = vld [vmem:[%s1 + $0x18] sm:$0xf]
  %v63 = vld [vmem:[%s1 + $0x1c] sm:$0xf]
  %v64 = vld [vmem:[%s1 + $0x20] sm:$0xf]
  %v65 = vld [vmem:[%s1 + $0x24] sm:$0xf]
  %v66 = vld [vmem:[%s1 + $0x28] sm:$0xf]
  %v67 = vld [vmem:[%s1 + $0x2c] sm:$0xf]
  %v68 = vld [vmem:[%s1 + $0x30] sm:$0xf]
  %v69 = vld [vmem:[%s1 + $0x34] sm:$0xf]
  %v70 = vld [vmem:[%s1 + $0x38] sm:$0xf]
  %v71 = vld [vmem:[%s1 + $0x3c] sm:$0xf]
  %v72 = vld [vmem:[%s1 + $0x40] sm:$0xf]
  %v73 = vld [vmem:[%s1 + $0x44] sm:$0xf]
  %v74 = vld [vmem:[%s1 + $0x48] sm:$0xf]
  %v75 = vld [vmem:[%s1 + $0x4c] sm:$0xf]
  %v76 = vld [vmem:[%s1 + $0x50] sm:$0xf]
  %v77 = vld [vmem:[%s1 + $0x54] sm:$0xf]
  %v78 = vld [vmem:[%s1 + $0x58] sm:$0xf]
  %v79 = vld [vmem:[%s1 + $0x5c] sm:$0xf]
  %v80 = vld [vmem:[%s1 + $0x60] sm:$0xf]
  %v81 = vld [vmem:[%s1 + $0x64] sm:$0xf]
  %v82 = vld [vmem:[%s1 + $0x68] sm:$0xf]
  %v83 = vld [vmem:[%s1 + $0x6c] sm:$0xf]
  %v84 = vld [vmem:[%s1 + $0x70] sm:$0xf]
  %v85 = vld [vmem:[%s1 + $0x74] sm:$0xf]
  %v86 = vld [vmem:[%s1 + $0x78] sm:$0xf]
  %v87 = vld [vmem:[%s1 + $0x7c] sm:$0xf]
  %v88 = vld [vmem:[%s1 + $0x80] sm:$0xf]
  %v89 = vld [vmem:[%s1 + $0x84] sm:$0xf]
  %v90 = vld [vmem:[%s1 + $0x88] sm:$0xf]
  %v91 = vld [vmem:[%s1 + $0x8c] sm:$0xf]
  %v92 = vld [vmem:[%s1 + $0x90] sm:$0xf]
  %v93 = vld [vmem:[%s1 + $0x94] sm:$0xf]
  %v94 = vld [vmem:[%s1 + $0x98] sm:$0xf]
  %v95 = vld [vmem:[%s1 + $0x9c] sm:$0xf]
  %v96 = vld [vmem:[%s1 + $0xa0] sm:$0xf]
  %v97 = vld [vmem:[%s1 + $0xa4] sm:$0xf]
  %v98 = vld [vmem:[%s1 + $0xa8] sm:$0xf]
  %v99 = vld [vmem:[%s1 + $0xac] sm:$0xf]
  %v100 = vld [vmem:[%s1 + $0xb0] sm:$0xf]
  %v101 = vld [vmem:[%s1 + $0xb4] sm:$0xf]
  %v102 = vld [vmem:[%s1 + $0xb8] sm:$0xf]
  %v103 = vld [vmem:[%s1 + $0xbc] sm:$0xf]
  %v104 = vld [vmem:[%s1 + $0xc0] sm:$0xf]
  %v105 = vld [vmem:[%s1 + $0xc4] sm:$0xf]
  %v106 = vld [vmem:[%s1 + $0xc8] sm:$0xf]
  %v107 = vld [vmem:[%s1 + $0xcc] sm:$0xf]
  %v108 = vld [vmem:[%s1 + $0xd0] sm:$0xf]
  %v109 = vld [vmem:[%s1 + $0xd4] sm:$0xf]
  %v110 = vld [vmem:[%s1 + $0xd8] sm:$0xf]
  %v111 = vld [vmem:[%s1 + $0xdc] sm:$0xf]
  %v112 = vld [vmem:[%s1 + $0xe0] sm:$0xf]
  %v113 = vld [vmem:[%s1 + $0xe4] sm:$0xf]
  %v114 = vld [vmem:[%s1 + $0xe8] sm:$0xf]
  %v115 = vld [vmem:[%s1 + $0xec] sm:$0xf]
  %v116 = vld [vmem:[%s1 + $0xf0] sm:$0xf]
  %v117 = vld [vmem:[%s1 + $0xf4] sm:$0xf]
  %v118 = vld [vmem:[%s1 + $0xf8] sm:$0xf]
  %v119 = vld [vmem:[%s1 + $0xfc] sm:$0xf]
  %v120 = vld [vmem:[%s2] sm:$0x1]
  %v122 = vperm.slane %v120, 0
  %v166 = vunpack.c.l.b16 %v14
  %v167 = vunpack.c.h.b16 %v14
  %v168 = vunpack.c.l.b16 %v15
  %v169 = vunpack.c.h.b16 %v15
  %v170 = vunpack.c.l.b16 %v16
  %v171 = vunpack.c.h.b16 %v16
  %v172 = vunpack.c.l.b16 %v17
  %v173 = vunpack.c.h.b16 %v17
  %v174 = vunpack.c.l.b16 %v18
  %v175 = vunpack.c.h.b16 %v18
  %v176 = vunpack.c.l.b16 %v19
  %v177 = vunpack.c.h.b16 %v19
  %v178 = vunpack.c.l.b16 %v20
  %v179 = vunpack.c.h.b16 %v20
  %v180 = vunpack.c.l.b16 %v21
  %v181 = vunpack.c.h.b16 %v21
  %v182 = vunpack.c.l.b16 %v22
  %v183 = vunpack.c.h.b16 %v22
  %v184 = vunpack.c.l.b16 %v23
  %v185 = vunpack.c.h.b16 %v23
  %v186 = vunpack.c.l.b16 %v24
  %v187 = vunpack.c.h.b16 %v24
  %v188 = vunpack.c.l.b16 %v25
  %v189 = vunpack.c.h.b16 %v25
  %v190 = vunpack.c.l.b16 %v26
  %v191 = vunpack.c.h.b16 %v26
  %v192 = vunpack.c.l.b16 %v27
  %v193 = vunpack.c.h.b16 %v27
  %v194 = vunpack.c.l.b16 %v28
  %v195 = vunpack.c.h.b16 %v28
  %v196 = vunpack.c.l.b16 %v29
  %v197 = vunpack.c.h.b16 %v29
  %v198 = vunpack.c.l.b16 %v30
  %v199 = vunpack.c.h.b16 %v30
  %v200 = vunpack.c.l.b16 %v31
  %v201 = vunpack.c.h.b16 %v31
  %v202 = vunpack.c.l.b16 %v32
  %v203 = vunpack.c.h.b16 %v32
  %v204 = vunpack.c.l.b16 %v33
  %v205 = vunpack.c.h.b16 %v33
  %v206 = vunpack.c.l.b16 %v34
  %v207 = vunpack.c.h.b16 %v34
  %v208 = vunpack.c.l.b16 %v35
  %v209 = vunpack.c.h.b16 %v35
  %v210 = vunpack.c.l.b16 %v36
  %v211 = vunpack.c.h.b16 %v36
  %v212 = vunpack.c.l.b16 %v37
  %v213 = vunpack.c.h.b16 %v37
  %v214 = vunpack.c.l.b16 %v38
  %v215 = vunpack.c.h.b16 %v38
  %v216 = vunpack.c.l.b16 %v39
  %v217 = vunpack.c.h.b16 %v39
  %v218 = vunpack.c.l.b16 %v40
  %v219 = vunpack.c.h.b16 %v40
  %v220 = vunpack.c.l.b16 %v41
  %v221 = vunpack.c.h.b16 %v41
  %v222 = vunpack.c.l.b16 %v42
  %v223 = vunpack.c.h.b16 %v42
  %v224 = vunpack.c.l.b16 %v43
  %v225 = vunpack.c.h.b16 %v43
  %v226 = vunpack.c.l.b16 %v44
  %v227 = vunpack.c.h.b16 %v44
  %v228 = vunpack.c.l.b16 %v45
  %v229 = vunpack.c.h.b16 %v45
  %v230 = vunpack.c.l.b16 %v46
  %v231 = vunpack.c.h.b16 %v46
  %v232 = vunpack.c.l.b16 %v47
  %v233 = vunpack.c.h.b16 %v47
  %v234 = vunpack.c.l.b16 %v48
  %v235 = vunpack.c.h.b16 %v48
  %v236 = vunpack.c.l.b16 %v49
  %v237 = vunpack.c.h.b16 %v49
  %v238 = vunpack.c.l.b16 %v50
  %v239 = vunpack.c.h.b16 %v50
  %v240 = vunpack.c.l.b16 %v51
  %v241 = vunpack.c.h.b16 %v51
  %v242 = vunpack.c.l.b16 %v52
  %v243 = vunpack.c.h.b16 %v52
  %v244 = vunpack.c.l.b16 %v53
  %v245 = vunpack.c.h.b16 %v53
  %v246 = vunpack.c.l.b16 %v54
  %v247 = vunpack.c.h.b16 %v54
  %v248 = vunpack.c.l.b16 %v55
  %v249 = vunpack.c.h.b16 %v55
  %v250 = vpack.c.b16 %v170, %v166
  %v251 = vpack.c.b16 %v171, %v167
  %v252 = vpack.c.b16 %v172, %v168
  %v253 = vpack.c.b16 %v173, %v169
  %v254 = vpack.c.b16 %v178, %v174
  %v255 = vpack.c.b16 %v179, %v175
  %v256 = vpack.c.b16 %v180, %v176
  %v257 = vpack.c.b16 %v181, %v177
  %v258 = vpack.c.b16 %v186, %v182
  %v259 = vpack.c.b16 %v187, %v183
  %v260 = vpack.c.b16 %v188, %v184
  %v261 = vpack.c.b16 %v189, %v185
  %v262 = vpack.c.b16 %v194, %v190
  %v263 = vpack.c.b16 %v195, %v191
  %v264 = vpack.c.b16 %v196, %v192
  %v265 = vpack.c.b16 %v197, %v193
  %v266 = vpack.c.b16 %v202, %v198
  %v267 = vpack.c.b16 %v203, %v199
  %v268 = vpack.c.b16 %v204, %v200
  %v269 = vpack.c.b16 %v205, %v201
  %v270 = vpack.c.b16 %v210, %v206
  %v271 = vpack.c.b16 %v211, %v207
  %v272 = vpack.c.b16 %v212, %v208
  %v273 = vpack.c.b16 %v213, %v209
  %v274 = vpack.c.b16 %v218, %v214
  %v275 = vpack.c.b16 %v219, %v215
  %v276 = vpack.c.b16 %v220, %v216
  %v277 = vpack.c.b16 %v221, %v217
  %v278 = vpack.c.b16 %v226, %v222
  %v279 = vpack.c.b16 %v227, %v223
  %v280 = vpack.c.b16 %v228, %v224
  %v281 = vpack.c.b16 %v229, %v225
  %v282 = vpack.c.b16 %v234, %v230
  %v283 = vpack.c.b16 %v235, %v231
  %v284 = vpack.c.b16 %v236, %v232
  %v285 = vpack.c.b16 %v237, %v233
  %v286 = vpack.c.b16 %v242, %v238
  %v287 = vpack.c.b16 %v243, %v239
  %v288 = vpack.c.b16 %v244, %v240
  %v289 = vpack.c.b16 %v245, %v241
  %v290 = vpack.c.b16 %v246, %v246
  %v291 = vpack.c.b16 %v247, %v247
  %v292 = vpack.c.b16 %v248, %v248
  %v293 = vpack.c.b16 %v249, %v249
  %v402 = vunpack.c.l.b16 %v56
  %v403 = vunpack.c.l.b16 %v57
  %v404 = vunpack.c.l.b16 %v58
  %v405 = vunpack.c.l.b16 %v59
  %v406 = vunpack.c.l.b16 %v60
  %v407 = vunpack.c.l.b16 %v61
  %v408 = vunpack.c.l.b16 %v62
  %v409 = vunpack.c.l.b16 %v63
  %v410 = vunpack.c.l.b16 %v64
  %v411 = vunpack.c.l.b16 %v65
  %v412 = vunpack.c.l.b16 %v66
  %v413 = vunpack.c.l.b16 %v67
  %v414 = vunpack.c.l.b16 %v68
  %v415 = vunpack.c.l.b16 %v69
  %v416 = vunpack.c.l.b16 %v70
  %v417 = vunpack.c.l.b16 %v71
  %v418 = vunpack.c.l.b16 %v72
  %v419 = vunpack.c.l.b16 %v73
  %v420 = vunpack.c.l.b16 %v74
  %v421 = vunpack.c.l.b16 %v75
  %v422 = vunpack.c.l.b16 %v76
  %v423 = vunpack.c.l.b16 %v77
  %v424 = vunpack.c.l.b16 %v78
  %v425 = vunpack.c.l.b16 %v79
  %v426 = vunpack.c.l.b16 %v80
  %v427 = vunpack.c.l.b16 %v81
  %v428 = vunpack.c.l.b16 %v82
  %v429 = vunpack.c.l.b16 %v83
  %v430 = vunpack.c.l.b16 %v84
  %v431 = vunpack.c.l.b16 %v85
  %v432 = vunpack.c.l.b16 %v86
  %v433 = vunpack.c.l.b16 %v87
  %v434 = vunpack.c.l.b16 %v88
  %v435 = vunpack.c.l.b16 %v89
  %v436 = vunpack.c.l.b16 %v90
  %v437 = vunpack.c.l.b16 %v91
  %v438 = vunpack.c.l.b16 %v92
  %v439 = vunpack.c.l.b16 %v93
  %v440 = vunpack.c.l.b16 %v94
  %v441 = vunpack.c.l.b16 %v95
  %v442 = vunpack.c.l.b16 %v96
  %v443 = vunpack.c.l.b16 %v97
  %v444 = vunpack.c.l.b16 %v98
  %v445 = vunpack.c.l.b16 %v99
  %v446 = vunpack.c.l.b16 %v100
  %v447 = vunpack.c.l.b16 %v101
  %v448 = vunpack.c.l.b16 %v102
  %v449 = vunpack.c.l.b16 %v103
  %v450 = vunpack.c.l.b16 %v104
  %v451 = vunpack.c.l.b16 %v105
  %v452 = vunpack.c.l.b16 %v106
  %v453 = vunpack.c.l.b16 %v107
  %v454 = vunpack.c.l.b16 %v108
  %v455 = vunpack.c.l.b16 %v109
  %v456 = vunpack.c.l.b16 %v110
  %v457 = vunpack.c.l.b16 %v111
  %v458 = vunpack.c.l.b16 %v112
  %v459 = vunpack.c.l.b16 %v113
  %v460 = vunpack.c.l.b16 %v114
  %v461 = vunpack.c.l.b16 %v115
  %v462 = vunpack.c.l.b16 %v116
  %v463 = vunpack.c.l.b16 %v117
  %v464 = vunpack.c.l.b16 %v118
  %v465 = vunpack.c.l.b16 %v119
  %v466 = vpack.c.b16 %v403, %v402
  %v467 = vpack.c.b16 %v405, %v404
  %v468 = vpack.c.b16 %v407, %v406
  %v469 = vpack.c.b16 %v409, %v408
  %v470 = vpack.c.b16 %v411, %v410
  %v471 = vpack.c.b16 %v413, %v412
  %v472 = vpack.c.b16 %v415, %v414
  %v473 = vpack.c.b16 %v417, %v416
  %v474 = vpack.c.b16 %v419, %v418
  %v475 = vpack.c.b16 %v421, %v420
  %v476 = vpack.c.b16 %v423, %v422
  %v477 = vpack.c.b16 %v425, %v424
  %v478 = vpack.c.b16 %v427, %v426
  %v479 = vpack.c.b16 %v429, %v428
  %v480 = vpack.c.b16 %v431, %v430
  %v481 = vpack.c.b16 %v433, %v432
  %v482 = vpack.c.b16 %v435, %v434
  %v483 = vpack.c.b16 %v437, %v436
  %v484 = vpack.c.b16 %v439, %v438
  %v485 = vpack.c.b16 %v441, %v440
  %v486 = vpack.c.b16 %v443, %v442
  %v487 = vpack.c.b16 %v445, %v444
  %v488 = vpack.c.b16 %v447, %v446
  %v489 = vpack.c.b16 %v449, %v448
  %v490 = vpack.c.b16 %v451, %v450
  %v491 = vpack.c.b16 %v453, %v452
  %v492 = vpack.c.b16 %v455, %v454
  %v493 = vpack.c.b16 %v457, %v456
  %v494 = vpack.c.b16 %v459, %v458
  %v495 = vpack.c.b16 %v461, %v460
  %v496 = vpack.c.b16 %v463, %v462
  %v497 = vpack.c.b16 %v465, %v464
  %530 = vmatpush.bf16.msra.mxu0 %v473
  %531 = vmatpush.bf16.msra.mxu0 %v472
  %532 = vmatpush.bf16.msra.mxu0 %v471
  %533 = vmatpush.bf16.msra.mxu0 %v470
  %534 = vmatpush.bf16.msra.mxu0 %v469
  %535 = vmatpush.bf16.msra.mxu0 %v468
  %536 = vmatpush.bf16.msra.mxu0 %v467
  %537 = vmatpush.bf16.msra.mxu0 %v466
  %538 = vmatmul.bf16.gmra.mxu0 %v250
  %v539 = vpop.f32.mrf.mxu0
  %v540 = vadd.f32 %v122, %v539
  %v541 = vpop.f32.mrf.mxu0
  %v542 = vadd.f32 %v122, %v541
  %543 = vmatmul.bf16.gmra.mxu0 %v254
  %v544 = vpop.f32.mrf.mxu0
  %v545 = vadd.f32 %v122, %v544
  %v546 = vpop.f32.mrf.mxu0
  %v547 = vadd.f32 %v122, %v546
  %548 = vmatmul.bf16.gmra.mxu0 %v258
  %v549 = vpop.f32.mrf.mxu0
  %v550 = vadd.f32 %v122, %v549
  %v551 = vpop.f32.mrf.mxu0
  %v552 = vadd.f32 %v122, %v551
  %553 = vmatmul.bf16.gmra.mxu0 %v262
  %v554 = vpop.f32.mrf.mxu0
  %v555 = vadd.f32 %v122, %v554
  %v556 = vpop.f32.mrf.mxu0
  %v557 = vadd.f32 %v122, %v556
  %558 = vmatmul.bf16.gmra.mxu0 %v266
  %v559 = vpop.f32.mrf.mxu0
  %v560 = vadd.f32 %v122, %v559
  %v561 = vpop.f32.mrf.mxu0
  %v562 = vadd.f32 %v122, %v561
  %563 = vmatmul.bf16.gmra.mxu0 %v270
  %v564 = vpop.f32.mrf.mxu0
  %v565 = vadd.f32 %v122, %v564
  %v566 = vpop.f32.mrf.mxu0
  %v567 = vadd.f32 %v122, %v566
  %568 = vmatmul.bf16.gmra.mxu0 %v274
  %v569 = vpop.f32.mrf.mxu0
  %v570 = vadd.f32 %v122, %v569
  %v571 = vpop.f32.mrf.mxu0
  %v572 = vadd.f32 %v122, %v571
  %573 = vmatmul.bf16.gmra.mxu0 %v278
  %v574 = vpop.f32.mrf.mxu0
  %v575 = vadd.f32 %v122, %v574
  %v576 = vpop.f32.mrf.mxu0
  %v577 = vadd.f32 %v122, %v576
  %578 = vmatmul.bf16.gmra.mxu0 %v282
  %v579 = vpop.f32.mrf.mxu0
  %v580 = vadd.f32 %v122, %v579
  %v581 = vpop.f32.mrf.mxu0
  %v582 = vadd.f32 %v122, %v581
  %583 = vmatmul.bf16.gmra.mxu0 %v286
  %v584 = vpop.f32.mrf.mxu0
  %v585 = vadd.f32 %v122, %v584
  %v586 = vpop.f32.mrf.mxu0
  %v587 = vadd.f32 %v122, %v586
  %588 = vmatmul.bf16.gmra.mxu0 %v290
  %v589 = vpop.f32.mrf.mxu0
  %v590 = vadd.f32 %v122, %v589
  %v591 = vpop.f32.mrf.mxu0
  %592 = vdwg.mxu0
  %593 = vmatpush.bf16.msra.mxu0 %v481
  %594 = vmatpush.bf16.msra.mxu0 %v480
  %595 = vmatpush.bf16.msra.mxu0 %v479
  %596 = vmatpush.bf16.msra.mxu0 %v478
  %597 = vmatpush.bf16.msra.mxu0 %v477
  %598 = vmatpush.bf16.msra.mxu0 %v476
  %599 = vmatpush.bf16.msra.mxu0 %v475
  %600 = vmatpush.bf16.msra.mxu0 %v474
  %601 = vmatmul.bf16.gmra.mxu0 %v251
  %v602 = vpop.f32.mrf.mxu0
  %v603 = vadd.f32 %v540, %v602
  %v604 = vpop.f32.mrf.mxu0
  %v605 = vadd.f32 %v542, %v604
  %606 = vmatmul.bf16.gmra.mxu0 %v255
  %v607 = vpop.f32.mrf.mxu0
  %v608 = vadd.f32 %v545, %v607
  %v609 = vpop.f32.mrf.mxu0
  %v610 = vadd.f32 %v547, %v609
  %611 = vmatmul.bf16.gmra.mxu0 %v259
  %v612 = vpop.f32.mrf.mxu0
  %v613 = vadd.f32 %v550, %v612
  %v614 = vpop.f32.mrf.mxu0
  %v615 = vadd.f32 %v552, %v614
  %616 = vmatmul.bf16.gmra.mxu0 %v263
  %v617 = vpop.f32.mrf.mxu0
  %v618 = vadd.f32 %v555, %v617
  %v619 = vpop.f32.mrf.mxu0
  %v620 = vadd.f32 %v557, %v619
  %621 = vmatmul.bf16.gmra.mxu0 %v267
  %v622 = vpop.f32.mrf.mxu0
  %v623 = vadd.f32 %v560, %v622
  %v624 = vpop.f32.mrf.mxu0
  %v625 = vadd.f32 %v562, %v624
  %626 = vmatmul.bf16.gmra.mxu0 %v271
  %v627 = vpop.f32.mrf.mxu0
  %v628 = vadd.f32 %v565, %v627
  %v629 = vpop.f32.mrf.mxu0
  %v630 = vadd.f32 %v567, %v629
  %631 = vmatmul.bf16.gmra.mxu0 %v275
  %v632 = vpop.f32.mrf.mxu0
  %v633 = vadd.f32 %v570, %v632
  %v634 = vpop.f32.mrf.mxu0
  %v635 = vadd.f32 %v572, %v634
  %636 = vmatmul.bf16.gmra.mxu0 %v279
  %v637 = vpop.f32.mrf.mxu0
  %v638 = vadd.f32 %v575, %v637
  %v639 = vpop.f32.mrf.mxu0
  %v640 = vadd.f32 %v577, %v639
  %641 = vmatmul.bf16.gmra.mxu0 %v283
  %v642 = vpop.f32.mrf.mxu0
  %v643 = vadd.f32 %v580, %v642
  %v644 = vpop.f32.mrf.mxu0
  %v645 = vadd.f32 %v582, %v644
  %646 = vmatmul.bf16.gmra.mxu0 %v287
  %v647 = vpop.f32.mrf.mxu0
  %v648 = vadd.f32 %v585, %v647
  %v649 = vpop.f32.mrf.mxu0
  %v650 = vadd.f32 %v587, %v649
  %651 = vmatmul.bf16.gmra.mxu0 %v291
  %v652 = vpop.f32.mrf.mxu0
  %v653 = vadd.f32 %v590, %v652
  %v654 = vpop.f32.mrf.mxu0
  %655 = vdwg.mxu0
  %656 = vmatpush.bf16.msra.mxu0 %v489
  %657 = vmatpush.bf16.msra.mxu0 %v488
  %658 = vmatpush.bf16.msra.mxu0 %v487
  %659 = vmatpush.bf16.msra.mxu0 %v486
  %660 = vmatpush.bf16.msra.mxu0 %v485
  %661 = vmatpush.bf16.msra.mxu0 %v484
  %662 = vmatpush.bf16.msra.mxu0 %v483
  %663 = vmatpush.bf16.msra.mxu0 %v482
  %664 = vmatmul.bf16.gmra.mxu0 %v252
  %v665 = vpop.f32.mrf.mxu0
  %v666 = vadd.f32 %v603, %v665
  %v667 = vpop.f32.mrf.mxu0
  %v668 = vadd.f32 %v605, %v667
  %669 = vmatmul.bf16.gmra.mxu0 %v256
  %v670 = vpop.f32.mrf.mxu0
  %v671 = vadd.f32 %v608, %v670
  %v672 = vpop.f32.mrf.mxu0
  %v673 = vadd.f32 %v610, %v672
  %674 = vmatmul.bf16.gmra.mxu0 %v260
  %v675 = vpop.f32.mrf.mxu0
  %v676 = vadd.f32 %v613, %v675
  %v677 = vpop.f32.mrf.mxu0
  %v678 = vadd.f32 %v615, %v677
  %679 = vmatmul.bf16.gmra.mxu0 %v264
  %v680 = vpop.f32.mrf.mxu0
  %v681 = vadd.f32 %v618, %v680
  %v682 = vpop.f32.mrf.mxu0
  %v683 = vadd.f32 %v620, %v682
  %684 = vmatmul.bf16.gmra.mxu0 %v268
  %v685 = vpop.f32.mrf.mxu0
  %v686 = vadd.f32 %v623, %v685
  %v687 = vpop.f32.mrf.mxu0
  %v688 = vadd.f32 %v625, %v687
  %689 = vmatmul.bf16.gmra.mxu0 %v272
  %v690 = vpop.f32.mrf.mxu0
  %v691 = vadd.f32 %v628, %v690
  %v692 = vpop.f32.mrf.mxu0
  %v693 = vadd.f32 %v630, %v692
  %694 = vmatmul.bf16.gmra.mxu0 %v276
  %v695 = vpop.f32.mrf.mxu0
  %v696 = vadd.f32 %v633, %v695
  %v697 = vpop.f32.mrf.mxu0
  %v698 = vadd.f32 %v635, %v697
  %699 = vmatmul.bf16.gmra.mxu0 %v280
  %v700 = vpop.f32.mrf.mxu0
  %v701 = vadd.f32 %v638, %v700
  %v702 = vpop.f32.mrf.mxu0
  %v703 = vadd.f32 %v640, %v702
  %704 = vmatmul.bf16.gmra.mxu0 %v284
  %v705 = vpop.f32.mrf.mxu0
  %v706 = vadd.f32 %v643, %v705
  %v707 = vpop.f32.mrf.mxu0
  %v708 = vadd.f32 %v645, %v707
  %709 = vmatmul.bf16.gmra.mxu0 %v288
  %v710 = vpop.f32.mrf.mxu0
  %v711 = vadd.f32 %v648, %v710
  %v712 = vpop.f32.mrf.mxu0
  %v713 = vadd.f32 %v650, %v712
  %714 = vmatmul.bf16.gmra.mxu0 %v292
  %v715 = vpop.f32.mrf.mxu0
  %v716 = vadd.f32 %v653, %v715
  %v717 = vpop.f32.mrf.mxu0
  %718 = vdwg.mxu0
  %719 = vmatpush.bf16.msra.mxu0 %v497
  %720 = vmatpush.bf16.msra.mxu0 %v496
  %721 = vmatpush.bf16.msra.mxu0 %v495
  %722 = vmatpush.bf16.msra.mxu0 %v494
  %723 = vmatpush.bf16.msra.mxu0 %v493
  %724 = vmatpush.bf16.msra.mxu0 %v492
  %725 = vmatpush.bf16.msra.mxu0 %v491
  %726 = vmatpush.bf16.msra.mxu0 %v490
  %727 = vmatmul.bf16.gmra.mxu0 %v253
  %v728 = vpop.f32.mrf.mxu0
  %v729 = vadd.f32 %v666, %v728
  %v730 = vpop.f32.mrf.mxu0
  %v731 = vadd.f32 %v668, %v730
  %732 = vmatmul.bf16.gmra.mxu0 %v257
  %v733 = vpop.f32.mrf.mxu0
  %v734 = vadd.f32 %v671, %v733
  %v735 = vpop.f32.mrf.mxu0
  %v736 = vadd.f32 %v673, %v735
  %737 = vmatmul.bf16.gmra.mxu0 %v261
  %v738 = vpop.f32.mrf.mxu0
  %v739 = vadd.f32 %v676, %v738
  %v740 = vpop.f32.mrf.mxu0
  %v741 = vadd.f32 %v678, %v740
  %742 = vmatmul.bf16.gmra.mxu0 %v265
  %v743 = vpop.f32.mrf.mxu0
  %v744 = vadd.f32 %v681, %v743
  %v745 = vpop.f32.mrf.mxu0
  %v746 = vadd.f32 %v683, %v745
  %747 = vmatmul.bf16.gmra.mxu0 %v269
  %v748 = vpop.f32.mrf.mxu0
  %v749 = vadd.f32 %v686, %v748
  %v750 = vpop.f32.mrf.mxu0
  %v751 = vadd.f32 %v688, %v750
  %752 = vmatmul.bf16.gmra.mxu0 %v273
  %v753 = vpop.f32.mrf.mxu0
  %v754 = vadd.f32 %v691, %v753
  %v755 = vpop.f32.mrf.mxu0
  %v756 = vadd.f32 %v693, %v755
  %757 = vmatmul.bf16.gmra.mxu0 %v277
  %v758 = vpop.f32.mrf.mxu0
  %v759 = vadd.f32 %v696, %v758
  %v760 = vpop.f32.mrf.mxu0
  %v761 = vadd.f32 %v698, %v760
  %762 = vmatmul.bf16.gmra.mxu0 %v281
  %v763 = vpop.f32.mrf.mxu0
  %v764 = vadd.f32 %v701, %v763
  %v765 = vpop.f32.mrf.mxu0
  %v766 = vadd.f32 %v703, %v765
  %767 = vmatmul.bf16.gmra.mxu0 %v285
  %v768 = vpop.f32.mrf.mxu0
  %v769 = vadd.f32 %v706, %v768
  %v770 = vpop.f32.mrf.mxu0
  %v771 = vadd.f32 %v708, %v770
  %772 = vmatmul.bf16.gmra.mxu0 %v289
  %v773 = vpop.f32.mrf.mxu0
  %v774 = vadd.f32 %v711, %v773
  %v775 = vpop.f32.mrf.mxu0
  %v776 = vadd.f32 %v713, %v775
  %777 = vmatmul.bf16.gmra.mxu0 %v293
  %v778 = vpop.f32.mrf.mxu0
  %v779 = vadd.f32 %v716, %v778
  %v780 = vpop.f32.mrf.mxu0
  %781 = vdwg.mxu0
  %v782 = vmax.f32 %v729, 0.0
  %v783 = vmax.f32 %v731, 0.0
  %v784 = vmax.f32 %v734, 0.0
  %v785 = vmax.f32 %v736, 0.0
  %v786 = vmax.f32 %v739, 0.0
  %v787 = vmax.f32 %v741, 0.0
  %v788 = vmax.f32 %v744, 0.0
  %v789 = vmax.f32 %v746, 0.0
  %v790 = vmax.f32 %v749, 0.0
  %v791 = vmax.f32 %v751, 0.0
  %v792 = vmax.f32 %v754, 0.0
  %v793 = vmax.f32 %v756, 0.0
  %v794 = vmax.f32 %v759, 0.0
  %v795 = vmax.f32 %v761, 0.0
  %v796 = vmax.f32 %v764, 0.0
  %v797 = vmax.f32 %v766, 0.0
  %v798 = vmax.f32 %v769, 0.0
  %v799 = vmax.f32 %v771, 0.0
  %v800 = vmax.f32 %v774, 0.0
  %v801 = vmax.f32 %v776, 0.0
  %v802 = vmax.f32 %v779, 0.0
  %v803 = vpack.c.bf16 %v782, %v782
  %v804 = vpack.c.bf16 %v783, %v783
  %v805 = vpack.c.bf16 %v784, %v784
  %v806 = vpack.c.bf16 %v785, %v785
  %v807 = vpack.c.bf16 %v786, %v786
  %v808 = vpack.c.bf16 %v787, %v787
  %v809 = vpack.c.bf16 %v788, %v788
  %v810 = vpack.c.bf16 %v789, %v789
  %v811 = vpack.c.bf16 %v790, %v790
  %v812 = vpack.c.bf16 %v791, %v791
  %v813 = vpack.c.bf16 %v792, %v792
  %v814 = vpack.c.bf16 %v793, %v793
  %v815 = vpack.c.bf16 %v794, %v794
  %v816 = vpack.c.bf16 %v795, %v795
  %v817 = vpack.c.bf16 %v796, %v796
  %v818 = vpack.c.bf16 %v797, %v797
  %v819 = vpack.c.bf16 %v798, %v798
  %v820 = vpack.c.bf16 %v799, %v799
  %v821 = vpack.c.bf16 %v800, %v800
  %v822 = vpack.c.bf16 %v801, %v801
  %v823 = vpack.c.bf16 %v802, %v802
  %vm824 = vcmask 519168
  %825 = vst.msk [vmem:[%s3] sm:$0xf] %vm824, %v803
  %826 = vst.msk [vmem:[%s3 + $0x4] sm:$0xf] %vm824, %v804
  %827 = vst.msk [vmem:[%s3 + $0x8] sm:$0xf] %vm824, %v805
  %828 = vst.msk [vmem:[%s3 + $0xc] sm:$0xf] %vm824, %v806
  %829 = vst.msk [vmem:[%s3 + $0x10] sm:$0xf] %vm824, %v807
  %830 = vst.msk [vmem:[%s3 + $0x14] sm:$0xf] %vm824, %v808
  %831 = vst.msk [vmem:[%s3 + $0x18] sm:$0xf] %vm824, %v809
  %832 = vst.msk [vmem:[%s3 + $0x1c] sm:$0xf] %vm824, %v810
  %833 = vst.msk [vmem:[%s3 + $0x20] sm:$0xf] %vm824, %v811
  %834 = vst.msk [vmem:[%s3 + $0x24] sm:$0xf] %vm824, %v812
  %835 = vst.msk [vmem:[%s3 + $0x28] sm:$0xf] %vm824, %v813
  %836 = vst.msk [vmem:[%s3 + $0x2c] sm:$0xf] %vm824, %v814
  %837 = vst.msk [vmem:[%s3 + $0x30] sm:$0xf] %vm824, %v815
  %838 = vst.msk [vmem:[%s3 + $0x34] sm:$0xf] %vm824, %v816
  %839 = vst.msk [vmem:[%s3 + $0x38] sm:$0xf] %vm824, %v817
  %840 = vst.msk [vmem:[%s3 + $0x3c] sm:$0xf] %vm824, %v818
  %841 = vst.msk [vmem:[%s3 + $0x40] sm:$0xf] %vm824, %v819
  %842 = vst.msk [vmem:[%s3 + $0x44] sm:$0xf] %vm824, %v820
  %843 = vst.msk [vmem:[%s3 + $0x48] sm:$0xf] %vm824, %v821
  %844 = vst.msk [vmem:[%s3 + $0x4c] sm:$0xf] %vm824, %v822
  %845 = vst.msk [vmem:[%s3 + $0x50] sm:$0xf] %vm824, %v823
  // Predicated region
  $region14: #{cnn_base_forward.5} parent=0 // pred_check
    _
  $region15: #{cnn_base_forward.5} parent=0 // pred_check_branch
    %847 = sbr.rel (0) target = $region17
  $region16: #{cnn_base_forward.5} parent=0 // pred_region
    _
  $region17: #{cnn_base_forward.5} parent=0 // pred_fallthru
    _
  // Predicated region
  $region18: #{cnn_base_forward.5} parent=0 // pred_check
    _
  $region19: #{cnn_base_forward.5} parent=0 // pred_check_branch
    %849 = sbr.rel (0) target = $region21
  $region20: #{cnn_base_forward.5} parent=0 // pred_region
    _
  $region21: #{cnn_base_forward.5} parent=0 // pred_fallthru
    _

// kernel: cnn_base_forward.6
$region0: #{cnn_base_forward.6}
  #allocation0 [shape = 'u32[]', space=smem, size = 0x4, offset = 0x4, fixed_abs, tag = 'smem constant byte address 0x4 - core index']
  #allocation1 [shape = 'u32[72,128]{1,0:T(1,128)}', space=vmem, size = 0x9000, scoped, tag = 'internal scratch']
  %s0 = inlined_call_operand.vmem [shape: bf16[104,576], index: 0, kind: input, shape index: {}]
  %s1 = inlined_call_operand.vmem [shape: bf16[576,32], index: 1, kind: input, shape index: {}]
  %s2 = inlined_call_operand.vmem [shape: f32[1,32], index: 2, kind: input, shape index: {}]
  %s3 = inlined_call_operand.vmem [shape: bf16[104,32], index: 3, kind: output, shape index: {}]
  %s4 = sld [smem:[#allocation0]]
  $region22: #{cnn_base_forward.6} parent=0
    _
  %s6 = ssub.s32 1, %s4
  %s7 = scalar_select 0, %s6, %s4
  // Predicated region
  $region2: #{cnn_base_forward.6} parent=0 // pred_check
    _
  $region3: #{cnn_base_forward.6} parent=0 // pred_check_branch
    %9 = sbr.rel (0) target = $region5
  $region4: #{cnn_base_forward.6} parent=0 // pred_region
    _
  $region5: #{cnn_base_forward.6} parent=0 // pred_fallthru
    _
  // Predicated region
  $region6: #{cnn_base_forward.6} parent=0 // pred_check
    _
  $region7: #{cnn_base_forward.6} parent=0 // pred_check_branch
    %11 = sbr.rel (0) target = $region9
  $region8: #{cnn_base_forward.6} parent=0 // pred_region
    _
  $region9: #{cnn_base_forward.6} parent=0 // pred_fallthru
    _
  // Predicated region
  $region10: #{cnn_base_forward.6} parent=0 // pred_check
    _
  $region11: #{cnn_base_forward.6} parent=0 // pred_check_branch
    %13 = sbr.rel (0) target = $region13
  $region12: #{cnn_base_forward.6} parent=0 // pred_region
    _
  $region13: #{cnn_base_forward.6} parent=0 // pred_fallthru
    _
  %v15 = vld [vmem:[%s0] sm:$0xff]
  %v16 = vld [vmem:[%s0 + $0x8] sm:$0xff]
  %v17 = vld [vmem:[%s0 + $0x10] sm:$0xf]
  %v18 = vld [vmem:[%s0 + $0x14] sm:$0xff]
  %v19 = vld [vmem:[%s0 + $0x1c] sm:$0xff]
  %v20 = vld [vmem:[%s0 + $0x24] sm:$0xf]
  %v21 = vld [vmem:[%s0 + $0x28] sm:$0xff]
  %v22 = vld [vmem:[%s0 + $0x30] sm:$0xff]
  %v23 = vld [vmem:[%s0 + $0x38] sm:$0xf]
  %v24 = vld [vmem:[%s0 + $0x3c] sm:$0xff]
  %v25 = vld [vmem:[%s0 + $0x44] sm:$0xff]
  %v26 = vld [vmem:[%s0 + $0x4c] sm:$0xf]
  %v27 = vld [vmem:[%s0 + $0x50] sm:$0xff]
  %v28 = vld [vmem:[%s0 + $0x58] sm:$0xff]
  %v29 = vld [vmem:[%s0 + $0x60] sm:$0xf]
  %v30 = vld [vmem:[%s0 + $0x64] sm:$0xff]
  %v31 = vld [vmem:[%s0 + $0x6c] sm:$0xff]
  %v32 = vld [vmem:[%s0 + $0x74] sm:$0xf]
  %v33 = vld [vmem:[%s0 + $0x78] sm:$0xff]
  %v34 = vld [vmem:[%s0 + $0x80] sm:$0xff]
  %v35 = vld [vmem:[%s0 + $0x88] sm:$0xf]
  %v36 = vld [vmem:[%s0 + $0x8c] sm:$0xff]
  %v37 = vld [vmem:[%s0 + $0x94] sm:$0xff]
  %v38 = vld [vmem:[%s0 + $0x9c] sm:$0xf]
  %v39 = vld [vmem:[%s0 + $0xa0] sm:$0xff]
  %v40 = vld [vmem:[%s0 + $0xa8] sm:$0xff]
  %v41 = vld [vmem:[%s0 + $0xb0] sm:$0xf]
  %v42 = vld [vmem:[%s0 + $0xb4] sm:$0xff]
  %v43 = vld [vmem:[%s0 + $0xbc] sm:$0xff]
  %v44 = vld [vmem:[%s0 + $0xc4] sm:$0xf]
  %v45 = vld [vmem:[%s0 + $0xc8] sm:$0xff]
  %v46 = vld [vmem:[%s0 + $0xd0] sm:$0xff]
  %v47 = vld [vmem:[%s0 + $0xd8] sm:$0xf]
  %v48 = vld [vmem:[%s0 + $0xdc] sm:$0xff]
  %v49 = vld [vmem:[%s0 + $0xe4] sm:$0xff]
  %v50 = vld [vmem:[%s0 + $0xec] sm:$0xf]
  %v51 = vld [vmem:[%s0 + $0xf0] sm:$0xff]
  %v52 = vld [vmem:[%s0 + $0xf8] sm:$0xff]
  %v53 = vld [vmem:[%s0 + $0x100] sm:$0xf]
  %v54 = vld [vmem:[%s1] sm:$0xf]
  %v55 = vld [vmem:[%s1 + $0x4] sm:$0xf]
  %v56 = vld [vmem:[%s1 + $0x8] sm:$0xf]
  %v57 = vld [vmem:[%s1 + $0xc] sm:$0xf]
  %v58 = vld [vmem:[%s1 + $0x10] sm:$0xf]
  %v59 = vld [vmem:[%s1 + $0x14] sm:$0xf]
  %v60 = vld [vmem:[%s1 + $0x18] sm:$0xf]
  %v61 = vld [vmem:[%s1 + $0x1c] sm:$0xf]
  %v62 = vld [vmem:[%s1 + $0x20] sm:$0xf]
  %v63 = vld [vmem:[%s1 + $0x24] sm:$0xf]
  %v64 = vld [vmem:[%s1 + $0x28] sm:$0xf]
  %v65 = vld [vmem:[%s1 + $0x2c] sm:$0xf]
  %v66 = vld [vmem:[%s1 + $0x30] sm:$0xf]
  %v67 = vld [vmem:[%s1 + $0x34] sm:$0xf]
  %v68 = vld [vmem:[%s1 + $0x38] sm:$0xf]
  %v69 = vld [vmem:[%s1 + $0x3c] sm:$0xf]
  %v70 = vld [vmem:[%s1 + $0x40] sm:$0xf]
  %v71 = vld [vmem:[%s1 + $0x44] sm:$0xf]
  %v72 = vld [vmem:[%s1 + $0x48] sm:$0xf]
  %v73 = vld [vmem:[%s1 + $0x4c] sm:$0xf]
  %v74 = vld [vmem:[%s1 + $0x50] sm:$0xf]
  %v75 = vld [vmem:[%s1 + $0x54] sm:$0xf]
  %v76 = vld [vmem:[%s1 + $0x58] sm:$0xf]
  %v77 = vld [vmem:[%s1 + $0x5c] sm:$0xf]
  %v78 = vld [vmem:[%s1 + $0x60] sm:$0xf]
  %v79 = vld [vmem:[%s1 + $0x64] sm:$0xf]
  %v80 = vld [vmem:[%s1 + $0x68] sm:$0xf]
  %v81 = vld [vmem:[%s1 + $0x6c] sm:$0xf]
  %v82 = vld [vmem:[%s1 + $0x70] sm:$0xf]
  %v83 = vld [vmem:[%s1 + $0x74] sm:$0xf]
  %v84 = vld [vmem:[%s1 + $0x78] sm:$0xf]
  %v85 = vld [vmem:[%s1 + $0x7c] sm:$0xf]
  %v86 = vld [vmem:[%s1 + $0x80] sm:$0xf]
  %v87 = vld [vmem:[%s1 + $0x84] sm:$0xf]
  %v88 = vld [vmem:[%s1 + $0x88] sm:$0xf]
  %v89 = vld [vmem:[%s1 + $0x8c] sm:$0xf]
  %v90 = vld [vmem:[%s1 + $0x90] sm:$0xf]
  %v91 = vld [vmem:[%s1 + $0x94] sm:$0xf]
  %v92 = vld [vmem:[%s1 + $0x98] sm:$0xf]
  %v93 = vld [vmem:[%s1 + $0x9c] sm:$0xf]
  %v94 = vld [vmem:[%s1 + $0xa0] sm:$0xf]
  %v95 = vld [vmem:[%s1 + $0xa4] sm:$0xf]
  %v96 = vld [vmem:[%s1 + $0xa8] sm:$0xf]
  %v97 = vld [vmem:[%s1 + $0xac] sm:$0xf]
  %v98 = vld [vmem:[%s1 + $0xb0] sm:$0xf]
  %v99 = vld [vmem:[%s1 + $0xb4] sm:$0xf]
  %v100 = vld [vmem:[%s1 + $0xb8] sm:$0xf]
  %v101 = vld [vmem:[%s1 + $0xbc] sm:$0xf]
  %v102 = vld [vmem:[%s1 + $0xc0] sm:$0xf]
  %v103 = vld [vmem:[%s1 + $0xc4] sm:$0xf]
  %v104 = vld [vmem:[%s1 + $0xc8] sm:$0xf]
  %v105 = vld [vmem:[%s1 + $0xcc] sm:$0xf]
  %v106 = vld [vmem:[%s1 + $0xd0] sm:$0xf]
  %v107 = vld [vmem:[%s1 + $0xd4] sm:$0xf]
  %v108 = vld [vmem:[%s1 + $0xd8] sm:$0xf]
  %v109 = vld [vmem:[%s1 + $0xdc] sm:$0xf]
  %v110 = vld [vmem:[%s1 + $0xe0] sm:$0xf]
  %v111 = vld [vmem:[%s1 + $0xe4] sm:$0xf]
  %v112 = vld [vmem:[%s1 + $0xe8] sm:$0xf]
  %v113 = vld [vmem:[%s1 + $0xec] sm:$0xf]
  %v114 = vld [vmem:[%s1 + $0xf0] sm:$0xf]
  %v115 = vld [vmem:[%s1 + $0xf4] sm:$0xf]
  %v116 = vld [vmem:[%s1 + $0xf8] sm:$0xf]
  %v117 = vld [vmem:[%s1 + $0xfc] sm:$0xf]
  %v118 = vld [vmem:[%s1 + $0x100] sm:$0xf]
  %v119 = vld [vmem:[%s1 + $0x104] sm:$0xf]
  %v120 = vld [vmem:[%s1 + $0x108] sm:$0xf]
  %v121 = vld [vmem:[%s1 + $0x10c] sm:$0xf]
  %v122 = vld [vmem:[%s1 + $0x110] sm:$0xf]
  %v123 = vld [vmem:[%s1 + $0x114] sm:$0xf]
  %v124 = vld [vmem:[%s1 + $0x118] sm:$0xf]
  %v125 = vld [vmem:[%s1 + $0x11c] sm:$0xf]
  %v126 = vld [vmem:[%s2] sm:$0x1]
  %v128 = vperm.slane %v126, 0
  %v169 = vunpack.c.l.b16 %v15
  %v170 = vunpack.c.h.b16 %v15
  %v171 = vunpack.c.l.b16 %v16
  %v172 = vunpack.c.h.b16 %v16
  %v173 = vunpack.c.l.b16 %v17
  %v174 = vunpack.c.l.b16 %v18
  %v175 = vunpack.c.h.b16 %v18
  %v176 = vunpack.c.l.b16 %v19
  %v177 = vunpack.c.h.b16 %v19
  %v178 = vunpack.c.l.b16 %v20
  %v179 = vunpack.c.l.b16 %v21
  %v180 = vunpack.c.h.b16 %v21
  %v181 = vunpack.c.l.b16 %v22
  %v182 = vunpack.c.h.b16 %v22
  %v183 = vunpack.c.l.b16 %v23
  %v184 = vunpack.c.l.b16 %v24
  %v185 = vunpack.c.h.b16 %v24
  %v186 = vunpack.c.l.b16 %v25
  %v187 = vunpack.c.h.b16 %v25
  %v188 = vunpack.c.l.b16 %v26
  %v189 = vunpack.c.l.b16 %v27
  %v190 = vunpack.c.h.b16 %v27
  %v191 = vunpack.c.l.b16 %v28
  %v192 = vunpack.c.h.b16 %v28
  %v193 = vunpack.c.l.b16 %v29
  %v194 = vunpack.c.l.b16 %v30
  %v195 = vunpack.c.h.b16 %v30
  %v196 = vunpack.c.l.b16 %v31
  %v197 = vunpack.c.h.b16 %v31
  %v198 = vunpack.c.l.b16 %v32
  %v199 = vunpack.c.l.b16 %v33
  %v200 = vunpack.c.h.b16 %v33
  %v201 = vunpack.c.l.b16 %v34
  %v202 = vunpack.c.h.b16 %v34
  %v203 = vunpack.c.l.b16 %v35
  %v204 = vunpack.c.l.b16 %v36
  %v205 = vunpack.c.h.b16 %v36
  %v206 = vunpack.c.l.b16 %v37
  %v207 = vunpack.c.h.b16 %v37
  %v208 = vunpack.c.l.b16 %v38
  %v209 = vunpack.c.l.b16 %v39
  %v210 = vunpack.c.h.b16 %v39
  %v211 = vunpack.c.l.b16 %v40
  %v212 = vunpack.c.h.b16 %v40
  %v213 = vunpack.c.l.b16 %v41
  %v214 = vunpack.c.l.b16 %v42
  %v215 = vunpack.c.h.b16 %v42
  %v216 = vunpack.c.l.b16 %v43
  %v217 = vunpack.c.h.b16 %v43
  %v218 = vunpack.c.l.b16 %v44
  %v219 = vunpack.c.l.b16 %v45
  %v220 = vunpack.c.h.b16 %v45
  %v221 = vunpack.c.l.b16 %v46
  %v222 = vunpack.c.h.b16 %v46
  %v223 = vunpack.c.l.b16 %v47
  %v224 = vunpack.c.l.b16 %v48
  %v225 = vunpack.c.h.b16 %v48
  %v226 = vunpack.c.l.b16 %v49
  %v227 = vunpack.c.h.b16 %v49
  %v228 = vunpack.c.l.b16 %v50
  %v229 = vunpack.c.l.b16 %v51
  %v230 = vunpack.c.h.b16 %v51
  %v231 = vunpack.c.l.b16 %v52
  %v232 = vunpack.c.h.b16 %v52
  %v233 = vunpack.c.l.b16 %v53
  %v234 = vpack.c.b16 %v174, %v169
  %v235 = vpack.c.b16 %v175, %v170
  %v236 = vpack.c.b16 %v176, %v171
  %v237 = vpack.c.b16 %v177, %v172
  %v238 = vpack.c.b16 %v178, %v173
  %v239 = vpack.c.b16 %v184, %v179
  %v240 = vpack.c.b16 %v185, %v180
  %v241 = vpack.c.b16 %v186, %v181
  %v242 = vpack.c.b16 %v187, %v182
  %v243 = vpack.c.b16 %v188, %v183
  %v244 = vpack.c.b16 %v194, %v189
  %v245 = vpack.c.b16 %v195, %v190
  %v246 = vpack.c.b16 %v196, %v191
  %v247 = vpack.c.b16 %v197, %v192
  %v248 = vpack.c.b16 %v198, %v193
  %v249 = vpack.c.b16 %v204, %v199
  %v250 = vpack.c.b16 %v205, %v200
  %v251 = vpack.c.b16 %v206, %v201
  %v252 = vpack.c.b16 %v207, %v202
  %v253 = vpack.c.b16 %v208, %v203
  %v254 = vpack.c.b16 %v214, %v209
  %v255 = vpack.c.b16 %v215, %v210
  %v256 = vpack.c.b16 %v216, %v211
  %v257 = vpack.c.b16 %v217, %v212
  %v258 = vpack.c.b16 %v218, %v213
  %v259 = vpack.c.b16 %v224, %v219
  %v260 = vpack.c.b16 %v225, %v220
  %v261 = vpack.c.b16 %v226, %v221
  %v262 = vpack.c.b16 %v227, %v222
  %v263 = vpack.c.b16 %v228, %v223
  %v264 = vpack.c.b16 %v229, %v229
  %v265 = vpack.c.b16 %v230, %v230
  %v266 = vpack.c.b16 %v231, %v231
  %v267 = vpack.c.b16 %v232, %v232
  %v268 = vpack.c.b16 %v233, %v233
  %v369 = vunpack.c.l.b16 %v54
  %v370 = vunpack.c.l.b16 %v55
  %v371 = vunpack.c.l.b16 %v56
  %v372 = vunpack.c.l.b16 %v57
  %v373 = vunpack.c.l.b16 %v58
  %v374 = vunpack.c.l.b16 %v59
  %v375 = vunpack.c.l.b16 %v60
  %v376 = vunpack.c.l.b16 %v61
  %v377 = vunpack.c.l.b16 %v62
  %v378 = vunpack.c.l.b16 %v63
  %v379 = vunpack.c.l.b16 %v64
  %v380 = vunpack.c.l.b16 %v65
  %v381 = vunpack.c.l.b16 %v66
  %v382 = vunpack.c.l.b16 %v67
  %v383 = vunpack.c.l.b16 %v68
  %v384 = vunpack.c.l.b16 %v69
  %v385 = vunpack.c.l.b16 %v70
  %v386 = vunpack.c.l.b16 %v71
  %v387 = vunpack.c.l.b16 %v72
  %v388 = vunpack.c.l.b16 %v73
  %v389 = vunpack.c.l.b16 %v74
  %v390 = vunpack.c.l.b16 %v75
  %v391 = vunpack.c.l.b16 %v76
  %v392 = vunpack.c.l.b16 %v77
  %v393 = vunpack.c.l.b16 %v78
  %v394 = vunpack.c.l.b16 %v79
  %v395 = vunpack.c.l.b16 %v80
  %v396 = vunpack.c.l.b16 %v81
  %v397 = vunpack.c.l.b16 %v82
  %v398 = vunpack.c.l.b16 %v83
  %v399 = vunpack.c.l.b16 %v84
  %v400 = vunpack.c.l.b16 %v85
  %v401 = vunpack.c.l.b16 %v86
  %v402 = vunpack.c.l.b16 %v87
  %v403 = vunpack.c.l.b16 %v88
  %v404 = vunpack.c.l.b16 %v89
  %v405 = vunpack.c.l.b16 %v90
  %v406 = vunpack.c.l.b16 %v91
  %v407 = vunpack.c.l.b16 %v92
  %v408 = vunpack.c.l.b16 %v93
  %v409 = vunpack.c.l.b16 %v94
  %v410 = vunpack.c.l.b16 %v95
  %v411 = vunpack.c.l.b16 %v96
  %v412 = vunpack.c.l.b16 %v97
  %v413 = vunpack.c.l.b16 %v98
  %v414 = vunpack.c.l.b16 %v99
  %v415 = vunpack.c.l.b16 %v100
  %v416 = vunpack.c.l.b16 %v101
  %v417 = vunpack.c.l.b16 %v102
  %v418 = vunpack.c.l.b16 %v103
  %v419 = vunpack.c.l.b16 %v104
  %v420 = vunpack.c.l.b16 %v105
  %v421 = vunpack.c.l.b16 %v106
  %v422 = vunpack.c.l.b16 %v107
  %v423 = vunpack.c.l.b16 %v108
  %v424 = vunpack.c.l.b16 %v109
  %v425 = vunpack.c.l.b16 %v110
  %v426 = vunpack.c.l.b16 %v111
  %v427 = vunpack.c.l.b16 %v112
  %v428 = vunpack.c.l.b16 %v113
  %v429 = vunpack.c.l.b16 %v114
  %v430 = vunpack.c.l.b16 %v115
  %v431 = vunpack.c.l.b16 %v116
  %v432 = vunpack.c.l.b16 %v117
  %v433 = vunpack.c.l.b16 %v118
  %v434 = vunpack.c.l.b16 %v119
  %v435 = vunpack.c.l.b16 %v120
  %v436 = vunpack.c.l.b16 %v121
  %v437 = vunpack.c.l.b16 %v122
  %v438 = vunpack.c.l.b16 %v123
  %v439 = vunpack.c.l.b16 %v124
  %v440 = vunpack.c.l.b16 %v125
  %v441 = vpack.c.b16 %v370, %v369
  %v442 = vpack.c.b16 %v372, %v371
  %v443 = vpack.c.b16 %v374, %v373
  %v444 = vpack.c.b16 %v376, %v375
  %v445 = vpack.c.b16 %v378, %v377
  %v446 = vpack.c.b16 %v380, %v379
  %v447 = vpack.c.b16 %v382, %v381
  %v448 = vpack.c.b16 %v384, %v383
  %v449 = vpack.c.b16 %v386, %v385
  %v450 = vpack.c.b16 %v388, %v387
  %v451 = vpack.c.b16 %v390, %v389
  %v452 = vpack.c.b16 %v392, %v391
  %v453 = vpack.c.b16 %v394, %v393
  %v454 = vpack.c.b16 %v396, %v395
  %v455 = vpack.c.b16 %v398, %v397
  %v456 = vpack.c.b16 %v400, %v399
  %v457 = vpack.c.b16 %v402, %v401
  %v458 = vpack.c.b16 %v404, %v403
  %v459 = vpack.c.b16 %v406, %v405
  %v460 = vpack.c.b16 %v408, %v407
  %v461 = vpack.c.b16 %v410, %v409
  %v462 = vpack.c.b16 %v412, %v411
  %v463 = vpack.c.b16 %v414, %v413
  %v464 = vpack.c.b16 %v416, %v415
  %v465 = vpack.c.b16 %v418, %v417
  %v466 = vpack.c.b16 %v420, %v419
  %v467 = vpack.c.b16 %v422, %v421
  %v468 = vpack.c.b16 %v424, %v423
  %v469 = vpack.c.b16 %v426, %v425
  %v470 = vpack.c.b16 %v428, %v427
  %v471 = vpack.c.b16 %v430, %v429
  %v472 = vpack.c.b16 %v432, %v431
  %v473 = vpack.c.b16 %v434, %v433
  %v474 = vpack.c.b16 %v436, %v435
  %v475 = vpack.c.b16 %v438, %v437
  %v476 = vpack.c.b16 %v440, %v439
  %vm513 = vcmask 523264
  %v515 = vsel %vm513, %v238, 0
  %v518 = vsel %vm513, %v243, 0
  %v521 = vsel %vm513, %v248, 0
  %v524 = vsel %vm513, %v253, 0
  %v527 = vsel %vm513, %v258, 0
  %v530 = vsel %vm513, %v263, 0
  %v533 = vsel %vm513, %v268, 0
  %535 = vmatpush.bf16.msra.mxu0 %v448
  %536 = vmatpush.bf16.msra.mxu0 %v447
  %537 = vmatpush.bf16.msra.mxu0 %v446
  %538 = vmatpush.bf16.msra.mxu0 %v445
  %539 = vmatpush.bf16.msra.mxu0 %v444
  %540 = vmatpush.bf16.msra.mxu0 %v443
  %541 = vmatpush.bf16.msra.mxu0 %v442
  %542 = vmatpush.bf16.msra.mxu0 %v441
  %543 = vmatmul.bf16.gmra.mxu0 %v234
  %v544 = vpop.f32.mrf.mxu0
  %v545 = vadd.f32 %v128, %v544
  %v546 = vpop.f32.mrf.mxu0
  %v547 = vadd.f32 %v128, %v546
  %548 = vmatmul.bf16.gmra.mxu0 %v239
  %v549 = vpop.f32.mrf.mxu0
  %v550 = vadd.f32 %v128, %v549
  %v551 = vpop.f32.mrf.mxu0
  %v552 = vadd.f32 %v128, %v551
  %553 = vmatmul.bf16.gmra.mxu0 %v244
  %v554 = vpop.f32.mrf.mxu0
  %v555 = vadd.f32 %v128, %v554
  %v556 = vpop.f32.mrf.mxu0
  %v557 = vadd.f32 %v128, %v556
  %558 = vmatmul.bf16.gmra.mxu0 %v249
  %v559 = vpop.f32.mrf.mxu0
  %v560 = vadd.f32 %v128, %v559
  %v561 = vpop.f32.mrf.mxu0
  %v562 = vadd.f32 %v128, %v561
  %563 = vmatmul.bf16.gmra.mxu0 %v254
  %v564 = vpop.f32.mrf.mxu0
  %v565 = vadd.f32 %v128, %v564
  %v566 = vpop.f32.mrf.mxu0
  %v567 = vadd.f32 %v128, %v566
  %568 = vmatmul.bf16.gmra.mxu0 %v259
  %v569 = vpop.f32.mrf.mxu0
  %v570 = vadd.f32 %v128, %v569
  %v571 = vpop.f32.mrf.mxu0
  %v572 = vadd.f32 %v128, %v571
  %573 = vmatmul.bf16.gmra.mxu0 %v264
  %v574 = vpop.f32.mrf.mxu0
  %v575 = vadd.f32 %v128, %v574
  %v576 = vpop.f32.mrf.mxu0
  %577 = vdwg.mxu0
  %578 = vmatpush.bf16.msra.mxu0 %v456
  %579 = vmatpush.bf16.msra.mxu0 %v455
  %580 = vmatpush.bf16.msra.mxu0 %v454
  %581 = vmatpush.bf16.msra.mxu0 %v453
  %582 = vmatpush.bf16.msra.mxu0 %v452
  %583 = vmatpush.bf16.msra.mxu0 %v451
  %584 = vmatpush.bf16.msra.mxu0 %v450
  %585 = vmatpush.bf16.msra.mxu0 %v449
  %586 = vmatmul.bf16.gmra.mxu0 %v235
  %v587 = vpop.f32.mrf.mxu0
  %v588 = vadd.f32 %v545, %v587
  %v589 = vpop.f32.mrf.mxu0
  %v590 = vadd.f32 %v547, %v589
  %591 = vmatmul.bf16.gmra.mxu0 %v240
  %v592 = vpop.f32.mrf.mxu0
  %v593 = vadd.f32 %v550, %v592
  %v594 = vpop.f32.mrf.mxu0
  %v595 = vadd.f32 %v552, %v594
  %596 = vmatmul.bf16.gmra.mxu0 %v245
  %v597 = vpop.f32.mrf.mxu0
  %v598 = vadd.f32 %v555, %v597
  %v599 = vpop.f32.mrf.mxu0
  %v600 = vadd.f32 %v557, %v599
  %601 = vmatmul.bf16.gmra.mxu0 %v250
  %v602 = vpop.f32.mrf.mxu0
  %v603 = vadd.f32 %v560, %v602
  %v604 = vpop.f32.mrf.mxu0
  %v605 = vadd.f32 %v562, %v604
  %606 = vmatmul.bf16.gmra.mxu0 %v255
  %v607 = vpop.f32.mrf.mxu0
  %v608 = vadd.f32 %v565, %v607
  %v609 = vpop.f32.mrf.mxu0
  %v610 = vadd.f32 %v567, %v609
  %611 = vmatmul.bf16.gmra.mxu0 %v260
  %v612 = vpop.f32.mrf.mxu0
  %v613 = vadd.f32 %v570, %v612
  %v614 = vpop.f32.mrf.mxu0
  %v615 = vadd.f32 %v572, %v614
  %616 = vmatmul.bf16.gmra.mxu0 %v265
  %v617 = vpop.f32.mrf.mxu0
  %v618 = vadd.f32 %v575, %v617
  %v619 = vpop.f32.mrf.mxu0
  %620 = vdwg.mxu0
  %621 = vmatpush.bf16.msra.mxu0 %v464
  %622 = vmatpush.bf16.msra.mxu0 %v463
  %623 = vmatpush.bf16.msra.mxu0 %v462
  %624 = vmatpush.bf16.msra.mxu0 %v461
  %625 = vmatpush.bf16.msra.mxu0 %v460
  %626 = vmatpush.bf16.msra.mxu0 %v459
  %627 = vmatpush.bf16.msra.mxu0 %v458
  %628 = vmatpush.bf16.msra.mxu0 %v457
  %629 = vmatmul.bf16.gmra.mxu0 %v236
  %v630 = vpop.f32.mrf.mxu0
  %v631 = vadd.f32 %v588, %v630
  %v632 = vpop.f32.mrf.mxu0
  %v633 = vadd.f32 %v590, %v632
  %634 = vmatmul.bf16.gmra.mxu0 %v241
  %v635 = vpop.f32.mrf.mxu0
  %v636 = vadd.f32 %v593, %v635
  %v637 = vpop.f32.mrf.mxu0
  %v638 = vadd.f32 %v595, %v637
  %639 = vmatmul.bf16.gmra.mxu0 %v246
  %v640 = vpop.f32.mrf.mxu0
  %v641 = vadd.f32 %v598, %v640
  %v642 = vpop.f32.mrf.mxu0
  %v643 = vadd.f32 %v600, %v642
  %644 = vmatmul.bf16.gmra.mxu0 %v251
  %v645 = vpop.f32.mrf.mxu0
  %v646 = vadd.f32 %v603, %v645
  %v647 = vpop.f32.mrf.mxu0
  %v648 = vadd.f32 %v605, %v647
  %649 = vmatmul.bf16.gmra.mxu0 %v256
  %v650 = vpop.f32.mrf.mxu0
  %v651 = vadd.f32 %v608, %v650
  %v652 = vpop.f32.mrf.mxu0
  %v653 = vadd.f32 %v610, %v652
  %654 = vmatmul.bf16.gmra.mxu0 %v261
  %v655 = vpop.f32.mrf.mxu0
  %v656 = vadd.f32 %v613, %v655
  %v657 = vpop.f32.mrf.mxu0
  %v658 = vadd.f32 %v615, %v657
  %659 = vmatmul.bf16.gmra.mxu0 %v266
  %v660 = vpop.f32.mrf.mxu0
  %v661 = vadd.f32 %v618, %v660
  %v662 = vpop.f32.mrf.mxu0
  %663 = vdwg.mxu0
  %664 = vmatpush.bf16.msra.mxu0 %v472
  %665 = vmatpush.bf16.msra.mxu0 %v471
  %666 = vmatpush.bf16.msra.mxu0 %v470
  %667 = vmatpush.bf16.msra.mxu0 %v469
  %668 = vmatpush.bf16.msra.mxu0 %v468
  %669 = vmatpush.bf16.msra.mxu0 %v467
  %670 = vmatpush.bf16.msra.mxu0 %v466
  %671 = vmatpush.bf16.msra.mxu0 %v465
  %672 = vmatmul.bf16.gmra.mxu0 %v237
  %v673 = vpop.f32.mrf.mxu0
  %v674 = vadd.f32 %v631, %v673
  %v675 = vpop.f32.mrf.mxu0
  %v676 = vadd.f32 %v633, %v675
  %677 = vmatmul.bf16.gmra.mxu0 %v242
  %v678 = vpop.f32.mrf.mxu0
  %v679 = vadd.f32 %v636, %v678
  %v680 = vpop.f32.mrf.mxu0
  %v681 = vadd.f32 %v638, %v680
  %682 = vmatmul.bf16.gmra.mxu0 %v247
  %v683 = vpop.f32.mrf.mxu0
  %v684 = vadd.f32 %v641, %v683
  %v685 = vpop.f32.mrf.mxu0
  %v686 = vadd.f32 %v643, %v685
  %687 = vmatmul.bf16.gmra.mxu0 %v252
  %v688 = vpop.f32.mrf.mxu0
  %v689 = vadd.f32 %v646, %v688
  %v690 = vpop.f32.mrf.mxu0
  %v691 = vadd.f32 %v648, %v690
  %692 = vmatmul.bf16.gmra.mxu0 %v257
  %v693 = vpop.f32.mrf.mxu0
  %v694 = vadd.f32 %v651, %v693
  %v695 = vpop.f32.mrf.mxu0
  %v696 = vadd.f32 %v653, %v695
  %697 = vmatmul.bf16.gmra.mxu0 %v262
  %v698 = vpop.f32.mrf.mxu0
  %v699 = vadd.f32 %v656, %v698
  %v700 = vpop.f32.mrf.mxu0
  %v701 = vadd.f32 %v658, %v700
  %702 = vmatmul.bf16.gmra.mxu0 %v267
  %v703 = vpop.f32.mrf.mxu0
  %v704 = vadd.f32 %v661, %v703
  %v705 = vpop.f32.mrf.mxu0
  %706 = vdwg.mxu0
  %707 = vmatpush.bf16.msra.mxu0 0
  %708 = vmatpush.bf16.msra.mxu0 0
  %709 = vmatpush.bf16.msra.mxu0 0
  %710 = vmatpush.bf16.msra.mxu0 0
  %711 = vmatpush.bf16.msra.mxu0 %v476
  %712 = vmatpush.bf16.msra.mxu0 %v475
  %713 = vmatpush.bf16.msra.mxu0 %v474
  %714 = vmatpush.bf16.msra.mxu0 %v473
  %715 = vmatmul.bf16.gmra.mxu0 %v515
  %v716 = vpop.f32.mrf.mxu0
  %v717 = vadd.f32 %v674, %v716
  %v718 = vpop.f32.mrf.mxu0
  %v719 = vadd.f32 %v676, %v718
  %720 = vmatmul.bf16.gmra.mxu0 %v518
  %v721 = vpop.f32.mrf.mxu0
  %v722 = vadd.f32 %v679, %v721
  %v723 = vpop.f32.mrf.mxu0
  %v724 = vadd.f32 %v681, %v723
  %725 = vmatmul.bf16.gmra.mxu0 %v521
  %v726 = vpop.f32.mrf.mxu0
  %v727 = vadd.f32 %v684, %v726
  %v728 = vpop.f32.mrf.mxu0
  %v729 = vadd.f32 %v686, %v728
  %730 = vmatmul.bf16.gmra.mxu0 %v524
  %v731 = vpop.f32.mrf.mxu0
  %v732 = vadd.f32 %v689, %v731
  %v733 = vpop.f32.mrf.mxu0
  %v734 = vadd.f32 %v691, %v733
  %735 = vmatmul.bf16.gmra.mxu0 %v527
  %v736 = vpop.f32.mrf.mxu0
  %v737 = vadd.f32 %v694, %v736
  %v738 = vpop.f32.mrf.mxu0
  %v739 = vadd.f32 %v696, %v738
  %740 = vmatmul.bf16.gmra.mxu0 %v530
  %v741 = vpop.f32.mrf.mxu0
  %v742 = vadd.f32 %v699, %v741
  %v743 = vpop.f32.mrf.mxu0
  %v744 = vadd.f32 %v701, %v743
  %745 = vmatmul.bf16.gmra.mxu0 %v533
  %v746 = vpop.f32.mrf.mxu0
  %v747 = vadd.f32 %v704, %v746
  %v748 = vpop.f32.mrf.mxu0
  %749 = vdwg.mxu0
  %v750 = vmax.f32 %v717, 0.0
  %v751 = vmax.f32 %v719, 0.0
  %v752 = vmax.f32 %v722, 0.0
  %v753 = vmax.f32 %v724, 0.0
  %v754 = vmax.f32 %v727, 0.0
  %v755 = vmax.f32 %v729, 0.0
  %v756 = vmax.f32 %v732, 0.0
  %v757 = vmax.f32 %v734, 0.0
  %v758 = vmax.f32 %v737, 0.0
  %v759 = vmax.f32 %v739, 0.0
  %v760 = vmax.f32 %v742, 0.0
  %v761 = vmax.f32 %v744, 0.0
  %v762 = vmax.f32 %v747, 0.0
  %v763 = vpack.c.bf16 %v750, %v750
  %v764 = vpack.c.bf16 %v751, %v751
  %v765 = vpack.c.bf16 %v752, %v752
  %v766 = vpack.c.bf16 %v753, %v753
  %v767 = vpack.c.bf16 %v754, %v754
  %v768 = vpack.c.bf16 %v755, %v755
  %v769 = vpack.c.bf16 %v756, %v756
  %v770 = vpack.c.bf16 %v757, %v757
  %v771 = vpack.c.bf16 %v758, %v758
  %v772 = vpack.c.bf16 %v759, %v759
  %v773 = vpack.c.bf16 %v760, %v760
  %v774 = vpack.c.bf16 %v761, %v761
  %v775 = vpack.c.bf16 %v762, %v762
  %vm776 = vcmask 257024
  %777 = vst.msk [vmem:[%s3] sm:$0xf] %vm776, %v763
  %778 = vst.msk [vmem:[%s3 + $0x4] sm:$0xf] %vm776, %v764
  %779 = vst.msk [vmem:[%s3 + $0x8] sm:$0xf] %vm776, %v765
  %780 = vst.msk [vmem:[%s3 + $0xc] sm:$0xf] %vm776, %v766
  %781 = vst.msk [vmem:[%s3 + $0x10] sm:$0xf] %vm776, %v767
  %782 = vst.msk [vmem:[%s3 + $0x14] sm:$0xf] %vm776, %v768
  %783 = vst.msk [vmem:[%s3 + $0x18] sm:$0xf] %vm776, %v769
  %784 = vst.msk [vmem:[%s3 + $0x1c] sm:$0xf] %vm776, %v770
  %785 = vst.msk [vmem:[%s3 + $0x20] sm:$0xf] %vm776, %v771
  %786 = vst.msk [vmem:[%s3 + $0x24] sm:$0xf] %vm776, %v772
  %787 = vst.msk [vmem:[%s3 + $0x28] sm:$0xf] %vm776, %v773
  %788 = vst.msk [vmem:[%s3 + $0x2c] sm:$0xf] %vm776, %v774
  %789 = vst.msk [vmem:[%s3 + $0x30] sm:$0xf] %vm776, %v775
  // Predicated region
  $region14: #{cnn_base_forward.6} parent=0 // pred_check
    _
  $region15: #{cnn_base_forward.6} parent=0 // pred_check_branch
    %791 = sbr.rel (0) target = $region17
  $region16: #{cnn_base_forward.6} parent=0 // pred_region
    _
  $region17: #{cnn_base_forward.6} parent=0 // pred_fallthru
    _
  // Predicated region
  $region18: #{cnn_base_forward.6} parent=0 // pred_check
    _
  $region19: #{cnn_base_forward.6} parent=0 // pred_check_branch
    %793 = sbr.rel (0) target = $region21
  $region20: #{cnn_base_forward.6} parent=0 // pred_region
    _
  $region21: #{cnn_base_forward.6} parent=0 // pred_fallthru
    _

// kernel: cnn_base_forward.7
$region0: #{cnn_base_forward.7}
  #allocation0 [shape = 'u32[]', space=smem, size = 0x4, offset = 0x4, fixed_abs, tag = 'smem constant byte address 0x4 - core index']
  #allocation1 [shape = 'u32[72,128]{1,0:T(1,128)}', space=vmem, size = 0x9000, scoped, tag = 'internal scratch']
  #allocation2 [shape = 'f32[1,1]{1,0:T(1,128)S(1)}', space=vmem, size = 0x200, scoped, tag = 'scoped memory for cnn_base_forward.7']
  %s0 = inlined_call_operand.vmem [shape: bf16[8,1568], index: 0, kind: input, shape index: {}]
  %s1 = inlined_call_operand.vmem [shape: bf16[1568,512], index: 1, kind: input, shape index: {}]
  %s2 = inlined_call_operand.vmem [shape: f32[1,512], index: 2, kind: input, shape index: {}]
  %s3 = inlined_call_operand.vmem [shape: f32[512,1], index: 3, kind: input, shape index: {}]
  %s4 = inlined_call_operand.<no memory space> [shape: f32[1,1], index: 4, kind: input, shape index: {}]
  %s5 = inlined_call_operand.vmem [shape: f32[8,512], index: 5, kind: output, shape index: {0}]
  %s6 = inlined_call_operand.vmem [shape: f32[8,1], index: 6, kind: output, shape index: {1}]
  %7 = xla_tuple %s5, %s6
  %s8 = sld [smem:[#allocation0]]
  $region38: #{cnn_base_forward.7} parent=0
    _
  %s10 = ssub.s32 1, %s8
  %s11 = scalar_select 0, %s10, %s8
  %v12 = vstv %s4
  %13 = vst [vmem:[#allocation2] sm:$0x1] %v12
  // Predicated region
  $region2: #{cnn_base_forward.7} parent=0 // pred_check
    _
  $region3: #{cnn_base_forward.7} parent=0 // pred_check_branch
    %15 = sbr.rel (0) target = $region5
  $region4: #{cnn_base_forward.7} parent=0 // pred_region
    _
  $region5: #{cnn_base_forward.7} parent=0 // pred_fallthru
    _
  // Predicated region
  $region6: #{cnn_base_forward.7} parent=0 // pred_check
    _
  $region7: #{cnn_base_forward.7} parent=0 // pred_check_branch
    %17 = sbr.rel (0) target = $region9
  $region8: #{cnn_base_forward.7} parent=0 // pred_region
    _
  $region9: #{cnn_base_forward.7} parent=0 // pred_fallthru
    _
  // Predicated region
  $region10: #{cnn_base_forward.7} parent=0 // pred_check
    _
  $region11: #{cnn_base_forward.7} parent=0 // pred_check_branch
    %19 = sbr.rel (0) target = $region13
  $region12: #{cnn_base_forward.7} parent=0 // pred_region
    _
  $region13: #{cnn_base_forward.7} parent=0 // pred_fallthru
    _
  // Predicated region
  $region14: #{cnn_base_forward.7} parent=0 // pred_check
    _
  $region15: #{cnn_base_forward.7} parent=0 // pred_check_branch
    %21 = sbr.rel (0) target = $region17
  $region16: #{cnn_base_forward.7} parent=0 // pred_region
    _
  $region17: #{cnn_base_forward.7} parent=0 // pred_fallthru
    _
  // Predicated region
  $region18: #{cnn_base_forward.7} parent=0 // pred_check
    _
  $region19: #{cnn_base_forward.7} parent=0 // pred_check_branch
    %23 = sbr.rel (0) target = $region21
  $region20: #{cnn_base_forward.7} parent=0 // pred_region
    _
  $region21: #{cnn_base_forward.7} parent=0 // pred_fallthru
    _
  %v25 = vld [vmem:[%s0] sm:$0xff]
  %v26 = vld [vmem:[%s0 + $0x8] sm:$0xff]
  %v27 = vld [vmem:[%s0 + $0x10] sm:$0xff]
  %v28 = vld [vmem:[%s0 + $0x18] sm:$0xff]
  %v29 = vld [vmem:[%s0 + $0x20] sm:$0xff]
  %v30 = vld [vmem:[%s0 + $0x28] sm:$0xff]
  %v31 = vld [vmem:[%s0 + $0x30] sm:$0xf]
  %v32 = vld [vmem:[%s1] sm:$0xff]
  %v33 = vld [vmem:[%s1 + $0x8] sm:$0xff]
  %v34 = vld [vmem:[%s1 + $0x10] sm:$0xff]
  %v35 = vld [vmem:[%s1 + $0x18] sm:$0xff]
  %v36 = vld [vmem:[%s1 + $0x20] sm:$0xff]
  %v37 = vld [vmem:[%s1 + $0x28] sm:$0xff]
  %v38 = vld [vmem:[%s1 + $0x30] sm:$0xff]
  %v39 = vld [vmem:[%s1 + $0x38] sm:$0xff]
  %v40 = vld [vmem:[%s1 + $0x40] sm:$0xff]
  %v41 = vld [vmem:[%s1 + $0x48] sm:$0xff]
  %v42 = vld [vmem:[%s1 + $0x50] sm:$0xff]
  %v43 = vld [vmem:[%s1 + $0x58] sm:$0xff]
  %v44 = vld [vmem:[%s1 + $0x60] sm:$0xff]
  %v45 = vld [vmem:[%s1 + $0x68] sm:$0xff]
  %v46 = vld [vmem:[%s1 + $0x70] sm:$0xff]
  %v47 = vld [vmem:[%s1 + $0x78] sm:$0xff]
  %v48 = vld [vmem:[%s1 + $0x80] sm:$0xff]
  %v49 = vld [vmem:[%s1 + $0x88] sm:$0xff]
  %v50 = vld [vmem:[%s1 + $0x90] sm:$0xff]
  %v51 = vld [vmem:[%s1 + $0x98] sm:$0xff]
  %v52 = vld [vmem:[%s1 + $0xa0] sm:$0xff]
  %v53 = vld [vmem:[%s1 + $0xa8] sm:$0xff]
  %v54 = vld [vmem:[%s1 + $0xb0] sm:$0xff]
  %v55 = vld [vmem:[%s1 + $0xb8] sm:$0xff]
  %v56 = vld [vmem:[%s1 + $0xc0] sm:$0xff]
  %v57 = vld [vmem:[%s1 + $0xc8] sm:$0xff]
  %v58 = vld [vmem:[%s1 + $0xd0] sm:$0xff]
  %v59 = vld [vmem:[%s1 + $0xd8] sm:$0xff]
  %v60 = vld [vmem:[%s1 + $0xe0] sm:$0xff]
  %v61 = vld [vmem:[%s1 + $0xe8] sm:$0xff]
  %v62 = vld [vmem:[%s1 + $0xf0] sm:$0xff]
  %v63 = vld [vmem:[%s1 + $0xf8] sm:$0xff]
  %v64 = vld [vmem:[%s1 + $0x100] sm:$0xff]
  %v65 = vld [vmem:[%s1 + $0x108] sm:$0xff]
  %v66 = vld [vmem:[%s1 + $0x110] sm:$0xff]
  %v67 = vld [vmem:[%s1 + $0x118] sm:$0xff]
  %v68 = vld [vmem:[%s1 + $0x120] sm:$0xff]
  %v69 = vld [vmem:[%s1 + $0x128] sm:$0xff]
  %v70 = vld [vmem:[%s1 + $0x130] sm:$0xff]
  %v71 = vld [vmem:[%s1 + $0x138] sm:$0xff]
  %v72 = vld [vmem:[%s1 + $0x140] sm:$0xff]
  %v73 = vld [vmem:[%s1 + $0x148] sm:$0xff]
  %v74 = vld [vmem:[%s1 + $0x150] sm:$0xff]
  %v75 = vld [vmem:[%s1 + $0x158] sm:$0xff]
  %v76 = vld [vmem:[%s1 + $0x160] sm:$0xff]
  %v77 = vld [vmem:[%s1 + $0x168] sm:$0xff]
  %v78 = vld [vmem:[%s1 + $0x170] sm:$0xff]
  %v79 = vld [vmem:[%s1 + $0x178] sm:$0xff]
  %v80 = vld [vmem:[%s1 + $0x180] sm:$0xff]
  %v81 = vld [vmem:[%s1 + $0x188] sm:$0xff]
  %v82 = vld [vmem:[%s1 + $0x190] sm:$0xff]
  %v83 = vld [vmem:[%s1 + $0x198] sm:$0xff]
  %v84 = vld [vmem:[%s1 + $0x1a0] sm:$0xff]
  %v85 = vld [vmem:[%s1 + $0x1a8] sm:$0xff]
  %v86 = vld [vmem:[%s1 + $0x1b0] sm:$0xff]
  %v87 = vld [vmem:[%s1 + $0x1b8] sm:$0xff]
  %v88 = vld [vmem:[%s1 + $0x1c0] sm:$0xff]
  %v89 = vld [vmem:[%s1 + $0x1c8] sm:$0xff]
  %v90 = vld [vmem:[%s1 + $0x1d0] sm:$0xff]
  %v91 = vld [vmem:[%s1 + $0x1d8] sm:$0xff]
  %v92 = vld [vmem:[%s1 + $0x1e0] sm:$0xff]
  %v93 = vld [vmem:[%s1 + $0x1e8] sm:$0xff]
  %v94 = vld [vmem:[%s1 + $0x1f0] sm:$0xff]
  %v95 = vld [vmem:[%s1 + $0x1f8] sm:$0xff]
  %v96 = vld [vmem:[%s1 + $0x200] sm:$0xff]
  %v97 = vld [vmem:[%s1 + $0x208] sm:$0xff]
  %v98 = vld [vmem:[%s1 + $0x210] sm:$0xff]
  %v99 = vld [vmem:[%s1 + $0x218] sm:$0xff]
  %v100 = vld [vmem:[%s1 + $0x220] sm:$0xff]
  %v101 = vld [vmem:[%s1 + $0x228] sm:$0xff]
  %v102 = vld [vmem:[%s1 + $0x230] sm:$0xff]
  %v103 = vld [vmem:[%s1 + $0x238] sm:$0xff]
  %v104 = vld [vmem:[%s1 + $0x240] sm:$0xff]
  %v105 = vld [vmem:[%s1 + $0x248] sm:$0xff]
  %v106 = vld [vmem:[%s1 + $0x250] sm:$0xff]
  %v107 = vld [vmem:[%s1 + $0x258] sm:$0xff]
  %v108 = vld [vmem:[%s1 + $0x260] sm:$0xff]
  %v109 = vld [vmem:[%s1 + $0x268] sm:$0xff]
  %v110 = vld [vmem:[%s1 + $0x270] sm:$0xff]
  %v111 = vld [vmem:[%s1 + $0x278] sm:$0xff]
  %v112 = vld [vmem:[%s1 + $0x280] sm:$0xff]
  %v113 = vld [vmem:[%s1 + $0x288] sm:$0xff]
  %v114 = vld [vmem:[%s1 + $0x290] sm:$0xff]
  %v115 = vld [vmem:[%s1 + $0x298] sm:$0xff]
  %v116 = vld [vmem:[%s1 + $0x2a0] sm:$0xff]
  %v117 = vld [vmem:[%s1 + $0x2a8] sm:$0xff]
  %v118 = vld [vmem:[%s1 + $0x2b0] sm:$0xff]
  %v119 = vld [vmem:[%s1 + $0x2b8] sm:$0xff]
  %v120 = vld [vmem:[%s1 + $0x2c0] sm:$0xff]
  %v121 = vld [vmem:[%s1 + $0x2c8] sm:$0xff]
  %v122 = vld [vmem:[%s1 + $0x2d0] sm:$0xff]
  %v123 = vld [vmem:[%s1 + $0x2d8] sm:$0xff]
  %v124 = vld [vmem:[%s1 + $0x2e0] sm:$0xff]
  %v125 = vld [vmem:[%s1 + $0x2e8] sm:$0xff]
  %v126 = vld [vmem:[%s1 + $0x2f0] sm:$0xff]
  %v127 = vld [vmem:[%s1 + $0x2f8] sm:$0xff]
  %v128 = vld [vmem:[%s1 + $0x300] sm:$0xff]
  %v129 = vld [vmem:[%s1 + $0x308] sm:$0xff]
  %v130 = vld [vmem:[%s1 + $0x310] sm:$0xff]
  %v131 = vld [vmem:[%s1 + $0x318] sm:$0xff]
  %v132 = vld [vmem:[%s1 + $0x320] sm:$0xff]
  %v133 = vld [vmem:[%s1 + $0x328] sm:$0xff]
  %v134 = vld [vmem:[%s1 + $0x330] sm:$0xff]
  %v135 = vld [vmem:[%s1 + $0x338] sm:$0xff]
  %v136 = vld [vmem:[%s1 + $0x340] sm:$0xff]
  %v137 = vld [vmem:[%s1 + $0x348] sm:$0xff]
  %v138 = vld [vmem:[%s1 + $0x350] sm:$0xff]
  %v139 = vld [vmem:[%s1 + $0x358] sm:$0xff]
  %v140 = vld [vmem:[%s1 + $0x360] sm:$0xff]
  %v141 = vld [vmem:[%s1 + $0x368] sm:$0xff]
  %v142 = vld [vmem:[%s1 + $0x370] sm:$0xff]
  %v143 = vld [vmem:[%s1 + $0x378] sm:$0xff]
  %v144 = vld [vmem:[%s1 + $0x380] sm:$0xff]
  %v145 = vld [vmem:[%s1 + $0x388] sm:$0xff]
  %v146 = vld [vmem:[%s1 + $0x390] sm:$0xff]
  %v147 = vld [vmem:[%s1 + $0x398] sm:$0xff]
  %v148 = vld [vmem:[%s1 + $0x3a0] sm:$0xff]
  %v149 = vld [vmem:[%s1 + $0x3a8] sm:$0xff]
  %v150 = vld [vmem:[%s1 + $0x3b0] sm:$0xff]
  %v151 = vld [vmem:[%s1 + $0x3b8] sm:$0xff]
  %v152 = vld [vmem:[%s1 + $0x3c0] sm:$0xff]
  %v153 = vld [vmem:[%s1 + $0x3c8] sm:$0xff]
  %v154 = vld [vmem:[%s1 + $0x3d0] sm:$0xff]
  %v155 = vld [vmem:[%s1 + $0x3d8] sm:$0xff]
  %v156 = vld [vmem:[%s1 + $0x3e0] sm:$0xff]
  %v157 = vld [vmem:[%s1 + $0x3e8] sm:$0xff]
  %v158 = vld [vmem:[%s1 + $0x3f0] sm:$0xff]
  %v159 = vld [vmem:[%s1 + $0x3f8] sm:$0xff]
  %v160 = vld [vmem:[%s1 + $0x400] sm:$0xff]
  %v161 = vld [vmem:[%s1 + $0x408] sm:$0xff]
  %v162 = vld [vmem:[%s1 + $0x410] sm:$0xff]
  %v163 = vld [vmem:[%s1 + $0x418] sm:$0xff]
  %v164 = vld [vmem:[%s1 + $0x420] sm:$0xff]
  %v165 = vld [vmem:[%s1 + $0x428] sm:$0xff]
  %v166 = vld [vmem:[%s1 + $0x430] sm:$0xff]
  %v167 = vld [vmem:[%s1 + $0x438] sm:$0xff]
  %v168 = vld [vmem:[%s1 + $0x440] sm:$0xff]
  %v169 = vld [vmem:[%s1 + $0x448] sm:$0xff]
  %v170 = vld [vmem:[%s1 + $0x450] sm:$0xff]
  %v171 = vld [vmem:[%s1 + $0x458] sm:$0xff]
  %v172 = vld [vmem:[%s1 + $0x460] sm:$0xff]
  %v173 = vld [vmem:[%s1 + $0x468] sm:$0xff]
  %v174 = vld [vmem:[%s1 + $0x470] sm:$0xff]
  %v175 = vld [vmem:[%s1 + $0x478] sm:$0xff]
  %v176 = vld [vmem:[%s1 + $0x480] sm:$0xff]
  %v177 = vld [vmem:[%s1 + $0x488] sm:$0xff]
  %v178 = vld [vmem:[%s1 + $0x490] sm:$0xff]
  %v179 = vld [vmem:[%s1 + $0x498] sm:$0xff]
  %v180 = vld [vmem:[%s1 + $0x4a0] sm:$0xff]
  %v181 = vld [vmem:[%s1 + $0x4a8] sm:$0xff]
  %v182 = vld [vmem:[%s1 + $0x4b0] sm:$0xff]
  %v183 = vld [vmem:[%s1 + $0x4b8] sm:$0xff]
  %v184 = vld [vmem:[%s1 + $0x4c0] sm:$0xff]
  %v185 = vld [vmem:[%s1 + $0x4c8] sm:$0xff]
  %v186 = vld [vmem:[%s1 + $0x4d0] sm:$0xff]
  %v187 = vld [vmem:[%s1 + $0x4d8] sm:$0xff]
  %v188 = vld [vmem:[%s1 + $0x4e0] sm:$0xff]
  %v189 = vld [vmem:[%s1 + $0x4e8] sm:$0xff]
  %v190 = vld [vmem:[%s1 + $0x4f0] sm:$0xff]
  %v191 = vld [vmem:[%s1 + $0x4f8] sm:$0xff]
  %v192 = vld [vmem:[%s1 + $0x500] sm:$0xff]
  %v193 = vld [vmem:[%s1 + $0x508] sm:$0xff]
  %v194 = vld [vmem:[%s1 + $0x510] sm:$0xff]
  %v195 = vld [vmem:[%s1 + $0x518] sm:$0xff]
  %v196 = vld [vmem:[%s1 + $0x520] sm:$0xff]
  %v197 = vld [vmem:[%s1 + $0x528] sm:$0xff]
  %v198 = vld [vmem:[%s1 + $0x530] sm:$0xff]
  %v199 = vld [vmem:[%s1 + $0x538] sm:$0xff]
  %v200 = vld [vmem:[%s1 + $0x540] sm:$0xff]
  %v201 = vld [vmem:[%s1 + $0x548] sm:$0xff]
  %v202 = vld [vmem:[%s1 + $0x550] sm:$0xff]
  %v203 = vld [vmem:[%s1 + $0x558] sm:$0xff]
  %v204 = vld [vmem:[%s1 + $0x560] sm:$0xff]
  %v205 = vld [vmem:[%s1 + $0x568] sm:$0xff]
  %v206 = vld [vmem:[%s1 + $0x570] sm:$0xff]
  %v207 = vld [vmem:[%s1 + $0x578] sm:$0xff]
  %v208 = vld [vmem:[%s1 + $0x580] sm:$0xff]
  %v209 = vld [vmem:[%s1 + $0x588] sm:$0xff]
  %v210 = vld [vmem:[%s1 + $0x590] sm:$0xff]
  %v211 = vld [vmem:[%s1 + $0x598] sm:$0xff]
  %v212 = vld [vmem:[%s1 + $0x5a0] sm:$0xff]
  %v213 = vld [vmem:[%s1 + $0x5a8] sm:$0xff]
  %v214 = vld [vmem:[%s1 + $0x5b0] sm:$0xff]
  %v215 = vld [vmem:[%s1 + $0x5b8] sm:$0xff]
  %v216 = vld [vmem:[%s1 + $0x5c0] sm:$0xff]
  %v217 = vld [vmem:[%s1 + $0x5c8] sm:$0xff]
  %v218 = vld [vmem:[%s1 + $0x5d0] sm:$0xff]
  %v219 = vld [vmem:[%s1 + $0x5d8] sm:$0xff]
  %v220 = vld [vmem:[%s1 + $0x5e0] sm:$0xff]
  %v221 = vld [vmem:[%s1 + $0x5e8] sm:$0xff]
  %v222 = vld [vmem:[%s1 + $0x5f0] sm:$0xff]
  %v223 = vld [vmem:[%s1 + $0x5f8] sm:$0xff]
  %v224 = vld [vmem:[%s1 + $0x600] sm:$0xff]
  %v225 = vld [vmem:[%s1 + $0x608] sm:$0xff]
  %v226 = vld [vmem:[%s1 + $0x610] sm:$0xff]
  %v227 = vld [vmem:[%s1 + $0x618] sm:$0xff]
  %v228 = vld [vmem:[%s1 + $0x620] sm:$0xff]
  %v229 = vld [vmem:[%s1 + $0x628] sm:$0xff]
  %v230 = vld [vmem:[%s1 + $0x630] sm:$0xff]
  %v231 = vld [vmem:[%s1 + $0x638] sm:$0xff]
  %v232 = vld [vmem:[%s1 + $0x640] sm:$0xff]
  %v233 = vld [vmem:[%s1 + $0x648] sm:$0xff]
  %v234 = vld [vmem:[%s1 + $0x650] sm:$0xff]
  %v235 = vld [vmem:[%s1 + $0x658] sm:$0xff]
  %v236 = vld [vmem:[%s1 + $0x660] sm:$0xff]
  %v237 = vld [vmem:[%s1 + $0x668] sm:$0xff]
  %v238 = vld [vmem:[%s1 + $0x670] sm:$0xff]
  %v239 = vld [vmem:[%s1 + $0x678] sm:$0xff]
  %v240 = vld [vmem:[%s1 + $0x680] sm:$0xff]
  %v241 = vld [vmem:[%s1 + $0x688] sm:$0xff]
  %v242 = vld [vmem:[%s1 + $0x690] sm:$0xff]
  %v243 = vld [vmem:[%s1 + $0x698] sm:$0xff]
  %v244 = vld [vmem:[%s1 + $0x6a0] sm:$0xff]
  %v245 = vld [vmem:[%s1 + $0x6a8] sm:$0xff]
  %v246 = vld [vmem:[%s1 + $0x6b0] sm:$0xff]
  %v247 = vld [vmem:[%s1 + $0x6b8] sm:$0xff]
  %v248 = vld [vmem:[%s1 + $0x6c0] sm:$0xff]
  %v249 = vld [vmem:[%s1 + $0x6c8] sm:$0xff]
  %v250 = vld [vmem:[%s1 + $0x6d0] sm:$0xff]
  %v251 = vld [vmem:[%s1 + $0x6d8] sm:$0xff]
  %v252 = vld [vmem:[%s1 + $0x6e0] sm:$0xff]
  %v253 = vld [vmem:[%s1 + $0x6e8] sm:$0xff]
  %v254 = vld [vmem:[%s1 + $0x6f0] sm:$0xff]
  %v255 = vld [vmem:[%s1 + $0x6f8] sm:$0xff]
  %v256 = vld [vmem:[%s1 + $0x700] sm:$0xff]
  %v257 = vld [vmem:[%s1 + $0x708] sm:$0xff]
  %v258 = vld [vmem:[%s1 + $0x710] sm:$0xff]
  %v259 = vld [vmem:[%s1 + $0x718] sm:$0xff]
  %v260 = vld [vmem:[%s1 + $0x720] sm:$0xff]
  %v261 = vld [vmem:[%s1 + $0x728] sm:$0xff]
  %v262 = vld [vmem:[%s1 + $0x730] sm:$0xff]
  %v263 = vld [vmem:[%s1 + $0x738] sm:$0xff]
  %v264 = vld [vmem:[%s1 + $0x740] sm:$0xff]
  %v265 = vld [vmem:[%s1 + $0x748] sm:$0xff]
  %v266 = vld [vmem:[%s1 + $0x750] sm:$0xff]
  %v267 = vld [vmem:[%s1 + $0x758] sm:$0xff]
  %v268 = vld [vmem:[%s1 + $0x760] sm:$0xff]
  %v269 = vld [vmem:[%s1 + $0x768] sm:$0xff]
  %v270 = vld [vmem:[%s1 + $0x770] sm:$0xff]
  %v271 = vld [vmem:[%s1 + $0x778] sm:$0xff]
  %v272 = vld [vmem:[%s1 + $0x780] sm:$0xff]
  %v273 = vld [vmem:[%s1 + $0x788] sm:$0xff]
  %v274 = vld [vmem:[%s1 + $0x790] sm:$0xff]
  %v275 = vld [vmem:[%s1 + $0x798] sm:$0xff]
  %v276 = vld [vmem:[%s1 + $0x7a0] sm:$0xff]
  %v277 = vld [vmem:[%s1 + $0x7a8] sm:$0xff]
  %v278 = vld [vmem:[%s1 + $0x7b0] sm:$0xff]
  %v279 = vld [vmem:[%s1 + $0x7b8] sm:$0xff]
  %v280 = vld [vmem:[%s1 + $0x7c0] sm:$0xff]
  %v281 = vld [vmem:[%s1 + $0x7c8] sm:$0xff]
  %v282 = vld [vmem:[%s1 + $0x7d0] sm:$0xff]
  %v283 = vld [vmem:[%s1 + $0x7d8] sm:$0xff]
  %v284 = vld [vmem:[%s1 + $0x7e0] sm:$0xff]
  %v285 = vld [vmem:[%s1 + $0x7e8] sm:$0xff]
  %v286 = vld [vmem:[%s1 + $0x7f0] sm:$0xff]
  %v287 = vld [vmem:[%s1 + $0x7f8] sm:$0xff]
  %v288 = vld [vmem:[%s1 + $0x800] sm:$0xff]
  %v289 = vld [vmem:[%s1 + $0x808] sm:$0xff]
  %v290 = vld [vmem:[%s1 + $0x810] sm:$0xff]
  %v291 = vld [vmem:[%s1 + $0x818] sm:$0xff]
  %v292 = vld [vmem:[%s1 + $0x820] sm:$0xff]
  %v293 = vld [vmem:[%s1 + $0x828] sm:$0xff]
  %v294 = vld [vmem:[%s1 + $0x830] sm:$0xff]
  %v295 = vld [vmem:[%s1 + $0x838] sm:$0xff]
  %v296 = vld [vmem:[%s1 + $0x840] sm:$0xff]
  %v297 = vld [vmem:[%s1 + $0x848] sm:$0xff]
  %v298 = vld [vmem:[%s1 + $0x850] sm:$0xff]
  %v299 = vld [vmem:[%s1 + $0x858] sm:$0xff]
  %v300 = vld [vmem:[%s1 + $0x860] sm:$0xff]
  %v301 = vld [vmem:[%s1 + $0x868] sm:$0xff]
  %v302 = vld [vmem:[%s1 + $0x870] sm:$0xff]
  %v303 = vld [vmem:[%s1 + $0x878] sm:$0xff]
  %v304 = vld [vmem:[%s1 + $0x880] sm:$0xff]
  %v305 = vld [vmem:[%s1 + $0x888] sm:$0xff]
  %v306 = vld [vmem:[%s1 + $0x890] sm:$0xff]
  %v307 = vld [vmem:[%s1 + $0x898] sm:$0xff]
  %v308 = vld [vmem:[%s1 + $0x8a0] sm:$0xff]
  %v309 = vld [vmem:[%s1 + $0x8a8] sm:$0xff]
  %v310 = vld [vmem:[%s1 + $0x8b0] sm:$0xff]
  %v311 = vld [vmem:[%s1 + $0x8b8] sm:$0xff]
  %v312 = vld [vmem:[%s1 + $0x8c0] sm:$0xff]
  %v313 = vld [vmem:[%s1 + $0x8c8] sm:$0xff]
  %v314 = vld [vmem:[%s1 + $0x8d0] sm:$0xff]
  %v315 = vld [vmem:[%s1 + $0x8d8] sm:$0xff]
  %v316 = vld [vmem:[%s1 + $0x8e0] sm:$0xff]
  %v317 = vld [vmem:[%s1 + $0x8e8] sm:$0xff]
  %v318 = vld [vmem:[%s1 + $0x8f0] sm:$0xff]
  %v319 = vld [vmem:[%s1 + $0x8f8] sm:$0xff]
  %v320 = vld [vmem:[%s1 + $0x900] sm:$0xff]
  %v321 = vld [vmem:[%s1 + $0x908] sm:$0xff]
  %v322 = vld [vmem:[%s1 + $0x910] sm:$0xff]
  %v323 = vld [vmem:[%s1 + $0x918] sm:$0xff]
  %v324 = vld [vmem:[%s1 + $0x920] sm:$0xff]
  %v325 = vld [vmem:[%s1 + $0x928] sm:$0xff]
  %v326 = vld [vmem:[%s1 + $0x930] sm:$0xff]
  %v327 = vld [vmem:[%s1 + $0x938] sm:$0xff]
  %v328 = vld [vmem:[%s1 + $0x940] sm:$0xff]
  %v329 = vld [vmem:[%s1 + $0x948] sm:$0xff]
  %v330 = vld [vmem:[%s1 + $0x950] sm:$0xff]
  %v331 = vld [vmem:[%s1 + $0x958] sm:$0xff]
  %v332 = vld [vmem:[%s1 + $0x960] sm:$0xff]
  %v333 = vld [vmem:[%s1 + $0x968] sm:$0xff]
  %v334 = vld [vmem:[%s1 + $0x970] sm:$0xff]
  %v335 = vld [vmem:[%s1 + $0x978] sm:$0xff]
  %v336 = vld [vmem:[%s1 + $0x980] sm:$0xff]
  %v337 = vld [vmem:[%s1 + $0x988] sm:$0xff]
  %v338 = vld [vmem:[%s1 + $0x990] sm:$0xff]
  %v339 = vld [vmem:[%s1 + $0x998] sm:$0xff]
  %v340 = vld [vmem:[%s1 + $0x9a0] sm:$0xff]
  %v341 = vld [vmem:[%s1 + $0x9a8] sm:$0xff]
  %v342 = vld [vmem:[%s1 + $0x9b0] sm:$0xff]
  %v343 = vld [vmem:[%s1 + $0x9b8] sm:$0xff]
  %v344 = vld [vmem:[%s1 + $0x9c0] sm:$0xff]
  %v345 = vld [vmem:[%s1 + $0x9c8] sm:$0xff]
  %v346 = vld [vmem:[%s1 + $0x9d0] sm:$0xff]
  %v347 = vld [vmem:[%s1 + $0x9d8] sm:$0xff]
  %v348 = vld [vmem:[%s1 + $0x9e0] sm:$0xff]
  %v349 = vld [vmem:[%s1 + $0x9e8] sm:$0xff]
  %v350 = vld [vmem:[%s1 + $0x9f0] sm:$0xff]
  %v351 = vld [vmem:[%s1 + $0x9f8] sm:$0xff]
  %v352 = vld [vmem:[%s1 + $0xa00] sm:$0xff]
  %v353 = vld [vmem:[%s1 + $0xa08] sm:$0xff]
  %v354 = vld [vmem:[%s1 + $0xa10] sm:$0xff]
  %v355 = vld [vmem:[%s1 + $0xa18] sm:$0xff]
  %v356 = vld [vmem:[%s1 + $0xa20] sm:$0xff]
  %v357 = vld [vmem:[%s1 + $0xa28] sm:$0xff]
  %v358 = vld [vmem:[%s1 + $0xa30] sm:$0xff]
  %v359 = vld [vmem:[%s1 + $0xa38] sm:$0xff]
  %v360 = vld [vmem:[%s1 + $0xa40] sm:$0xff]
  %v361 = vld [vmem:[%s1 + $0xa48] sm:$0xff]
  %v362 = vld [vmem:[%s1 + $0xa50] sm:$0xff]
  %v363 = vld [vmem:[%s1 + $0xa58] sm:$0xff]
  %v364 = vld [vmem:[%s1 + $0xa60] sm:$0xff]
  %v365 = vld [vmem:[%s1 + $0xa68] sm:$0xff]
  %v366 = vld [vmem:[%s1 + $0xa70] sm:$0xff]
  %v367 = vld [vmem:[%s1 + $0xa78] sm:$0xff]
  %v368 = vld [vmem:[%s1 + $0xa80] sm:$0xff]
  %v369 = vld [vmem:[%s1 + $0xa88] sm:$0xff]
  %v370 = vld [vmem:[%s1 + $0xa90] sm:$0xff]
  %v371 = vld [vmem:[%s1 + $0xa98] sm:$0xff]
  %v372 = vld [vmem:[%s1 + $0xaa0] sm:$0xff]
  %v373 = vld [vmem:[%s1 + $0xaa8] sm:$0xff]
  %v374 = vld [vmem:[%s1 + $0xab0] sm:$0xff]
  %v375 = vld [vmem:[%s1 + $0xab8] sm:$0xff]
  %v376 = vld [vmem:[%s1 + $0xac0] sm:$0xff]
  %v377 = vld [vmem:[%s1 + $0xac8] sm:$0xff]
  %v378 = vld [vmem:[%s1 + $0xad0] sm:$0xff]
  %v379 = vld [vmem:[%s1 + $0xad8] sm:$0xff]
  %v380 = vld [vmem:[%s1 + $0xae0] sm:$0xff]
  %v381 = vld [vmem:[%s1 + $0xae8] sm:$0xff]
  %v382 = vld [vmem:[%s1 + $0xaf0] sm:$0xff]
  %v383 = vld [vmem:[%s1 + $0xaf8] sm:$0xff]
  %v384 = vld [vmem:[%s1 + $0xb00] sm:$0xff]
  %v385 = vld [vmem:[%s1 + $0xb08] sm:$0xff]
  %v386 = vld [vmem:[%s1 + $0xb10] sm:$0xff]
  %v387 = vld [vmem:[%s1 + $0xb18] sm:$0xff]
  %v388 = vld [vmem:[%s1 + $0xb20] sm:$0xff]
  %v389 = vld [vmem:[%s1 + $0xb28] sm:$0xff]
  %v390 = vld [vmem:[%s1 + $0xb30] sm:$0xff]
  %v391 = vld [vmem:[%s1 + $0xb38] sm:$0xff]
  %v392 = vld [vmem:[%s1 + $0xb40] sm:$0xff]
  %v393 = vld [vmem:[%s1 + $0xb48] sm:$0xff]
  %v394 = vld [vmem:[%s1 + $0xb50] sm:$0xff]
  %v395 = vld [vmem:[%s1 + $0xb58] sm:$0xff]
  %v396 = vld [vmem:[%s1 + $0xb60] sm:$0xff]
  %v397 = vld [vmem:[%s1 + $0xb68] sm:$0xff]
  %v398 = vld [vmem:[%s1 + $0xb70] sm:$0xff]
  %v399 = vld [vmem:[%s1 + $0xb78] sm:$0xff]
  %v400 = vld [vmem:[%s1 + $0xb80] sm:$0xff]
  %v401 = vld [vmem:[%s1 + $0xb88] sm:$0xff]
  %v402 = vld [vmem:[%s1 + $0xb90] sm:$0xff]
  %v403 = vld [vmem:[%s1 + $0xb98] sm:$0xff]
  %v404 = vld [vmem:[%s1 + $0xba0] sm:$0xff]
  %v405 = vld [vmem:[%s1 + $0xba8] sm:$0xff]
  %v406 = vld [vmem:[%s1 + $0xbb0] sm:$0xff]
  %v407 = vld [vmem:[%s1 + $0xbb8] sm:$0xff]
  %v408 = vld [vmem:[%s1 + $0xbc0] sm:$0xff]
  %v409 = vld [vmem:[%s1 + $0xbc8] sm:$0xff]
  %v410 = vld [vmem:[%s1 + $0xbd0] sm:$0xff]
  %v411 = vld [vmem:[%s1 + $0xbd8] sm:$0xff]
  %v412 = vld [vmem:[%s1 + $0xbe0] sm:$0xff]
  %v413 = vld [vmem:[%s1 + $0xbe8] sm:$0xff]
  %v414 = vld [vmem:[%s1 + $0xbf0] sm:$0xff]
  %v415 = vld [vmem:[%s1 + $0xbf8] sm:$0xff]
  %v416 = vld [vmem:[%s1 + $0xc00] sm:$0xff]
  %v417 = vld [vmem:[%s1 + $0xc08] sm:$0xff]
  %v418 = vld [vmem:[%s1 + $0xc10] sm:$0xff]
  %v419 = vld [vmem:[%s1 + $0xc18] sm:$0xff]
  %v420 = vld [vmem:[%s1 + $0xc20] sm:$0xff]
  %v421 = vld [vmem:[%s1 + $0xc28] sm:$0xff]
  %v422 = vld [vmem:[%s1 + $0xc30] sm:$0xff]
  %v423 = vld [vmem:[%s1 + $0xc38] sm:$0xff]
  %v424 = vld [vmem:[%s2] sm:$0xf]
  %v426 = vperm.slane %v424, 0
  %v427 = vperm.slane %v424, 1
  %v428 = vperm.slane %v424, 2
  %v429 = vperm.slane %v424, 3
  %v441 = vunpack.c.l.b16 %v25
  %v442 = vunpack.c.h.b16 %v25
  %v443 = vunpack.c.l.b16 %v26
  %v444 = vunpack.c.h.b16 %v26
  %v445 = vunpack.c.l.b16 %v27
  %v446 = vunpack.c.h.b16 %v27
  %v447 = vunpack.c.l.b16 %v28
  %v448 = vunpack.c.h.b16 %v28
  %v449 = vunpack.c.l.b16 %v29
  %v450 = vunpack.c.h.b16 %v29
  %v451 = vunpack.c.l.b16 %v30
  %v452 = vunpack.c.h.b16 %v30
  %v453 = vunpack.c.l.b16 %v31
  %v454 = vpack.c.b16 %v441, %v441
  %v455 = vpack.c.b16 %v442, %v442
  %v456 = vpack.c.b16 %v443, %v443
  %v457 = vpack.c.b16 %v444, %v444
  %v458 = vpack.c.b16 %v445, %v445
  %v459 = vpack.c.b16 %v446, %v446
  %v460 = vpack.c.b16 %v447, %v447
  %v461 = vpack.c.b16 %v448, %v448
  %v462 = vpack.c.b16 %v449, %v449
  %v463 = vpack.c.b16 %v450, %v450
  %v464 = vpack.c.b16 %v451, %v451
  %v465 = vpack.c.b16 %v452, %v452
  %v466 = vpack.c.b16 %v453, %v453
  %v871 = vunpack.c.l.b16 %v32
  %v872 = vunpack.c.h.b16 %v32
  %v873 = vunpack.c.l.b16 %v33
  %v874 = vunpack.c.h.b16 %v33
  %v875 = vunpack.c.l.b16 %v34
  %v876 = vunpack.c.h.b16 %v34
  %v877 = vunpack.c.l.b16 %v35
  %v878 = vunpack.c.h.b16 %v35
  %v879 = vunpack.c.l.b16 %v36
  %v880 = vunpack.c.h.b16 %v36
  %v881 = vunpack.c.l.b16 %v37
  %v882 = vunpack.c.h.b16 %v37
  %v883 = vunpack.c.l.b16 %v38
  %v884 = vunpack.c.h.b16 %v38
  %v885 = vunpack.c.l.b16 %v39
  %v886 = vunpack.c.h.b16 %v39
  %v887 = vunpack.c.l.b16 %v40
  %v888 = vunpack.c.h.b16 %v40
  %v889 = vunpack.c.l.b16 %v41
  %v890 = vunpack.c.h.b16 %v41
  %v891 = vunpack.c.l.b16 %v42
  %v892 = vunpack.c.h.b16 %v42
  %v893 = vunpack.c.l.b16 %v43
  %v894 = vunpack.c.h.b16 %v43
  %v895 = vunpack.c.l.b16 %v44
  %v896 = vunpack.c.h.b16 %v44
  %v897 = vunpack.c.l.b16 %v45
  %v898 = vunpack.c.h.b16 %v45
  %v899 = vunpack.c.l.b16 %v46
  %v900 = vunpack.c.h.b16 %v46
  %v901 = vunpack.c.l.b16 %v47
  %v902 = vunpack.c.h.b16 %v47
  %v903 = vunpack.c.l.b16 %v48
  %v904 = vunpack.c.h.b16 %v48
  %v905 = vunpack.c.l.b16 %v49
  %v906 = vunpack.c.h.b16 %v49
  %v907 = vunpack.c.l.b16 %v50
  %v908 = vunpack.c.h.b16 %v50
  %v909 = vunpack.c.l.b16 %v51
  %v910 = vunpack.c.h.b16 %v51
  %v911 = vunpack.c.l.b16 %v52
  %v912 = vunpack.c.h.b16 %v52
  %v913 = vunpack.c.l.b16 %v53
  %v914 = vunpack.c.h.b16 %v53
  %v915 = vunpack.c.l.b16 %v54
  %v916 = vunpack.c.h.b16 %v54
  %v917 = vunpack.c.l.b16 %v55
  %v918 = vunpack.c.h.b16 %v55
  %v919 = vunpack.c.l.b16 %v56
  %v920 = vunpack.c.h.b16 %v56
  %v921 = vunpack.c.l.b16 %v57
  %v922 = vunpack.c.h.b16 %v57
  %v923 = vunpack.c.l.b16 %v58
  %v924 = vunpack.c.h.b16 %v58
  %v925 = vunpack.c.l.b16 %v59
  %v926 = vunpack.c.h.b16 %v59
  %v927 = vunpack.c.l.b16 %v60
  %v928 = vunpack.c.h.b16 %v60
  %v929 = vunpack.c.l.b16 %v61
  %v930 = vunpack.c.h.b16 %v61
  %v931 = vunpack.c.l.b16 %v62
  %v932 = vunpack.c.h.b16 %v62
  %v933 = vunpack.c.l.b16 %v63
  %v934 = vunpack.c.h.b16 %v63
  %v935 = vunpack.c.l.b16 %v64
  %v936 = vunpack.c.h.b16 %v64
  %v937 = vunpack.c.l.b16 %v65
  %v938 = vunpack.c.h.b16 %v65
  %v939 = vunpack.c.l.b16 %v66
  %v940 = vunpack.c.h.b16 %v66
  %v941 = vunpack.c.l.b16 %v67
  %v942 = vunpack.c.h.b16 %v67
  %v943 = vunpack.c.l.b16 %v68
  %v944 = vunpack.c.h.b16 %v68
  %v945 = vunpack.c.l.b16 %v69
  %v946 = vunpack.c.h.b16 %v69
  %v947 = vunpack.c.l.b16 %v70
  %v948 = vunpack.c.h.b16 %v70
  %v949 = vunpack.c.l.b16 %v71
  %v950 = vunpack.c.h.b16 %v71
  %v951 = vunpack.c.l.b16 %v72
  %v952 = vunpack.c.h.b16 %v72
  %v953 = vunpack.c.l.b16 %v73
  %v954 = vunpack.c.h.b16 %v73
  %v955 = vunpack.c.l.b16 %v74
  %v956 = vunpack.c.h.b16 %v74
  %v957 = vunpack.c.l.b16 %v75
  %v958 = vunpack.c.h.b16 %v75
  %v959 = vunpack.c.l.b16 %v76
  %v960 = vunpack.c.h.b16 %v76
  %v961 = vunpack.c.l.b16 %v77
  %v962 = vunpack.c.h.b16 %v77
  %v963 = vunpack.c.l.b16 %v78
  %v964 = vunpack.c.h.b16 %v78
  %v965 = vunpack.c.l.b16 %v79
  %v966 = vunpack.c.h.b16 %v79
  %v967 = vunpack.c.l.b16 %v80
  %v968 = vunpack.c.h.b16 %v80
  %v969 = vunpack.c.l.b16 %v81
  %v970 = vunpack.c.h.b16 %v81
  %v971 = vunpack.c.l.b16 %v82
  %v972 = vunpack.c.h.b16 %v82
  %v973 = vunpack.c.l.b16 %v83
  %v974 = vunpack.c.h.b16 %v83
  %v975 = vunpack.c.l.b16 %v84
  %v976 = vunpack.c.h.b16 %v84
  %v977 = vunpack.c.l.b16 %v85
  %v978 = vunpack.c.h.b16 %v85
  %v979 = vunpack.c.l.b16 %v86
  %v980 = vunpack.c.h.b16 %v86
  %v981 = vunpack.c.l.b16 %v87
  %v982 = vunpack.c.h.b16 %v87
  %v983 = vunpack.c.l.b16 %v88
  %v984 = vunpack.c.h.b16 %v88
  %v985 = vunpack.c.l.b16 %v89
  %v986 = vunpack.c.h.b16 %v89
  %v987 = vunpack.c.l.b16 %v90
  %v988 = vunpack.c.h.b16 %v90
  %v989 = vunpack.c.l.b16 %v91
  %v990 = vunpack.c.h.b16 %v91
  %v991 = vunpack.c.l.b16 %v92
  %v992 = vunpack.c.h.b16 %v92
  %v993 = vunpack.c.l.b16 %v93
  %v994 = vunpack.c.h.b16 %v93
  %v995 = vunpack.c.l.b16 %v94
  %v996 = vunpack.c.h.b16 %v94
  %v997 = vunpack.c.l.b16 %v95
  %v998 = vunpack.c.h.b16 %v95
  %v999 = vunpack.c.l.b16 %v96
  %v1000 = vunpack.c.h.b16 %v96
  %v1001 = vunpack.c.l.b16 %v97
  %v1002 = vunpack.c.h.b16 %v97
  %v1003 = vunpack.c.l.b16 %v98
  %v1004 = vunpack.c.h.b16 %v98
  %v1005 = vunpack.c.l.b16 %v99
  %v1006 = vunpack.c.h.b16 %v99
  %v1007 = vunpack.c.l.b16 %v100
  %v1008 = vunpack.c.h.b16 %v100
  %v1009 = vunpack.c.l.b16 %v101
  %v1010 = vunpack.c.h.b16 %v101
  %v1011 = vunpack.c.l.b16 %v102
  %v1012 = vunpack.c.h.b16 %v102
  %v1013 = vunpack.c.l.b16 %v103
  %v1014 = vunpack.c.h.b16 %v103
  %v1015 = vunpack.c.l.b16 %v104
  %v1016 = vunpack.c.h.b16 %v104
  %v1017 = vunpack.c.l.b16 %v105
  %v1018 = vunpack.c.h.b16 %v105
  %v1019 = vunpack.c.l.b16 %v106
  %v1020 = vunpack.c.h.b16 %v106
  %v1021 = vunpack.c.l.b16 %v107
  %v1022 = vunpack.c.h.b16 %v107
  %v1023 = vunpack.c.l.b16 %v108
  %v1024 = vunpack.c.h.b16 %v108
  %v1025 = vunpack.c.l.b16 %v109
  %v1026 = vunpack.c.h.b16 %v109
  %v1027 = vunpack.c.l.b16 %v110
  %v1028 = vunpack.c.h.b16 %v110
  %v1029 = vunpack.c.l.b16 %v111
  %v1030 = vunpack.c.h.b16 %v111
  %v1031 = vunpack.c.l.b16 %v112
  %v1032 = vunpack.c.h.b16 %v112
  %v1033 = vunpack.c.l.b16 %v113
  %v1034 = vunpack.c.h.b16 %v113
  %v1035 = vunpack.c.l.b16 %v114
  %v1036 = vunpack.c.h.b16 %v114
  %v1037 = vunpack.c.l.b16 %v115
  %v1038 = vunpack.c.h.b16 %v115
  %v1039 = vunpack.c.l.b16 %v116
  %v1040 = vunpack.c.h.b16 %v116
  %v1041 = vunpack.c.l.b16 %v117
  %v1042 = vunpack.c.h.b16 %v117
  %v1043 = vunpack.c.l.b16 %v118
  %v1044 = vunpack.c.h.b16 %v118
  %v1045 = vunpack.c.l.b16 %v119
  %v1046 = vunpack.c.h.b16 %v119
  %v1047 = vunpack.c.l.b16 %v120
  %v1048 = vunpack.c.h.b16 %v120
  %v1049 = vunpack.c.l.b16 %v121
  %v1050 = vunpack.c.h.b16 %v121
  %v1051 = vunpack.c.l.b16 %v122
  %v1052 = vunpack.c.h.b16 %v122
  %v1053 = vunpack.c.l.b16 %v123
  %v1054 = vunpack.c.h.b16 %v123
  %v1055 = vunpack.c.l.b16 %v124
  %v1056 = vunpack.c.h.b16 %v124
  %v1057 = vunpack.c.l.b16 %v125
  %v1058 = vunpack.c.h.b16 %v125
  %v1059 = vunpack.c.l.b16 %v126
  %v1060 = vunpack.c.h.b16 %v126
  %v1061 = vunpack.c.l.b16 %v127
  %v1062 = vunpack.c.h.b16 %v127
  %v1063 = vunpack.c.l.b16 %v128
  %v1064 = vunpack.c.h.b16 %v128
  %v1065 = vunpack.c.l.b16 %v129
  %v1066 = vunpack.c.h.b16 %v129
  %v1067 = vunpack.c.l.b16 %v130
  %v1068 = vunpack.c.h.b16 %v130
  %v1069 = vunpack.c.l.b16 %v131
  %v1070 = vunpack.c.h.b16 %v131
  %v1071 = vunpack.c.l.b16 %v132
  %v1072 = vunpack.c.h.b16 %v132
  %v1073 = vunpack.c.l.b16 %v133
  %v1074 = vunpack.c.h.b16 %v133
  %v1075 = vunpack.c.l.b16 %v134
  %v1076 = vunpack.c.h.b16 %v134
  %v1077 = vunpack.c.l.b16 %v135
  %v1078 = vunpack.c.h.b16 %v135
  %v1079 = vunpack.c.l.b16 %v136
  %v1080 = vunpack.c.h.b16 %v136
  %v1081 = vunpack.c.l.b16 %v137
  %v1082 = vunpack.c.h.b16 %v137
  %v1083 = vunpack.c.l.b16 %v138
  %v1084 = vunpack.c.h.b16 %v138
  %v1085 = vunpack.c.l.b16 %v139
  %v1086 = vunpack.c.h.b16 %v139
  %v1087 = vunpack.c.l.b16 %v140
  %v1088 = vunpack.c.h.b16 %v140
  %v1089 = vunpack.c.l.b16 %v141
  %v1090 = vunpack.c.h.b16 %v141
  %v1091 = vunpack.c.l.b16 %v142
  %v1092 = vunpack.c.h.b16 %v142
  %v1093 = vunpack.c.l.b16 %v143
  %v1094 = vunpack.c.h.b16 %v143
  %v1095 = vunpack.c.l.b16 %v144
  %v1096 = vunpack.c.h.b16 %v144
  %v1097 = vunpack.c.l.b16 %v145
  %v1098 = vunpack.c.h.b16 %v145
  %v1099 = vunpack.c.l.b16 %v146
  %v1100 = vunpack.c.h.b16 %v146
  %v1101 = vunpack.c.l.b16 %v147
  %v1102 = vunpack.c.h.b16 %v147
  %v1103 = vunpack.c.l.b16 %v148
  %v1104 = vunpack.c.h.b16 %v148
  %v1105 = vunpack.c.l.b16 %v149
  %v1106 = vunpack.c.h.b16 %v149
  %v1107 = vunpack.c.l.b16 %v150
  %v1108 = vunpack.c.h.b16 %v150
  %v1109 = vunpack.c.l.b16 %v151
  %v1110 = vunpack.c.h.b16 %v151
  %v1111 = vunpack.c.l.b16 %v152
  %v1112 = vunpack.c.h.b16 %v152
  %v1113 = vunpack.c.l.b16 %v153
  %v1114 = vunpack.c.h.b16 %v153
  %v1115 = vunpack.c.l.b16 %v154
  %v1116 = vunpack.c.h.b16 %v154
  %v1117 = vunpack.c.l.b16 %v155
  %v1118 = vunpack.c.h.b16 %v155
  %v1119 = vunpack.c.l.b16 %v156
  %v1120 = vunpack.c.h.b16 %v156
  %v1121 = vunpack.c.l.b16 %v157
  %v1122 = vunpack.c.h.b16 %v157
  %v1123 = vunpack.c.l.b16 %v158
  %v1124 = vunpack.c.h.b16 %v158
  %v1125 = vunpack.c.l.b16 %v159
  %v1126 = vunpack.c.h.b16 %v159
  %v1127 = vunpack.c.l.b16 %v160
  %v1128 = vunpack.c.h.b16 %v160
  %v1129 = vunpack.c.l.b16 %v161
  %v1130 = vunpack.c.h.b16 %v161
  %v1131 = vunpack.c.l.b16 %v162
  %v1132 = vunpack.c.h.b16 %v162
  %v1133 = vunpack.c.l.b16 %v163
  %v1134 = vunpack.c.h.b16 %v163
  %v1135 = vunpack.c.l.b16 %v164
  %v1136 = vunpack.c.h.b16 %v164
  %v1137 = vunpack.c.l.b16 %v165
  %v1138 = vunpack.c.h.b16 %v165
  %v1139 = vunpack.c.l.b16 %v166
  %v1140 = vunpack.c.h.b16 %v166
  %v1141 = vunpack.c.l.b16 %v167
  %v1142 = vunpack.c.h.b16 %v167
  %v1143 = vunpack.c.l.b16 %v168
  %v1144 = vunpack.c.h.b16 %v168
  %v1145 = vunpack.c.l.b16 %v169
  %v1146 = vunpack.c.h.b16 %v169
  %v1147 = vunpack.c.l.b16 %v170
  %v1148 = vunpack.c.h.b16 %v170
  %v1149 = vunpack.c.l.b16 %v171
  %v1150 = vunpack.c.h.b16 %v171
  %v1151 = vunpack.c.l.b16 %v172
  %v1152 = vunpack.c.h.b16 %v172
  %v1153 = vunpack.c.l.b16 %v173
  %v1154 = vunpack.c.h.b16 %v173
  %v1155 = vunpack.c.l.b16 %v174
  %v1156 = vunpack.c.h.b16 %v174
  %v1157 = vunpack.c.l.b16 %v175
  %v1158 = vunpack.c.h.b16 %v175
  %v1159 = vunpack.c.l.b16 %v176
  %v1160 = vunpack.c.h.b16 %v176
  %v1161 = vunpack.c.l.b16 %v177
  %v1162 = vunpack.c.h.b16 %v177
  %v1163 = vunpack.c.l.b16 %v178
  %v1164 = vunpack.c.h.b16 %v178
  %v1165 = vunpack.c.l.b16 %v179
  %v1166 = vunpack.c.h.b16 %v179
  %v1167 = vunpack.c.l.b16 %v180
  %v1168 = vunpack.c.h.b16 %v180
  %v1169 = vunpack.c.l.b16 %v181
  %v1170 = vunpack.c.h.b16 %v181
  %v1171 = vunpack.c.l.b16 %v182
  %v1172 = vunpack.c.h.b16 %v182
  %v1173 = vunpack.c.l.b16 %v183
  %v1174 = vunpack.c.h.b16 %v183
  %v1175 = vunpack.c.l.b16 %v184
  %v1176 = vunpack.c.h.b16 %v184
  %v1177 = vunpack.c.l.b16 %v185
  %v1178 = vunpack.c.h.b16 %v185
  %v1179 = vunpack.c.l.b16 %v186
  %v1180 = vunpack.c.h.b16 %v186
  %v1181 = vunpack.c.l.b16 %v187
  %v1182 = vunpack.c.h.b16 %v187
  %v1183 = vunpack.c.l.b16 %v188
  %v1184 = vunpack.c.h.b16 %v188
  %v1185 = vunpack.c.l.b16 %v189
  %v1186 = vunpack.c.h.b16 %v189
  %v1187 = vunpack.c.l.b16 %v190
  %v1188 = vunpack.c.h.b16 %v190
  %v1189 = vunpack.c.l.b16 %v191
  %v1190 = vunpack.c.h.b16 %v191
  %v1191 = vunpack.c.l.b16 %v192
  %v1192 = vunpack.c.h.b16 %v192
  %v1193 = vunpack.c.l.b16 %v193
  %v1194 = vunpack.c.h.b16 %v193
  %v1195 = vunpack.c.l.b16 %v194
  %v1196 = vunpack.c.h.b16 %v194
  %v1197 = vunpack.c.l.b16 %v195
  %v1198 = vunpack.c.h.b16 %v195
  %v1199 = vunpack.c.l.b16 %v196
  %v1200 = vunpack.c.h.b16 %v196
  %v1201 = vunpack.c.l.b16 %v197
  %v1202 = vunpack.c.h.b16 %v197
  %v1203 = vunpack.c.l.b16 %v198
  %v1204 = vunpack.c.h.b16 %v198
  %v1205 = vunpack.c.l.b16 %v199
  %v1206 = vunpack.c.h.b16 %v199
  %v1207 = vunpack.c.l.b16 %v200
  %v1208 = vunpack.c.h.b16 %v200
  %v1209 = vunpack.c.l.b16 %v201
  %v1210 = vunpack.c.h.b16 %v201
  %v1211 = vunpack.c.l.b16 %v202
  %v1212 = vunpack.c.h.b16 %v202
  %v1213 = vunpack.c.l.b16 %v203
  %v1214 = vunpack.c.h.b16 %v203
  %v1215 = vunpack.c.l.b16 %v204
  %v1216 = vunpack.c.h.b16 %v204
  %v1217 = vunpack.c.l.b16 %v205
  %v1218 = vunpack.c.h.b16 %v205
  %v1219 = vunpack.c.l.b16 %v206
  %v1220 = vunpack.c.h.b16 %v206
  %v1221 = vunpack.c.l.b16 %v207
  %v1222 = vunpack.c.h.b16 %v207
  %v1223 = vunpack.c.l.b16 %v208
  %v1224 = vunpack.c.h.b16 %v208
  %v1225 = vunpack.c.l.b16 %v209
  %v1226 = vunpack.c.h.b16 %v209
  %v1227 = vunpack.c.l.b16 %v210
  %v1228 = vunpack.c.h.b16 %v210
  %v1229 = vunpack.c.l.b16 %v211
  %v1230 = vunpack.c.h.b16 %v211
  %v1231 = vunpack.c.l.b16 %v212
  %v1232 = vunpack.c.h.b16 %v212
  %v1233 = vunpack.c.l.b16 %v213
  %v1234 = vunpack.c.h.b16 %v213
  %v1235 = vunpack.c.l.b16 %v214
  %v1236 = vunpack.c.h.b16 %v214
  %v1237 = vunpack.c.l.b16 %v215
  %v1238 = vunpack.c.h.b16 %v215
  %v1239 = vunpack.c.l.b16 %v216
  %v1240 = vunpack.c.h.b16 %v216
  %v1241 = vunpack.c.l.b16 %v217
  %v1242 = vunpack.c.h.b16 %v217
  %v1243 = vunpack.c.l.b16 %v218
  %v1244 = vunpack.c.h.b16 %v218
  %v1245 = vunpack.c.l.b16 %v219
  %v1246 = vunpack.c.h.b16 %v219
  %v1247 = vunpack.c.l.b16 %v220
  %v1248 = vunpack.c.h.b16 %v220
  %v1249 = vunpack.c.l.b16 %v221
  %v1250 = vunpack.c.h.b16 %v221
  %v1251 = vunpack.c.l.b16 %v222
  %v1252 = vunpack.c.h.b16 %v222
  %v1253 = vunpack.c.l.b16 %v223
  %v1254 = vunpack.c.h.b16 %v223
  %v1255 = vunpack.c.l.b16 %v224
  %v1256 = vunpack.c.h.b16 %v224
  %v1257 = vunpack.c.l.b16 %v225
  %v1258 = vunpack.c.h.b16 %v225
  %v1259 = vunpack.c.l.b16 %v226
  %v1260 = vunpack.c.h.b16 %v226
  %v1261 = vunpack.c.l.b16 %v227
  %v1262 = vunpack.c.h.b16 %v227
  %v1263 = vunpack.c.l.b16 %v228
  %v1264 = vunpack.c.h.b16 %v228
  %v1265 = vunpack.c.l.b16 %v229
  %v1266 = vunpack.c.h.b16 %v229
  %v1267 = vunpack.c.l.b16 %v230
  %v1268 = vunpack.c.h.b16 %v230
  %v1269 = vunpack.c.l.b16 %v231
  %v1270 = vunpack.c.h.b16 %v231
  %v1271 = vunpack.c.l.b16 %v232
  %v1272 = vunpack.c.h.b16 %v232
  %v1273 = vunpack.c.l.b16 %v233
  %v1274 = vunpack.c.h.b16 %v233
  %v1275 = vunpack.c.l.b16 %v234
  %v1276 = vunpack.c.h.b16 %v234
  %v1277 = vunpack.c.l.b16 %v235
  %v1278 = vunpack.c.h.b16 %v235
  %v1279 = vunpack.c.l.b16 %v236
  %v1280 = vunpack.c.h.b16 %v236
  %v1281 = vunpack.c.l.b16 %v237
  %v1282 = vunpack.c.h.b16 %v237
  %v1283 = vunpack.c.l.b16 %v238
  %v1284 = vunpack.c.h.b16 %v238
  %v1285 = vunpack.c.l.b16 %v239
  %v1286 = vunpack.c.h.b16 %v239
  %v1287 = vunpack.c.l.b16 %v240
  %v1288 = vunpack.c.h.b16 %v240
  %v1289 = vunpack.c.l.b16 %v241
  %v1290 = vunpack.c.h.b16 %v241
  %v1291 = vunpack.c.l.b16 %v242
  %v1292 = vunpack.c.h.b16 %v242
  %v1293 = vunpack.c.l.b16 %v243
  %v1294 = vunpack.c.h.b16 %v243
  %v1295 = vunpack.c.l.b16 %v244
  %v1296 = vunpack.c.h.b16 %v244
  %v1297 = vunpack.c.l.b16 %v245
  %v1298 = vunpack.c.h.b16 %v245
  %v1299 = vunpack.c.l.b16 %v246
  %v1300 = vunpack.c.h.b16 %v246
  %v1301 = vunpack.c.l.b16 %v247
  %v1302 = vunpack.c.h.b16 %v247
  %v1303 = vunpack.c.l.b16 %v248
  %v1304 = vunpack.c.h.b16 %v248
  %v1305 = vunpack.c.l.b16 %v249
  %v1306 = vunpack.c.h.b16 %v249
  %v1307 = vunpack.c.l.b16 %v250
  %v1308 = vunpack.c.h.b16 %v250
  %v1309 = vunpack.c.l.b16 %v251
  %v1310 = vunpack.c.h.b16 %v251
  %v1311 = vunpack.c.l.b16 %v252
  %v1312 = vunpack.c.h.b16 %v252
  %v1313 = vunpack.c.l.b16 %v253
  %v1314 = vunpack.c.h.b16 %v253
  %v1315 = vunpack.c.l.b16 %v254
  %v1316 = vunpack.c.h.b16 %v254
  %v1317 = vunpack.c.l.b16 %v255
  %v1318 = vunpack.c.h.b16 %v255
  %v1319 = vunpack.c.l.b16 %v256
  %v1320 = vunpack.c.h.b16 %v256
  %v1321 = vunpack.c.l.b16 %v257
  %v1322 = vunpack.c.h.b16 %v257
  %v1323 = vunpack.c.l.b16 %v258
  %v1324 = vunpack.c.h.b16 %v258
  %v1325 = vunpack.c.l.b16 %v259
  %v1326 = vunpack.c.h.b16 %v259
  %v1327 = vunpack.c.l.b16 %v260
  %v1328 = vunpack.c.h.b16 %v260
  %v1329 = vunpack.c.l.b16 %v261
  %v1330 = vunpack.c.h.b16 %v261
  %v1331 = vunpack.c.l.b16 %v262
  %v1332 = vunpack.c.h.b16 %v262
  %v1333 = vunpack.c.l.b16 %v263
  %v1334 = vunpack.c.h.b16 %v263
  %v1335 = vunpack.c.l.b16 %v264
  %v1336 = vunpack.c.h.b16 %v264
  %v1337 = vunpack.c.l.b16 %v265
  %v1338 = vunpack.c.h.b16 %v265
  %v1339 = vunpack.c.l.b16 %v266
  %v1340 = vunpack.c.h.b16 %v266
  %v1341 = vunpack.c.l.b16 %v267
  %v1342 = vunpack.c.h.b16 %v267
  %v1343 = vunpack.c.l.b16 %v268
  %v1344 = vunpack.c.h.b16 %v268
  %v1345 = vunpack.c.l.b16 %v269
  %v1346 = vunpack.c.h.b16 %v269
  %v1347 = vunpack.c.l.b16 %v270
  %v1348 = vunpack.c.h.b16 %v270
  %v1349 = vunpack.c.l.b16 %v271
  %v1350 = vunpack.c.h.b16 %v271
  %v1351 = vunpack.c.l.b16 %v272
  %v1352 = vunpack.c.h.b16 %v272
  %v1353 = vunpack.c.l.b16 %v273
  %v1354 = vunpack.c.h.b16 %v273
  %v1355 = vunpack.c.l.b16 %v274
  %v1356 = vunpack.c.h.b16 %v274
  %v1357 = vunpack.c.l.b16 %v275
  %v1358 = vunpack.c.h.b16 %v275
  %v1359 = vunpack.c.l.b16 %v276
  %v1360 = vunpack.c.h.b16 %v276
  %v1361 = vunpack.c.l.b16 %v277
  %v1362 = vunpack.c.h.b16 %v277
  %v1363 = vunpack.c.l.b16 %v278
  %v1364 = vunpack.c.h.b16 %v278
  %v1365 = vunpack.c.l.b16 %v279
  %v1366 = vunpack.c.h.b16 %v279
  %v1367 = vunpack.c.l.b16 %v280
  %v1368 = vunpack.c.h.b16 %v280
  %v1369 = vunpack.c.l.b16 %v281
  %v1370 = vunpack.c.h.b16 %v281
  %v1371 = vunpack.c.l.b16 %v282
  %v1372 = vunpack.c.h.b16 %v282
  %v1373 = vunpack.c.l.b16 %v283
  %v1374 = vunpack.c.h.b16 %v283
  %v1375 = vunpack.c.l.b16 %v284
  %v1376 = vunpack.c.h.b16 %v284
  %v1377 = vunpack.c.l.b16 %v285
  %v1378 = vunpack.c.h.b16 %v285
  %v1379 = vunpack.c.l.b16 %v286
  %v1380 = vunpack.c.h.b16 %v286
  %v1381 = vunpack.c.l.b16 %v287
  %v1382 = vunpack.c.h.b16 %v287
  %v1383 = vunpack.c.l.b16 %v288
  %v1384 = vunpack.c.h.b16 %v288
  %v1385 = vunpack.c.l.b16 %v289
  %v1386 = vunpack.c.h.b16 %v289
  %v1387 = vunpack.c.l.b16 %v290
  %v1388 = vunpack.c.h.b16 %v290
  %v1389 = vunpack.c.l.b16 %v291
  %v1390 = vunpack.c.h.b16 %v291
  %v1391 = vunpack.c.l.b16 %v292
  %v1392 = vunpack.c.h.b16 %v292
  %v1393 = vunpack.c.l.b16 %v293
  %v1394 = vunpack.c.h.b16 %v293
  %v1395 = vunpack.c.l.b16 %v294
  %v1396 = vunpack.c.h.b16 %v294
  %v1397 = vunpack.c.l.b16 %v295
  %v1398 = vunpack.c.h.b16 %v295
  %v1399 = vunpack.c.l.b16 %v296
  %v1400 = vunpack.c.h.b16 %v296
  %v1401 = vunpack.c.l.b16 %v297
  %v1402 = vunpack.c.h.b16 %v297
  %v1403 = vunpack.c.l.b16 %v298
  %v1404 = vunpack.c.h.b16 %v298
  %v1405 = vunpack.c.l.b16 %v299
  %v1406 = vunpack.c.h.b16 %v299
  %v1407 = vunpack.c.l.b16 %v300
  %v1408 = vunpack.c.h.b16 %v300
  %v1409 = vunpack.c.l.b16 %v301
  %v1410 = vunpack.c.h.b16 %v301
  %v1411 = vunpack.c.l.b16 %v302
  %v1412 = vunpack.c.h.b16 %v302
  %v1413 = vunpack.c.l.b16 %v303
  %v1414 = vunpack.c.h.b16 %v303
  %v1415 = vunpack.c.l.b16 %v304
  %v1416 = vunpack.c.h.b16 %v304
  %v1417 = vunpack.c.l.b16 %v305
  %v1418 = vunpack.c.h.b16 %v305
  %v1419 = vunpack.c.l.b16 %v306
  %v1420 = vunpack.c.h.b16 %v306
  %v1421 = vunpack.c.l.b16 %v307
  %v1422 = vunpack.c.h.b16 %v307
  %v1423 = vunpack.c.l.b16 %v308
  %v1424 = vunpack.c.h.b16 %v308
  %v1425 = vunpack.c.l.b16 %v309
  %v1426 = vunpack.c.h.b16 %v309
  %v1427 = vunpack.c.l.b16 %v310
  %v1428 = vunpack.c.h.b16 %v310
  %v1429 = vunpack.c.l.b16 %v311
  %v1430 = vunpack.c.h.b16 %v311
  %v1431 = vunpack.c.l.b16 %v312
  %v1432 = vunpack.c.h.b16 %v312
  %v1433 = vunpack.c.l.b16 %v313
  %v1434 = vunpack.c.h.b16 %v313
  %v1435 = vunpack.c.l.b16 %v314
  %v1436 = vunpack.c.h.b16 %v314
  %v1437 = vunpack.c.l.b16 %v315
  %v1438 = vunpack.c.h.b16 %v315
  %v1439 = vunpack.c.l.b16 %v316
  %v1440 = vunpack.c.h.b16 %v316
  %v1441 = vunpack.c.l.b16 %v317
  %v1442 = vunpack.c.h.b16 %v317
  %v1443 = vunpack.c.l.b16 %v318
  %v1444 = vunpack.c.h.b16 %v318
  %v1445 = vunpack.c.l.b16 %v319
  %v1446 = vunpack.c.h.b16 %v319
  %v1447 = vunpack.c.l.b16 %v320
  %v1448 = vunpack.c.h.b16 %v320
  %v1449 = vunpack.c.l.b16 %v321
  %v1450 = vunpack.c.h.b16 %v321
  %v1451 = vunpack.c.l.b16 %v322
  %v1452 = vunpack.c.h.b16 %v322
  %v1453 = vunpack.c.l.b16 %v323
  %v1454 = vunpack.c.h.b16 %v323
  %v1455 = vunpack.c.l.b16 %v324
  %v1456 = vunpack.c.h.b16 %v324
  %v1457 = vunpack.c.l.b16 %v325
  %v1458 = vunpack.c.h.b16 %v325
  %v1459 = vunpack.c.l.b16 %v326
  %v1460 = vunpack.c.h.b16 %v326
  %v1461 = vunpack.c.l.b16 %v327
  %v1462 = vunpack.c.h.b16 %v327
  %v1463 = vunpack.c.l.b16 %v328
  %v1464 = vunpack.c.h.b16 %v328
  %v1465 = vunpack.c.l.b16 %v329
  %v1466 = vunpack.c.h.b16 %v329
  %v1467 = vunpack.c.l.b16 %v330
  %v1468 = vunpack.c.h.b16 %v330
  %v1469 = vunpack.c.l.b16 %v331
  %v1470 = vunpack.c.h.b16 %v331
  %v1471 = vunpack.c.l.b16 %v332
  %v1472 = vunpack.c.h.b16 %v332
  %v1473 = vunpack.c.l.b16 %v333
  %v1474 = vunpack.c.h.b16 %v333
  %v1475 = vunpack.c.l.b16 %v334
  %v1476 = vunpack.c.h.b16 %v334
  %v1477 = vunpack.c.l.b16 %v335
  %v1478 = vunpack.c.h.b16 %v335
  %v1479 = vunpack.c.l.b16 %v336
  %v1480 = vunpack.c.h.b16 %v336
  %v1481 = vunpack.c.l.b16 %v337
  %v1482 = vunpack.c.h.b16 %v337
  %v1483 = vunpack.c.l.b16 %v338
  %v1484 = vunpack.c.h.b16 %v338
  %v1485 = vunpack.c.l.b16 %v339
  %v1486 = vunpack.c.h.b16 %v339
  %v1487 = vunpack.c.l.b16 %v340
  %v1488 = vunpack.c.h.b16 %v340
  %v1489 = vunpack.c.l.b16 %v341
  %v1490 = vunpack.c.h.b16 %v341
  %v1491 = vunpack.c.l.b16 %v342
  %v1492 = vunpack.c.h.b16 %v342
  %v1493 = vunpack.c.l.b16 %v343
  %v1494 = vunpack.c.h.b16 %v343
  %v1495 = vunpack.c.l.b16 %v344
  %v1496 = vunpack.c.h.b16 %v344
  %v1497 = vunpack.c.l.b16 %v345
  %v1498 = vunpack.c.h.b16 %v345
  %v1499 = vunpack.c.l.b16 %v346
  %v1500 = vunpack.c.h.b16 %v346
  %v1501 = vunpack.c.l.b16 %v347
  %v1502 = vunpack.c.h.b16 %v347
  %v1503 = vunpack.c.l.b16 %v348
  %v1504 = vunpack.c.h.b16 %v348
  %v1505 = vunpack.c.l.b16 %v349
  %v1506 = vunpack.c.h.b16 %v349
  %v1507 = vunpack.c.l.b16 %v350
  %v1508 = vunpack.c.h.b16 %v350
  %v1509 = vunpack.c.l.b16 %v351
  %v1510 = vunpack.c.h.b16 %v351
  %v1511 = vunpack.c.l.b16 %v352
  %v1512 = vunpack.c.h.b16 %v352
  %v1513 = vunpack.c.l.b16 %v353
  %v1514 = vunpack.c.h.b16 %v353
  %v1515 = vunpack.c.l.b16 %v354
  %v1516 = vunpack.c.h.b16 %v354
  %v1517 = vunpack.c.l.b16 %v355
  %v1518 = vunpack.c.h.b16 %v355
  %v1519 = vunpack.c.l.b16 %v356
  %v1520 = vunpack.c.h.b16 %v356
  %v1521 = vunpack.c.l.b16 %v357
  %v1522 = vunpack.c.h.b16 %v357
  %v1523 = vunpack.c.l.b16 %v358
  %v1524 = vunpack.c.h.b16 %v358
  %v1525 = vunpack.c.l.b16 %v359
  %v1526 = vunpack.c.h.b16 %v359
  %v1527 = vunpack.c.l.b16 %v360
  %v1528 = vunpack.c.h.b16 %v360
  %v1529 = vunpack.c.l.b16 %v361
  %v1530 = vunpack.c.h.b16 %v361
  %v1531 = vunpack.c.l.b16 %v362
  %v1532 = vunpack.c.h.b16 %v362
  %v1533 = vunpack.c.l.b16 %v363
  %v1534 = vunpack.c.h.b16 %v363
  %v1535 = vunpack.c.l.b16 %v364
  %v1536 = vunpack.c.h.b16 %v364
  %v1537 = vunpack.c.l.b16 %v365
  %v1538 = vunpack.c.h.b16 %v365
  %v1539 = vunpack.c.l.b16 %v366
  %v1540 = vunpack.c.h.b16 %v366
  %v1541 = vunpack.c.l.b16 %v367
  %v1542 = vunpack.c.h.b16 %v367
  %v1543 = vunpack.c.l.b16 %v368
  %v1544 = vunpack.c.h.b16 %v368
  %v1545 = vunpack.c.l.b16 %v369
  %v1546 = vunpack.c.h.b16 %v369
  %v1547 = vunpack.c.l.b16 %v370
  %v1548 = vunpack.c.h.b16 %v370
  %v1549 = vunpack.c.l.b16 %v371
  %v1550 = vunpack.c.h.b16 %v371
  %v1551 = vunpack.c.l.b16 %v372
  %v1552 = vunpack.c.h.b16 %v372
  %v1553 = vunpack.c.l.b16 %v373
  %v1554 = vunpack.c.h.b16 %v373
  %v1555 = vunpack.c.l.b16 %v374
  %v1556 = vunpack.c.h.b16 %v374
  %v1557 = vunpack.c.l.b16 %v375
  %v1558 = vunpack.c.h.b16 %v375
  %v1559 = vunpack.c.l.b16 %v376
  %v1560 = vunpack.c.h.b16 %v376
  %v1561 = vunpack.c.l.b16 %v377
  %v1562 = vunpack.c.h.b16 %v377
  %v1563 = vunpack.c.l.b16 %v378
  %v1564 = vunpack.c.h.b16 %v378
  %v1565 = vunpack.c.l.b16 %v379
  %v1566 = vunpack.c.h.b16 %v379
  %v1567 = vunpack.c.l.b16 %v380
  %v1568 = vunpack.c.h.b16 %v380
  %v1569 = vunpack.c.l.b16 %v381
  %v1570 = vunpack.c.h.b16 %v381
  %v1571 = vunpack.c.l.b16 %v382
  %v1572 = vunpack.c.h.b16 %v382
  %v1573 = vunpack.c.l.b16 %v383
  %v1574 = vunpack.c.h.b16 %v383
  %v1575 = vunpack.c.l.b16 %v384
  %v1576 = vunpack.c.h.b16 %v384
  %v1577 = vunpack.c.l.b16 %v385
  %v1578 = vunpack.c.h.b16 %v385
  %v1579 = vunpack.c.l.b16 %v386
  %v1580 = vunpack.c.h.b16 %v386
  %v1581 = vunpack.c.l.b16 %v387
  %v1582 = vunpack.c.h.b16 %v387
  %v1583 = vunpack.c.l.b16 %v388
  %v1584 = vunpack.c.h.b16 %v388
  %v1585 = vunpack.c.l.b16 %v389
  %v1586 = vunpack.c.h.b16 %v389
  %v1587 = vunpack.c.l.b16 %v390
  %v1588 = vunpack.c.h.b16 %v390
  %v1589 = vunpack.c.l.b16 %v391
  %v1590 = vunpack.c.h.b16 %v391
  %v1591 = vunpack.c.l.b16 %v392
  %v1592 = vunpack.c.h.b16 %v392
  %v1593 = vunpack.c.l.b16 %v393
  %v1594 = vunpack.c.h.b16 %v393
  %v1595 = vunpack.c.l.b16 %v394
  %v1596 = vunpack.c.h.b16 %v394
  %v1597 = vunpack.c.l.b16 %v395
  %v1598 = vunpack.c.h.b16 %v395
  %v1599 = vunpack.c.l.b16 %v396
  %v1600 = vunpack.c.h.b16 %v396
  %v1601 = vunpack.c.l.b16 %v397
  %v1602 = vunpack.c.h.b16 %v397
  %v1603 = vunpack.c.l.b16 %v398
  %v1604 = vunpack.c.h.b16 %v398
  %v1605 = vunpack.c.l.b16 %v399
  %v1606 = vunpack.c.h.b16 %v399
  %v1607 = vunpack.c.l.b16 %v400
  %v1608 = vunpack.c.h.b16 %v400
  %v1609 = vunpack.c.l.b16 %v401
  %v1610 = vunpack.c.h.b16 %v401
  %v1611 = vunpack.c.l.b16 %v402
  %v1612 = vunpack.c.h.b16 %v402
  %v1613 = vunpack.c.l.b16 %v403
  %v1614 = vunpack.c.h.b16 %v403
  %v1615 = vunpack.c.l.b16 %v404
  %v1616 = vunpack.c.h.b16 %v404
  %v1617 = vunpack.c.l.b16 %v405
  %v1618 = vunpack.c.h.b16 %v405
  %v1619 = vunpack.c.l.b16 %v406
  %v1620 = vunpack.c.h.b16 %v406
  %v1621 = vunpack.c.l.b16 %v407
  %v1622 = vunpack.c.h.b16 %v407
  %v1623 = vunpack.c.l.b16 %v408
  %v1624 = vunpack.c.h.b16 %v408
  %v1625 = vunpack.c.l.b16 %v409
  %v1626 = vunpack.c.h.b16 %v409
  %v1627 = vunpack.c.l.b16 %v410
  %v1628 = vunpack.c.h.b16 %v410
  %v1629 = vunpack.c.l.b16 %v411
  %v1630 = vunpack.c.h.b16 %v411
  %v1631 = vunpack.c.l.b16 %v412
  %v1632 = vunpack.c.h.b16 %v412
  %v1633 = vunpack.c.l.b16 %v413
  %v1634 = vunpack.c.h.b16 %v413
  %v1635 = vunpack.c.l.b16 %v414
  %v1636 = vunpack.c.h.b16 %v414
  %v1637 = vunpack.c.l.b16 %v415
  %v1638 = vunpack.c.h.b16 %v415
  %v1639 = vunpack.c.l.b16 %v416
  %v1640 = vunpack.c.h.b16 %v416
  %v1641 = vunpack.c.l.b16 %v417
  %v1642 = vunpack.c.h.b16 %v417
  %v1643 = vunpack.c.l.b16 %v418
  %v1644 = vunpack.c.h.b16 %v418
  %v1645 = vunpack.c.l.b16 %v419
  %v1646 = vunpack.c.h.b16 %v419
  %v1647 = vunpack.c.l.b16 %v420
  %v1648 = vunpack.c.h.b16 %v420
  %v1649 = vunpack.c.l.b16 %v421
  %v1650 = vunpack.c.h.b16 %v421
  %v1651 = vunpack.c.l.b16 %v422
  %v1652 = vunpack.c.h.b16 %v422
  %v1653 = vunpack.c.l.b16 %v423
  %v1654 = vunpack.c.h.b16 %v423
  %v1655 = vpack.c.b16 %v875, %v871
  %v1656 = vpack.c.b16 %v876, %v872
  %v1657 = vpack.c.b16 %v877, %v873
  %v1658 = vpack.c.b16 %v878, %v874
  %v1659 = vpack.c.b16 %v883, %v879
  %v1660 = vpack.c.b16 %v884, %v880
  %v1661 = vpack.c.b16 %v885, %v881
  %v1662 = vpack.c.b16 %v886, %v882
  %v1663 = vpack.c.b16 %v891, %v887
  %v1664 = vpack.c.b16 %v892, %v888
  %v1665 = vpack.c.b16 %v893, %v889
  %v1666 = vpack.c.b16 %v894, %v890
  %v1667 = vpack.c.b16 %v899, %v895
  %v1668 = vpack.c.b16 %v900, %v896
  %v1669 = vpack.c.b16 %v901, %v897
  %v1670 = vpack.c.b16 %v902, %v898
  %v1671 = vpack.c.b16 %v907, %v903
  %v1672 = vpack.c.b16 %v908, %v904
  %v1673 = vpack.c.b16 %v909, %v905
  %v1674 = vpack.c.b16 %v910, %v906
  %v1675 = vpack.c.b16 %v915, %v911
  %v1676 = vpack.c.b16 %v916, %v912
  %v1677 = vpack.c.b16 %v917, %v913
  %v1678 = vpack.c.b16 %v918, %v914
  %v1679 = vpack.c.b16 %v923, %v919
  %v1680 = vpack.c.b16 %v924, %v920
  %v1681 = vpack.c.b16 %v925, %v921
  %v1682 = vpack.c.b16 %v926, %v922
  %v1683 = vpack.c.b16 %v931, %v927
  %v1684 = vpack.c.b16 %v932, %v928
  %v1685 = vpack.c.b16 %v933, %v929
  %v1686 = vpack.c.b16 %v934, %v930
  %v1687 = vpack.c.b16 %v939, %v935
  %v1688 = vpack.c.b16 %v940, %v936
  %v1689 = vpack.c.b16 %v941, %v937
  %v1690 = vpack.c.b16 %v942, %v938
  %v1691 = vpack.c.b16 %v947, %v943
  %v1692 = vpack.c.b16 %v948, %v944
  %v1693 = vpack.c.b16 %v949, %v945
  %v1694 = vpack.c.b16 %v950, %v946
  %v1695 = vpack.c.b16 %v955, %v951
  %v1696 = vpack.c.b16 %v956, %v952
  %v1697 = vpack.c.b16 %v957, %v953
  %v1698 = vpack.c.b16 %v958, %v954
  %v1699 = vpack.c.b16 %v963, %v959
  %v1700 = vpack.c.b16 %v964, %v960
  %v1701 = vpack.c.b16 %v965, %v961
  %v1702 = vpack.c.b16 %v966, %v962
  %v1703 = vpack.c.b16 %v971, %v967
  %v1704 = vpack.c.b16 %v972, %v968
  %v1705 = vpack.c.b16 %v973, %v969
  %v1706 = vpack.c.b16 %v974, %v970
  %v1707 = vpack.c.b16 %v979, %v975
  %v1708 = vpack.c.b16 %v980, %v976
  %v1709 = vpack.c.b16 %v981, %v977
  %v1710 = vpack.c.b16 %v982, %v978
  %v1711 = vpack.c.b16 %v987, %v983
  %v1712 = vpack.c.b16 %v988, %v984
  %v1713 = vpack.c.b16 %v989, %v985
  %v1714 = vpack.c.b16 %v990, %v986
  %v1715 = vpack.c.b16 %v995, %v991
  %v1716 = vpack.c.b16 %v996, %v992
  %v1717 = vpack.c.b16 %v997, %v993
  %v1718 = vpack.c.b16 %v998, %v994
  %v1719 = vpack.c.b16 %v1003, %v999
  %v1720 = vpack.c.b16 %v1004, %v1000
  %v1721 = vpack.c.b16 %v1005, %v1001
  %v1722 = vpack.c.b16 %v1006, %v1002
  %v1723 = vpack.c.b16 %v1011, %v1007
  %v1724 = vpack.c.b16 %v1012, %v1008
  %v1725 = vpack.c.b16 %v1013, %v1009
  %v1726 = vpack.c.b16 %v1014, %v1010
  %v1727 = vpack.c.b16 %v1019, %v1015
  %v1728 = vpack.c.b16 %v1020, %v1016
  %v1729 = vpack.c.b16 %v1021, %v1017
  %v1730 = vpack.c.b16 %v1022, %v1018
  %v1731 = vpack.c.b16 %v1027, %v1023
  %v1732 = vpack.c.b16 %v1028, %v1024
  %v1733 = vpack.c.b16 %v1029, %v1025
  %v1734 = vpack.c.b16 %v1030, %v1026
  %v1735 = vpack.c.b16 %v1035, %v1031
  %v1736 = vpack.c.b16 %v1036, %v1032
  %v1737 = vpack.c.b16 %v1037, %v1033
  %v1738 = vpack.c.b16 %v1038, %v1034
  %v1739 = vpack.c.b16 %v1043, %v1039
  %v1740 = vpack.c.b16 %v1044, %v1040
  %v1741 = vpack.c.b16 %v1045, %v1041
  %v1742 = vpack.c.b16 %v1046, %v1042
  %v1743 = vpack.c.b16 %v1051, %v1047
  %v1744 = vpack.c.b16 %v1052, %v1048
  %v1745 = vpack.c.b16 %v1053, %v1049
  %v1746 = vpack.c.b16 %v1054, %v1050
  %v1747 = vpack.c.b16 %v1059, %v1055
  %v1748 = vpack.c.b16 %v1060, %v1056
  %v1749 = vpack.c.b16 %v1061, %v1057
  %v1750 = vpack.c.b16 %v1062, %v1058
  %v1751 = vpack.c.b16 %v1067, %v1063
  %v1752 = vpack.c.b16 %v1068, %v1064
  %v1753 = vpack.c.b16 %v1069, %v1065
  %v1754 = vpack.c.b16 %v1070, %v1066
  %v1755 = vpack.c.b16 %v1075, %v1071
  %v1756 = vpack.c.b16 %v1076, %v1072
  %v1757 = vpack.c.b16 %v1077, %v1073
  %v1758 = vpack.c.b16 %v1078, %v1074
  %v1759 = vpack.c.b16 %v1083, %v1079
  %v1760 = vpack.c.b16 %v1084, %v1080
  %v1761 = vpack.c.b16 %v1085, %v1081
  %v1762 = vpack.c.b16 %v1086, %v1082
  %v1763 = vpack.c.b16 %v1091, %v1087
  %v1764 = vpack.c.b16 %v1092, %v1088
  %v1765 = vpack.c.b16 %v1093, %v1089
  %v1766 = vpack.c.b16 %v1094, %v1090
  %v1767 = vpack.c.b16 %v1099, %v1095
  %v1768 = vpack.c.b16 %v1100, %v1096
  %v1769 = vpack.c.b16 %v1101, %v1097
  %v1770 = vpack.c.b16 %v1102, %v1098
  %v1771 = vpack.c.b16 %v1107, %v1103
  %v1772 = vpack.c.b16 %v1108, %v1104
  %v1773 = vpack.c.b16 %v1109, %v1105
  %v1774 = vpack.c.b16 %v1110, %v1106
  %v1775 = vpack.c.b16 %v1115, %v1111
  %v1776 = vpack.c.b16 %v1116, %v1112
  %v1777 = vpack.c.b16 %v1117, %v1113
  %v1778 = vpack.c.b16 %v1118, %v1114
  %v1779 = vpack.c.b16 %v1123, %v1119
  %v1780 = vpack.c.b16 %v1124, %v1120
  %v1781 = vpack.c.b16 %v1125, %v1121
  %v1782 = vpack.c.b16 %v1126, %v1122
  %v1783 = vpack.c.b16 %v1131, %v1127
  %v1784 = vpack.c.b16 %v1132, %v1128
  %v1785 = vpack.c.b16 %v1133, %v1129
  %v1786 = vpack.c.b16 %v1134, %v1130
  %v1787 = vpack.c.b16 %v1139, %v1135
  %v1788 = vpack.c.b16 %v1140, %v1136
  %v1789 = vpack.c.b16 %v1141, %v1137
  %v1790 = vpack.c.b16 %v1142, %v1138
  %v1791 = vpack.c.b16 %v1147, %v1143
  %v1792 = vpack.c.b16 %v1148, %v1144
  %v1793 = vpack.c.b16 %v1149, %v1145
  %v1794 = vpack.c.b16 %v1150, %v1146
  %v1795 = vpack.c.b16 %v1155, %v1151
  %v1796 = vpack.c.b16 %v1156, %v1152
  %v1797 = vpack.c.b16 %v1157, %v1153
  %v1798 = vpack.c.b16 %v1158, %v1154
  %v1799 = vpack.c.b16 %v1163, %v1159
  %v1800 = vpack.c.b16 %v1164, %v1160
  %v1801 = vpack.c.b16 %v1165, %v1161
  %v1802 = vpack.c.b16 %v1166, %v1162
  %v1803 = vpack.c.b16 %v1171, %v1167
  %v1804 = vpack.c.b16 %v1172, %v1168
  %v1805 = vpack.c.b16 %v1173, %v1169
  %v1806 = vpack.c.b16 %v1174, %v1170
  %v1807 = vpack.c.b16 %v1179, %v1175
  %v1808 = vpack.c.b16 %v1180, %v1176
  %v1809 = vpack.c.b16 %v1181, %v1177
  %v1810 = vpack.c.b16 %v1182, %v1178
  %v1811 = vpack.c.b16 %v1187, %v1183
  %v1812 = vpack.c.b16 %v1188, %v1184
  %v1813 = vpack.c.b16 %v1189, %v1185
  %v1814 = vpack.c.b16 %v1190, %v1186
  %v1815 = vpack.c.b16 %v1195, %v1191
  %v1816 = vpack.c.b16 %v1196, %v1192
  %v1817 = vpack.c.b16 %v1197, %v1193
  %v1818 = vpack.c.b16 %v1198, %v1194
  %v1819 = vpack.c.b16 %v1203, %v1199
  %v1820 = vpack.c.b16 %v1204, %v1200
  %v1821 = vpack.c.b16 %v1205, %v1201
  %v1822 = vpack.c.b16 %v1206, %v1202
  %v1823 = vpack.c.b16 %v1211, %v1207
  %v1824 = vpack.c.b16 %v1212, %v1208
  %v1825 = vpack.c.b16 %v1213, %v1209
  %v1826 = vpack.c.b16 %v1214, %v1210
  %v1827 = vpack.c.b16 %v1219, %v1215
  %v1828 = vpack.c.b16 %v1220, %v1216
  %v1829 = vpack.c.b16 %v1221, %v1217
  %v1830 = vpack.c.b16 %v1222, %v1218
  %v1831 = vpack.c.b16 %v1227, %v1223
  %v1832 = vpack.c.b16 %v1228, %v1224
  %v1833 = vpack.c.b16 %v1229, %v1225
  %v1834 = vpack.c.b16 %v1230, %v1226
  %v1835 = vpack.c.b16 %v1235, %v1231
  %v1836 = vpack.c.b16 %v1236, %v1232
  %v1837 = vpack.c.b16 %v1237, %v1233
  %v1838 = vpack.c.b16 %v1238, %v1234
  %v1839 = vpack.c.b16 %v1243, %v1239
  %v1840 = vpack.c.b16 %v1244, %v1240
  %v1841 = vpack.c.b16 %v1245, %v1241
  %v1842 = vpack.c.b16 %v1246, %v1242
  %v1843 = vpack.c.b16 %v1251, %v1247
  %v1844 = vpack.c.b16 %v1252, %v1248
  %v1845 = vpack.c.b16 %v1253, %v1249
  %v1846 = vpack.c.b16 %v1254, %v1250
  %v1847 = vpack.c.b16 %v1259, %v1255
  %v1848 = vpack.c.b16 %v1260, %v1256
  %v1849 = vpack.c.b16 %v1261, %v1257
  %v1850 = vpack.c.b16 %v1262, %v1258
  %v1851 = vpack.c.b16 %v1267, %v1263
  %v1852 = vpack.c.b16 %v1268, %v1264
  %v1853 = vpack.c.b16 %v1269, %v1265
  %v1854 = vpack.c.b16 %v1270, %v1266
  %v1855 = vpack.c.b16 %v1275, %v1271
  %v1856 = vpack.c.b16 %v1276, %v1272
  %v1857 = vpack.c.b16 %v1277, %v1273
  %v1858 = vpack.c.b16 %v1278, %v1274
  %v1859 = vpack.c.b16 %v1283, %v1279
  %v1860 = vpack.c.b16 %v1284, %v1280
  %v1861 = vpack.c.b16 %v1285, %v1281
  %v1862 = vpack.c.b16 %v1286, %v1282
  %v1863 = vpack.c.b16 %v1291, %v1287
  %v1864 = vpack.c.b16 %v1292, %v1288
  %v1865 = vpack.c.b16 %v1293, %v1289
  %v1866 = vpack.c.b16 %v1294, %v1290
  %v1867 = vpack.c.b16 %v1299, %v1295
  %v1868 = vpack.c.b16 %v1300, %v1296
  %v1869 = vpack.c.b16 %v1301, %v1297
  %v1870 = vpack.c.b16 %v1302, %v1298
  %v1871 = vpack.c.b16 %v1307, %v1303
  %v1872 = vpack.c.b16 %v1308, %v1304
  %v1873 = vpack.c.b16 %v1309, %v1305
  %v1874 = vpack.c.b16 %v1310, %v1306
  %v1875 = vpack.c.b16 %v1315, %v1311
  %v1876 = vpack.c.b16 %v1316, %v1312
  %v1877 = vpack.c.b16 %v1317, %v1313
  %v1878 = vpack.c.b16 %v1318, %v1314
  %v1879 = vpack.c.b16 %v1323, %v1319
  %v1880 = vpack.c.b16 %v1324, %v1320
  %v1881 = vpack.c.b16 %v1325, %v1321
  %v1882 = vpack.c.b16 %v1326, %v1322
  %v1883 = vpack.c.b16 %v1331, %v1327
  %v1884 = vpack.c.b16 %v1332, %v1328
  %v1885 = vpack.c.b16 %v1333, %v1329
  %v1886 = vpack.c.b16 %v1334, %v1330
  %v1887 = vpack.c.b16 %v1339, %v1335
  %v1888 = vpack.c.b16 %v1340, %v1336
  %v1889 = vpack.c.b16 %v1341, %v1337
  %v1890 = vpack.c.b16 %v1342, %v1338
  %v1891 = vpack.c.b16 %v1347, %v1343
  %v1892 = vpack.c.b16 %v1348, %v1344
  %v1893 = vpack.c.b16 %v1349, %v1345
  %v1894 = vpack.c.b16 %v1350, %v1346
  %v1895 = vpack.c.b16 %v1355, %v1351
  %v1896 = vpack.c.b16 %v1356, %v1352
  %v1897 = vpack.c.b16 %v1357, %v1353
  %v1898 = vpack.c.b16 %v1358, %v1354
  %v1899 = vpack.c.b16 %v1363, %v1359
  %v1900 = vpack.c.b16 %v1364, %v1360
  %v1901 = vpack.c.b16 %v1365, %v1361
  %v1902 = vpack.c.b16 %v1366, %v1362
  %v1903 = vpack.c.b16 %v1371, %v1367
  %v1904 = vpack.c.b16 %v1372, %v1368
  %v1905 = vpack.c.b16 %v1373, %v1369
  %v1906 = vpack.c.b16 %v1374, %v1370
  %v1907 = vpack.c.b16 %v1379, %v1375
  %v1908 = vpack.c.b16 %v1380, %v1376
  %v1909 = vpack.c.b16 %v1381, %v1377
  %v1910 = vpack.c.b16 %v1382, %v1378
  %v1911 = vpack.c.b16 %v1387, %v1383
  %v1912 = vpack.c.b16 %v1388, %v1384
  %v1913 = vpack.c.b16 %v1389, %v1385
  %v1914 = vpack.c.b16 %v1390, %v1386
  %v1915 = vpack.c.b16 %v1395, %v1391
  %v1916 = vpack.c.b16 %v1396, %v1392
  %v1917 = vpack.c.b16 %v1397, %v1393
  %v1918 = vpack.c.b16 %v1398, %v1394
  %v1919 = vpack.c.b16 %v1403, %v1399
  %v1920 = vpack.c.b16 %v1404, %v1400
  %v1921 = vpack.c.b16 %v1405, %v1401
  %v1922 = vpack.c.b16 %v1406, %v1402
  %v1923 = vpack.c.b16 %v1411, %v1407
  %v1924 = vpack.c.b16 %v1412, %v1408
  %v1925 = vpack.c.b16 %v1413, %v1409
  %v1926 = vpack.c.b16 %v1414, %v1410
  %v1927 = vpack.c.b16 %v1419, %v1415
  %v1928 = vpack.c.b16 %v1420, %v1416
  %v1929 = vpack.c.b16 %v1421, %v1417
  %v1930 = vpack.c.b16 %v1422, %v1418
  %v1931 = vpack.c.b16 %v1427, %v1423
  %v1932 = vpack.c.b16 %v1428, %v1424
  %v1933 = vpack.c.b16 %v1429, %v1425
  %v1934 = vpack.c.b16 %v1430, %v1426
  %v1935 = vpack.c.b16 %v1435, %v1431
  %v1936 = vpack.c.b16 %v1436, %v1432
  %v1937 = vpack.c.b16 %v1437, %v1433
  %v1938 = vpack.c.b16 %v1438, %v1434
  %v1939 = vpack.c.b16 %v1443, %v1439
  %v1940 = vpack.c.b16 %v1444, %v1440
  %v1941 = vpack.c.b16 %v1445, %v1441
  %v1942 = vpack.c.b16 %v1446, %v1442
  %v1943 = vpack.c.b16 %v1451, %v1447
  %v1944 = vpack.c.b16 %v1452, %v1448
  %v1945 = vpack.c.b16 %v1453, %v1449
  %v1946 = vpack.c.b16 %v1454, %v1450
  %v1947 = vpack.c.b16 %v1459, %v1455
  %v1948 = vpack.c.b16 %v1460, %v1456
  %v1949 = vpack.c.b16 %v1461, %v1457
  %v1950 = vpack.c.b16 %v1462, %v1458
  %v1951 = vpack.c.b16 %v1467, %v1463
  %v1952 = vpack.c.b16 %v1468, %v1464
  %v1953 = vpack.c.b16 %v1469, %v1465
  %v1954 = vpack.c.b16 %v1470, %v1466
  %v1955 = vpack.c.b16 %v1475, %v1471
  %v1956 = vpack.c.b16 %v1476, %v1472
  %v1957 = vpack.c.b16 %v1477, %v1473
  %v1958 = vpack.c.b16 %v1478, %v1474
  %v1959 = vpack.c.b16 %v1483, %v1479
  %v1960 = vpack.c.b16 %v1484, %v1480
  %v1961 = vpack.c.b16 %v1485, %v1481
  %v1962 = vpack.c.b16 %v1486, %v1482
  %v1963 = vpack.c.b16 %v1491, %v1487
  %v1964 = vpack.c.b16 %v1492, %v1488
  %v1965 = vpack.c.b16 %v1493, %v1489
  %v1966 = vpack.c.b16 %v1494, %v1490
  %v1967 = vpack.c.b16 %v1499, %v1495
  %v1968 = vpack.c.b16 %v1500, %v1496
  %v1969 = vpack.c.b16 %v1501, %v1497
  %v1970 = vpack.c.b16 %v1502, %v1498
  %v1971 = vpack.c.b16 %v1507, %v1503
  %v1972 = vpack.c.b16 %v1508, %v1504
  %v1973 = vpack.c.b16 %v1509, %v1505
  %v1974 = vpack.c.b16 %v1510, %v1506
  %v1975 = vpack.c.b16 %v1515, %v1511
  %v1976 = vpack.c.b16 %v1516, %v1512
  %v1977 = vpack.c.b16 %v1517, %v1513
  %v1978 = vpack.c.b16 %v1518, %v1514
  %v1979 = vpack.c.b16 %v1523, %v1519
  %v1980 = vpack.c.b16 %v1524, %v1520
  %v1981 = vpack.c.b16 %v1525, %v1521
  %v1982 = vpack.c.b16 %v1526, %v1522
  %v1983 = vpack.c.b16 %v1531, %v1527
  %v1984 = vpack.c.b16 %v1532, %v1528
  %v1985 = vpack.c.b16 %v1533, %v1529
  %v1986 = vpack.c.b16 %v1534, %v1530
  %v1987 = vpack.c.b16 %v1539, %v1535
  %v1988 = vpack.c.b16 %v1540, %v1536
  %v1989 = vpack.c.b16 %v1541, %v1537
  %v1990 = vpack.c.b16 %v1542, %v1538
  %v1991 = vpack.c.b16 %v1547, %v1543
  %v1992 = vpack.c.b16 %v1548, %v1544
  %v1993 = vpack.c.b16 %v1549, %v1545
  %v1994 = vpack.c.b16 %v1550, %v1546
  %v1995 = vpack.c.b16 %v1555, %v1551
  %v1996 = vpack.c.b16 %v1556, %v1552
  %v1997 = vpack.c.b16 %v1557, %v1553
  %v1998 = vpack.c.b16 %v1558, %v1554
  %v1999 = vpack.c.b16 %v1563, %v1559
  %v2000 = vpack.c.b16 %v1564, %v1560
  %v2001 = vpack.c.b16 %v1565, %v1561
  %v2002 = vpack.c.b16 %v1566, %v1562
  %v2003 = vpack.c.b16 %v1571, %v1567
  %v2004 = vpack.c.b16 %v1572, %v1568
  %v2005 = vpack.c.b16 %v1573, %v1569
  %v2006 = vpack.c.b16 %v1574, %v1570
  %v2007 = vpack.c.b16 %v1579, %v1575
  %v2008 = vpack.c.b16 %v1580, %v1576
  %v2009 = vpack.c.b16 %v1581, %v1577
  %v2010 = vpack.c.b16 %v1582, %v1578
  %v2011 = vpack.c.b16 %v1587, %v1583
  %v2012 = vpack.c.b16 %v1588, %v1584
  %v2013 = vpack.c.b16 %v1589, %v1585
  %v2014 = vpack.c.b16 %v1590, %v1586
  %v2015 = vpack.c.b16 %v1595, %v1591
  %v2016 = vpack.c.b16 %v1596, %v1592
  %v2017 = vpack.c.b16 %v1597, %v1593
  %v2018 = vpack.c.b16 %v1598, %v1594
  %v2019 = vpack.c.b16 %v1603, %v1599
  %v2020 = vpack.c.b16 %v1604, %v1600
  %v2021 = vpack.c.b16 %v1605, %v1601
  %v2022 = vpack.c.b16 %v1606, %v1602
  %v2023 = vpack.c.b16 %v1611, %v1607
  %v2024 = vpack.c.b16 %v1612, %v1608
  %v2025 = vpack.c.b16 %v1613, %v1609
  %v2026 = vpack.c.b16 %v1614, %v1610
  %v2027 = vpack.c.b16 %v1619, %v1615
  %v2028 = vpack.c.b16 %v1620, %v1616
  %v2029 = vpack.c.b16 %v1621, %v1617
  %v2030 = vpack.c.b16 %v1622, %v1618
  %v2031 = vpack.c.b16 %v1627, %v1623
  %v2032 = vpack.c.b16 %v1628, %v1624
  %v2033 = vpack.c.b16 %v1629, %v1625
  %v2034 = vpack.c.b16 %v1630, %v1626
  %v2035 = vpack.c.b16 %v1635, %v1631
  %v2036 = vpack.c.b16 %v1636, %v1632
  %v2037 = vpack.c.b16 %v1637, %v1633
  %v2038 = vpack.c.b16 %v1638, %v1634
  %v2039 = vpack.c.b16 %v1643, %v1639
  %v2040 = vpack.c.b16 %v1644, %v1640
  %v2041 = vpack.c.b16 %v1645, %v1641
  %v2042 = vpack.c.b16 %v1646, %v1642
  %v2043 = vpack.c.b16 %v1651, %v1647
  %v2044 = vpack.c.b16 %v1652, %v1648
  %v2045 = vpack.c.b16 %v1653, %v1649
  %v2046 = vpack.c.b16 %v1654, %v1650
  %vm2439 = vcmask 261120
  %v2441 = vsel %vm2439, %v466, 0
  %2443 = vmatpush.bf16.msra.mxu0 %v1683
  %2444 = vmatpush.bf16.msra.mxu0 %v1679
  %2445 = vmatpush.bf16.msra.mxu0 %v1675
  %2446 = vmatpush.bf16.msra.mxu0 %v1671
  %2447 = vmatpush.bf16.msra.mxu0 %v1667
  %2448 = vmatpush.bf16.msra.mxu0 %v1663
  %2449 = vmatpush.bf16.msra.mxu0 %v1659
  %2450 = vmatpush.bf16.msra.mxu0 %v1655
  %2451 = vmatmul.bf16.gmra.mxu0 %v454
  %v2452 = vpop.f32.mrf.mxu0
  %v2453 = vadd.f32 %v426, %v2452
  %v2454 = vpop.f32.mrf.mxu0
  %2455 = vdwg.mxu0
  %2456 = vmatpush.bf16.msra.mxu0 %v1715
  %2457 = vmatpush.bf16.msra.mxu0 %v1711
  %2458 = vmatpush.bf16.msra.mxu0 %v1707
  %2459 = vmatpush.bf16.msra.mxu0 %v1703
  %2460 = vmatpush.bf16.msra.mxu0 %v1699
  %2461 = vmatpush.bf16.msra.mxu0 %v1695
  %2462 = vmatpush.bf16.msra.mxu0 %v1691
  %2463 = vmatpush.bf16.msra.mxu0 %v1687
  %2464 = vmatmul.bf16.gmra.mxu0 %v455
  %v2465 = vpop.f32.mrf.mxu0
  %v2466 = vadd.f32 %v2453, %v2465
  %v2467 = vpop.f32.mrf.mxu0
  %2468 = vdwg.mxu0
  %2469 = vmatpush.bf16.msra.mxu0 %v1747
  %2470 = vmatpush.bf16.msra.mxu0 %v1743
  %2471 = vmatpush.bf16.msra.mxu0 %v1739
  %2472 = vmatpush.bf16.msra.mxu0 %v1735
  %2473 = vmatpush.bf16.msra.mxu0 %v1731
  %2474 = vmatpush.bf16.msra.mxu0 %v1727
  %2475 = vmatpush.bf16.msra.mxu0 %v1723
  %2476 = vmatpush.bf16.msra.mxu0 %v1719
  %2477 = vmatmul.bf16.gmra.mxu0 %v456
  %v2478 = vpop.f32.mrf.mxu0
  %v2479 = vadd.f32 %v2466, %v2478
  %v2480 = vpop.f32.mrf.mxu0
  %2481 = vdwg.mxu0
  %2482 = vmatpush.bf16.msra.mxu0 %v1779
  %2483 = vmatpush.bf16.msra.mxu0 %v1775
  %2484 = vmatpush.bf16.msra.mxu0 %v1771
  %2485 = vmatpush.bf16.msra.mxu0 %v1767
  %2486 = vmatpush.bf16.msra.mxu0 %v1763
  %2487 = vmatpush.bf16.msra.mxu0 %v1759
  %2488 = vmatpush.bf16.msra.mxu0 %v1755
  %2489 = vmatpush.bf16.msra.mxu0 %v1751
  %2490 = vmatmul.bf16.gmra.mxu0 %v457
  %v2491 = vpop.f32.mrf.mxu0
  %v2492 = vadd.f32 %v2479, %v2491
  %v2493 = vpop.f32.mrf.mxu0
  %2494 = vdwg.mxu0
  %2495 = vmatpush.bf16.msra.mxu0 %v1811
  %2496 = vmatpush.bf16.msra.mxu0 %v1807
  %2497 = vmatpush.bf16.msra.mxu0 %v1803
  %2498 = vmatpush.bf16.msra.mxu0 %v1799
  %2499 = vmatpush.bf16.msra.mxu0 %v1795
  %2500 = vmatpush.bf16.msra.mxu0 %v1791
  %2501 = vmatpush.bf16.msra.mxu0 %v1787
  %2502 = vmatpush.bf16.msra.mxu0 %v1783
  %2503 = vmatmul.bf16.gmra.mxu0 %v458
  %v2504 = vpop.f32.mrf.mxu0
  %v2505 = vadd.f32 %v2492, %v2504
  %v2506 = vpop.f32.mrf.mxu0
  %2507 = vdwg.mxu0
  %2508 = vmatpush.bf16.msra.mxu0 %v1843
  %2509 = vmatpush.bf16.msra.mxu0 %v1839
  %2510 = vmatpush.bf16.msra.mxu0 %v1835
  %2511 = vmatpush.bf16.msra.mxu0 %v1831
  %2512 = vmatpush.bf16.msra.mxu0 %v1827
  %2513 = vmatpush.bf16.msra.mxu0 %v1823
  %2514 = vmatpush.bf16.msra.mxu0 %v1819
  %2515 = vmatpush.bf16.msra.mxu0 %v1815
  %2516 = vmatmul.bf16.gmra.mxu0 %v459
  %v2517 = vpop.f32.mrf.mxu0
  %v2518 = vadd.f32 %v2505, %v2517
  %v2519 = vpop.f32.mrf.mxu0
  %2520 = vdwg.mxu0
  %2521 = vmatpush.bf16.msra.mxu0 %v1875
  %2522 = vmatpush.bf16.msra.mxu0 %v1871
  %2523 = vmatpush.bf16.msra.mxu0 %v1867
  %2524 = vmatpush.bf16.msra.mxu0 %v1863
  %2525 = vmatpush.bf16.msra.mxu0 %v1859
  %2526 = vmatpush.bf16.msra.mxu0 %v1855
  %2527 = vmatpush.bf16.msra.mxu0 %v1851
  %2528 = vmatpush.bf16.msra.mxu0 %v1847
  %2529 = vmatmul.bf16.gmra.mxu0 %v460
  %v2530 = vpop.f32.mrf.mxu0
  %v2531 = vadd.f32 %v2518, %v2530
  %v2532 = vpop.f32.mrf.mxu0
  %2533 = vdwg.mxu0
  %2534 = vmatpush.bf16.msra.mxu0 %v1907
  %2535 = vmatpush.bf16.msra.mxu0 %v1903
  %2536 = vmatpush.bf16.msra.mxu0 %v1899
  %2537 = vmatpush.bf16.msra.mxu0 %v1895
  %2538 = vmatpush.bf16.msra.mxu0 %v1891
  %2539 = vmatpush.bf16.msra.mxu0 %v1887
  %2540 = vmatpush.bf16.msra.mxu0 %v1883
  %2541 = vmatpush.bf16.msra.mxu0 %v1879
  %2542 = vmatmul.bf16.gmra.mxu0 %v461
  %v2543 = vpop.f32.mrf.mxu0
  %v2544 = vadd.f32 %v2531, %v2543
  %v2545 = vpop.f32.mrf.mxu0
  %2546 = vdwg.mxu0
  %2547 = vmatpush.bf16.msra.mxu0 %v1939
  %2548 = vmatpush.bf16.msra.mxu0 %v1935
  %2549 = vmatpush.bf16.msra.mxu0 %v1931
  %2550 = vmatpush.bf16.msra.mxu0 %v1927
  %2551 = vmatpush.bf16.msra.mxu0 %v1923
  %2552 = vmatpush.bf16.msra.mxu0 %v1919
  %2553 = vmatpush.bf16.msra.mxu0 %v1915
  %2554 = vmatpush.bf16.msra.mxu0 %v1911
  %2555 = vmatmul.bf16.gmra.mxu0 %v462
  %v2556 = vpop.f32.mrf.mxu0
  %v2557 = vadd.f32 %v2544, %v2556
  %v2558 = vpop.f32.mrf.mxu0
  %2559 = vdwg.mxu0
  %2560 = vmatpush.bf16.msra.mxu0 %v1971
  %2561 = vmatpush.bf16.msra.mxu0 %v1967
  %2562 = vmatpush.bf16.msra.mxu0 %v1963
  %2563 = vmatpush.bf16.msra.mxu0 %v1959
  %2564 = vmatpush.bf16.msra.mxu0 %v1955
  %2565 = vmatpush.bf16.msra.mxu0 %v1951
  %2566 = vmatpush.bf16.msra.mxu0 %v1947
  %2567 = vmatpush.bf16.msra.mxu0 %v1943
  %2568 = vmatmul.bf16.gmra.mxu0 %v463
  %v2569 = vpop.f32.mrf.mxu0
  %v2570 = vadd.f32 %v2557, %v2569
  %v2571 = vpop.f32.mrf.mxu0
  %2572 = vdwg.mxu0
  %2573 = vmatpush.bf16.msra.mxu0 %v2003
  %2574 = vmatpush.bf16.msra.mxu0 %v1999
  %2575 = vmatpush.bf16.msra.mxu0 %v1995
  %2576 = vmatpush.bf16.msra.mxu0 %v1991
  %2577 = vmatpush.bf16.msra.mxu0 %v1987
  %2578 = vmatpush.bf16.msra.mxu0 %v1983
  %2579 = vmatpush.bf16.msra.mxu0 %v1979
  %2580 = vmatpush.bf16.msra.mxu0 %v1975
  %2581 = vmatmul.bf16.gmra.mxu0 %v464
  %v2582 = vpop.f32.mrf.mxu0
  %v2583 = vadd.f32 %v2570, %v2582
  %v2584 = vpop.f32.mrf.mxu0
  %2585 = vdwg.mxu0
  %2586 = vmatpush.bf16.msra.mxu0 %v2035
  %2587 = vmatpush.bf16.msra.mxu0 %v2031
  %2588 = vmatpush.bf16.msra.mxu0 %v2027
  %2589 = vmatpush.bf16.msra.mxu0 %v2023
  %2590 = vmatpush.bf16.msra.mxu0 %v2019
  %2591 = vmatpush.bf16.msra.mxu0 %v2015
  %2592 = vmatpush.bf16.msra.mxu0 %v2011
  %2593 = vmatpush.bf16.msra.mxu0 %v2007
  %2594 = vmatmul.bf16.gmra.mxu0 %v465
  %v2595 = vpop.f32.mrf.mxu0
  %v2596 = vadd.f32 %v2583, %v2595
  %v2597 = vpop.f32.mrf.mxu0
  %2598 = vdwg.mxu0
  %2599 = vmatpush.bf16.msra.mxu0 0
  %2600 = vmatpush.bf16.msra.mxu0 0
  %2601 = vmatpush.bf16.msra.mxu0 0
  %2602 = vmatpush.bf16.msra.mxu0 0
  %2603 = vmatpush.bf16.msra.mxu0 0
  %2604 = vmatpush.bf16.msra.mxu0 0
  %2605 = vmatpush.bf16.msra.mxu0 %v2043
  %2606 = vmatpush.bf16.msra.mxu0 %v2039
  %2607 = vmatmul.bf16.gmra.mxu0 %v2441
  %v2608 = vpop.f32.mrf.mxu0
  %v2609 = vadd.f32 %v2596, %v2608
  %v2610 = vpop.f32.mrf.mxu0
  %2611 = vdwg.mxu0
  %2612 = vmatpush.bf16.msra.mxu0 %v1684
  %2613 = vmatpush.bf16.msra.mxu0 %v1680
  %2614 = vmatpush.bf16.msra.mxu0 %v1676
  %2615 = vmatpush.bf16.msra.mxu0 %v1672
  %2616 = vmatpush.bf16.msra.mxu0 %v1668
  %2617 = vmatpush.bf16.msra.mxu0 %v1664
  %2618 = vmatpush.bf16.msra.mxu0 %v1660
  %2619 = vmatpush.bf16.msra.mxu0 %v1656
  %2620 = vmatmul.bf16.gmra.mxu0 %v454
  %v2621 = vpop.f32.mrf.mxu0
  %v2622 = vadd.f32 %v427, %v2621
  %v2623 = vpop.f32.mrf.mxu0
  %2624 = vdwg.mxu0
  %2625 = vmatpush.bf16.msra.mxu0 %v1716
  %2626 = vmatpush.bf16.msra.mxu0 %v1712
  %2627 = vmatpush.bf16.msra.mxu0 %v1708
  %2628 = vmatpush.bf16.msra.mxu0 %v1704
  %2629 = vmatpush.bf16.msra.mxu0 %v1700
  %2630 = vmatpush.bf16.msra.mxu0 %v1696
  %2631 = vmatpush.bf16.msra.mxu0 %v1692
  %2632 = vmatpush.bf16.msra.mxu0 %v1688
  %2633 = vmatmul.bf16.gmra.mxu0 %v455
  %v2634 = vpop.f32.mrf.mxu0
  %v2635 = vadd.f32 %v2622, %v2634
  %v2636 = vpop.f32.mrf.mxu0
  %2637 = vdwg.mxu0
  %2638 = vmatpush.bf16.msra.mxu0 %v1748
  %2639 = vmatpush.bf16.msra.mxu0 %v1744
  %2640 = vmatpush.bf16.msra.mxu0 %v1740
  %2641 = vmatpush.bf16.msra.mxu0 %v1736
  %2642 = vmatpush.bf16.msra.mxu0 %v1732
  %2643 = vmatpush.bf16.msra.mxu0 %v1728
  %2644 = vmatpush.bf16.msra.mxu0 %v1724
  %2645 = vmatpush.bf16.msra.mxu0 %v1720
  %2646 = vmatmul.bf16.gmra.mxu0 %v456
  %v2647 = vpop.f32.mrf.mxu0
  %v2648 = vadd.f32 %v2635, %v2647
  %v2649 = vpop.f32.mrf.mxu0
  %2650 = vdwg.mxu0
  %2651 = vmatpush.bf16.msra.mxu0 %v1780
  %2652 = vmatpush.bf16.msra.mxu0 %v1776
  %2653 = vmatpush.bf16.msra.mxu0 %v1772
  %2654 = vmatpush.bf16.msra.mxu0 %v1768
  %2655 = vmatpush.bf16.msra.mxu0 %v1764
  %2656 = vmatpush.bf16.msra.mxu0 %v1760
  %2657 = vmatpush.bf16.msra.mxu0 %v1756
  %2658 = vmatpush.bf16.msra.mxu0 %v1752
  %2659 = vmatmul.bf16.gmra.mxu0 %v457
  %v2660 = vpop.f32.mrf.mxu0
  %v2661 = vadd.f32 %v2648, %v2660
  %v2662 = vpop.f32.mrf.mxu0
  %2663 = vdwg.mxu0
  %2664 = vmatpush.bf16.msra.mxu0 %v1812
  %2665 = vmatpush.bf16.msra.mxu0 %v1808
  %2666 = vmatpush.bf16.msra.mxu0 %v1804
  %2667 = vmatpush.bf16.msra.mxu0 %v1800
  %2668 = vmatpush.bf16.msra.mxu0 %v1796
  %2669 = vmatpush.bf16.msra.mxu0 %v1792
  %2670 = vmatpush.bf16.msra.mxu0 %v1788
  %2671 = vmatpush.bf16.msra.mxu0 %v1784
  %2672 = vmatmul.bf16.gmra.mxu0 %v458
  %v2673 = vpop.f32.mrf.mxu0
  %v2674 = vadd.f32 %v2661, %v2673
  %v2675 = vpop.f32.mrf.mxu0
  %2676 = vdwg.mxu0
  %2677 = vmatpush.bf16.msra.mxu0 %v1844
  %2678 = vmatpush.bf16.msra.mxu0 %v1840
  %2679 = vmatpush.bf16.msra.mxu0 %v1836
  %2680 = vmatpush.bf16.msra.mxu0 %v1832
  %2681 = vmatpush.bf16.msra.mxu0 %v1828
  %2682 = vmatpush.bf16.msra.mxu0 %v1824
  %2683 = vmatpush.bf16.msra.mxu0 %v1820
  %2684 = vmatpush.bf16.msra.mxu0 %v1816
  %2685 = vmatmul.bf16.gmra.mxu0 %v459
  %v2686 = vpop.f32.mrf.mxu0
  %v2687 = vadd.f32 %v2674, %v2686
  %v2688 = vpop.f32.mrf.mxu0
  %2689 = vdwg.mxu0
  %2690 = vmatpush.bf16.msra.mxu0 %v1876
  %2691 = vmatpush.bf16.msra.mxu0 %v1872
  %2692 = vmatpush.bf16.msra.mxu0 %v1868
  %2693 = vmatpush.bf16.msra.mxu0 %v1864
  %2694 = vmatpush.bf16.msra.mxu0 %v1860
  %2695 = vmatpush.bf16.msra.mxu0 %v1856
  %2696 = vmatpush.bf16.msra.mxu0 %v1852
  %2697 = vmatpush.bf16.msra.mxu0 %v1848
  %2698 = vmatmul.bf16.gmra.mxu0 %v460
  %v2699 = vpop.f32.mrf.mxu0
  %v2700 = vadd.f32 %v2687, %v2699
  %v2701 = vpop.f32.mrf.mxu0
  %2702 = vdwg.mxu0
  %2703 = vmatpush.bf16.msra.mxu0 %v1908
  %2704 = vmatpush.bf16.msra.mxu0 %v1904
  %2705 = vmatpush.bf16.msra.mxu0 %v1900
  %2706 = vmatpush.bf16.msra.mxu0 %v1896
  %2707 = vmatpush.bf16.msra.mxu0 %v1892
  %2708 = vmatpush.bf16.msra.mxu0 %v1888
  %2709 = vmatpush.bf16.msra.mxu0 %v1884
  %2710 = vmatpush.bf16.msra.mxu0 %v1880
  %2711 = vmatmul.bf16.gmra.mxu0 %v461
  %v2712 = vpop.f32.mrf.mxu0
  %v2713 = vadd.f32 %v2700, %v2712
  %v2714 = vpop.f32.mrf.mxu0
  %2715 = vdwg.mxu0
  %2716 = vmatpush.bf16.msra.mxu0 %v1940
  %2717 = vmatpush.bf16.msra.mxu0 %v1936
  %2718 = vmatpush.bf16.msra.mxu0 %v1932
  %2719 = vmatpush.bf16.msra.mxu0 %v1928
  %2720 = vmatpush.bf16.msra.mxu0 %v1924
  %2721 = vmatpush.bf16.msra.mxu0 %v1920
  %2722 = vmatpush.bf16.msra.mxu0 %v1916
  %2723 = vmatpush.bf16.msra.mxu0 %v1912
  %2724 = vmatmul.bf16.gmra.mxu0 %v462
  %v2725 = vpop.f32.mrf.mxu0
  %v2726 = vadd.f32 %v2713, %v2725
  %v2727 = vpop.f32.mrf.mxu0
  %2728 = vdwg.mxu0
  %2729 = vmatpush.bf16.msra.mxu0 %v1972
  %2730 = vmatpush.bf16.msra.mxu0 %v1968
  %2731 = vmatpush.bf16.msra.mxu0 %v1964
  %2732 = vmatpush.bf16.msra.mxu0 %v1960
  %2733 = vmatpush.bf16.msra.mxu0 %v1956
  %2734 = vmatpush.bf16.msra.mxu0 %v1952
  %2735 = vmatpush.bf16.msra.mxu0 %v1948
  %2736 = vmatpush.bf16.msra.mxu0 %v1944
  %2737 = vmatmul.bf16.gmra.mxu0 %v463
  %v2738 = vpop.f32.mrf.mxu0
  %v2739 = vadd.f32 %v2726, %v2738
  %v2740 = vpop.f32.mrf.mxu0
  %2741 = vdwg.mxu0
  %2742 = vmatpush.bf16.msra.mxu0 %v2004
  %2743 = vmatpush.bf16.msra.mxu0 %v2000
  %2744 = vmatpush.bf16.msra.mxu0 %v1996
  %2745 = vmatpush.bf16.msra.mxu0 %v1992
  %2746 = vmatpush.bf16.msra.mxu0 %v1988
  %2747 = vmatpush.bf16.msra.mxu0 %v1984
  %2748 = vmatpush.bf16.msra.mxu0 %v1980
  %2749 = vmatpush.bf16.msra.mxu0 %v1976
  %2750 = vmatmul.bf16.gmra.mxu0 %v464
  %v2751 = vpop.f32.mrf.mxu0
  %v2752 = vadd.f32 %v2739, %v2751
  %v2753 = vpop.f32.mrf.mxu0
  %2754 = vdwg.mxu0
  %2755 = vmatpush.bf16.msra.mxu0 %v2036
  %2756 = vmatpush.bf16.msra.mxu0 %v2032
  %2757 = vmatpush.bf16.msra.mxu0 %v2028
  %2758 = vmatpush.bf16.msra.mxu0 %v2024
  %2759 = vmatpush.bf16.msra.mxu0 %v2020
  %2760 = vmatpush.bf16.msra.mxu0 %v2016
  %2761 = vmatpush.bf16.msra.mxu0 %v2012
  %2762 = vmatpush.bf16.msra.mxu0 %v2008
  %2763 = vmatmul.bf16.gmra.mxu0 %v465
  %v2764 = vpop.f32.mrf.mxu0
  %v2765 = vadd.f32 %v2752, %v2764
  %v2766 = vpop.f32.mrf.mxu0
  %2767 = vdwg.mxu0
  %2768 = vmatpush.bf16.msra.mxu0 0
  %2769 = vmatpush.bf16.msra.mxu0 0
  %2770 = vmatpush.bf16.msra.mxu0 0
  %2771 = vmatpush.bf16.msra.mxu0 0
  %2772 = vmatpush.bf16.msra.mxu0 0
  %2773 = vmatpush.bf16.msra.mxu0 0
  %2774 = vmatpush.bf16.msra.mxu0 %v2044
  %2775 = vmatpush.bf16.msra.mxu0 %v2040
  %2776 = vmatmul.bf16.gmra.mxu0 %v2441
  %v2777 = vpop.f32.mrf.mxu0
  %v2778 = vadd.f32 %v2765, %v2777
  %v2779 = vpop.f32.mrf.mxu0
  %2780 = vdwg.mxu0
  %2781 = vmatpush.bf16.msra.mxu0 %v1685
  %2782 = vmatpush.bf16.msra.mxu0 %v1681
  %2783 = vmatpush.bf16.msra.mxu0 %v1677
  %2784 = vmatpush.bf16.msra.mxu0 %v1673
  %2785 = vmatpush.bf16.msra.mxu0 %v1669
  %2786 = vmatpush.bf16.msra.mxu0 %v1665
  %2787 = vmatpush.bf16.msra.mxu0 %v1661
  %2788 = vmatpush.bf16.msra.mxu0 %v1657
  %2789 = vmatmul.bf16.gmra.mxu0 %v454
  %v2790 = vpop.f32.mrf.mxu0
  %v2791 = vadd.f32 %v428, %v2790
  %v2792 = vpop.f32.mrf.mxu0
  %2793 = vdwg.mxu0
  %2794 = vmatpush.bf16.msra.mxu0 %v1717
  %2795 = vmatpush.bf16.msra.mxu0 %v1713
  %2796 = vmatpush.bf16.msra.mxu0 %v1709
  %2797 = vmatpush.bf16.msra.mxu0 %v1705
  %2798 = vmatpush.bf16.msra.mxu0 %v1701
  %2799 = vmatpush.bf16.msra.mxu0 %v1697
  %2800 = vmatpush.bf16.msra.mxu0 %v1693
  %2801 = vmatpush.bf16.msra.mxu0 %v1689
  %2802 = vmatmul.bf16.gmra.mxu0 %v455
  %v2803 = vpop.f32.mrf.mxu0
  %v2804 = vadd.f32 %v2791, %v2803
  %v2805 = vpop.f32.mrf.mxu0
  %2806 = vdwg.mxu0
  %2807 = vmatpush.bf16.msra.mxu0 %v1749
  %2808 = vmatpush.bf16.msra.mxu0 %v1745
  %2809 = vmatpush.bf16.msra.mxu0 %v1741
  %2810 = vmatpush.bf16.msra.mxu0 %v1737
  %2811 = vmatpush.bf16.msra.mxu0 %v1733
  %2812 = vmatpush.bf16.msra.mxu0 %v1729
  %2813 = vmatpush.bf16.msra.mxu0 %v1725
  %2814 = vmatpush.bf16.msra.mxu0 %v1721
  %2815 = vmatmul.bf16.gmra.mxu0 %v456
  %v2816 = vpop.f32.mrf.mxu0
  %v2817 = vadd.f32 %v2804, %v2816
  %v2818 = vpop.f32.mrf.mxu0
  %2819 = vdwg.mxu0
  %2820 = vmatpush.bf16.msra.mxu0 %v1781
  %2821 = vmatpush.bf16.msra.mxu0 %v1777
  %2822 = vmatpush.bf16.msra.mxu0 %v1773
  %2823 = vmatpush.bf16.msra.mxu0 %v1769
  %2824 = vmatpush.bf16.msra.mxu0 %v1765
  %2825 = vmatpush.bf16.msra.mxu0 %v1761
  %2826 = vmatpush.bf16.msra.mxu0 %v1757
  %2827 = vmatpush.bf16.msra.mxu0 %v1753
  %2828 = vmatmul.bf16.gmra.mxu0 %v457
  %v2829 = vpop.f32.mrf.mxu0
  %v2830 = vadd.f32 %v2817, %v2829
  %v2831 = vpop.f32.mrf.mxu0
  %2832 = vdwg.mxu0
  %2833 = vmatpush.bf16.msra.mxu0 %v1813
  %2834 = vmatpush.bf16.msra.mxu0 %v1809
  %2835 = vmatpush.bf16.msra.mxu0 %v1805
  %2836 = vmatpush.bf16.msra.mxu0 %v1801
  %2837 = vmatpush.bf16.msra.mxu0 %v1797
  %2838 = vmatpush.bf16.msra.mxu0 %v1793
  %2839 = vmatpush.bf16.msra.mxu0 %v1789
  %2840 = vmatpush.bf16.msra.mxu0 %v1785
  %2841 = vmatmul.bf16.gmra.mxu0 %v458
  %v2842 = vpop.f32.mrf.mxu0
  %v2843 = vadd.f32 %v2830, %v2842
  %v2844 = vpop.f32.mrf.mxu0
  %2845 = vdwg.mxu0
  %2846 = vmatpush.bf16.msra.mxu0 %v1845
  %2847 = vmatpush.bf16.msra.mxu0 %v1841
  %2848 = vmatpush.bf16.msra.mxu0 %v1837
  %2849 = vmatpush.bf16.msra.mxu0 %v1833
  %2850 = vmatpush.bf16.msra.mxu0 %v1829
  %2851 = vmatpush.bf16.msra.mxu0 %v1825
  %2852 = vmatpush.bf16.msra.mxu0 %v1821
  %2853 = vmatpush.bf16.msra.mxu0 %v1817
  %2854 = vmatmul.bf16.gmra.mxu0 %v459
  %v2855 = vpop.f32.mrf.mxu0
  %v2856 = vadd.f32 %v2843, %v2855
  %v2857 = vpop.f32.mrf.mxu0
  %2858 = vdwg.mxu0
  %2859 = vmatpush.bf16.msra.mxu0 %v1877
  %2860 = vmatpush.bf16.msra.mxu0 %v1873
  %2861 = vmatpush.bf16.msra.mxu0 %v1869
  %2862 = vmatpush.bf16.msra.mxu0 %v1865
  %2863 = vmatpush.bf16.msra.mxu0 %v1861
  %2864 = vmatpush.bf16.msra.mxu0 %v1857
  %2865 = vmatpush.bf16.msra.mxu0 %v1853
  %2866 = vmatpush.bf16.msra.mxu0 %v1849
  %2867 = vmatmul.bf16.gmra.mxu0 %v460
  %v2868 = vpop.f32.mrf.mxu0
  %v2869 = vadd.f32 %v2856, %v2868
  %v2870 = vpop.f32.mrf.mxu0
  %2871 = vdwg.mxu0
  %2872 = vmatpush.bf16.msra.mxu0 %v1909
  %2873 = vmatpush.bf16.msra.mxu0 %v1905
  %2874 = vmatpush.bf16.msra.mxu0 %v1901
  %2875 = vmatpush.bf16.msra.mxu0 %v1897
  %2876 = vmatpush.bf16.msra.mxu0 %v1893
  %2877 = vmatpush.bf16.msra.mxu0 %v1889
  %2878 = vmatpush.bf16.msra.mxu0 %v1885
  %2879 = vmatpush.bf16.msra.mxu0 %v1881
  %2880 = vmatmul.bf16.gmra.mxu0 %v461
  %v2881 = vpop.f32.mrf.mxu0
  %v2882 = vadd.f32 %v2869, %v2881
  %v2883 = vpop.f32.mrf.mxu0
  %2884 = vdwg.mxu0
  %2885 = vmatpush.bf16.msra.mxu0 %v1941
  %2886 = vmatpush.bf16.msra.mxu0 %v1937
  %2887 = vmatpush.bf16.msra.mxu0 %v1933
  %2888 = vmatpush.bf16.msra.mxu0 %v1929
  %2889 = vmatpush.bf16.msra.mxu0 %v1925
  %2890 = vmatpush.bf16.msra.mxu0 %v1921
  %2891 = vmatpush.bf16.msra.mxu0 %v1917
  %2892 = vmatpush.bf16.msra.mxu0 %v1913
  %2893 = vmatmul.bf16.gmra.mxu0 %v462
  %v2894 = vpop.f32.mrf.mxu0
  %v2895 = vadd.f32 %v2882, %v2894
  %v2896 = vpop.f32.mrf.mxu0
  %2897 = vdwg.mxu0
  %2898 = vmatpush.bf16.msra.mxu0 %v1973
  %2899 = vmatpush.bf16.msra.mxu0 %v1969
  %2900 = vmatpush.bf16.msra.mxu0 %v1965
  %2901 = vmatpush.bf16.msra.mxu0 %v1961
  %2902 = vmatpush.bf16.msra.mxu0 %v1957
  %2903 = vmatpush.bf16.msra.mxu0 %v1953
  %2904 = vmatpush.bf16.msra.mxu0 %v1949
  %2905 = vmatpush.bf16.msra.mxu0 %v1945
  %2906 = vmatmul.bf16.gmra.mxu0 %v463
  %v2907 = vpop.f32.mrf.mxu0
  %v2908 = vadd.f32 %v2895, %v2907
  %v2909 = vpop.f32.mrf.mxu0
  %2910 = vdwg.mxu0
  %2911 = vmatpush.bf16.msra.mxu0 %v2005
  %2912 = vmatpush.bf16.msra.mxu0 %v2001
  %2913 = vmatpush.bf16.msra.mxu0 %v1997
  %2914 = vmatpush.bf16.msra.mxu0 %v1993
  %2915 = vmatpush.bf16.msra.mxu0 %v1989
  %2916 = vmatpush.bf16.msra.mxu0 %v1985
  %2917 = vmatpush.bf16.msra.mxu0 %v1981
  %2918 = vmatpush.bf16.msra.mxu0 %v1977
  %2919 = vmatmul.bf16.gmra.mxu0 %v464
  %v2920 = vpop.f32.mrf.mxu0
  %v2921 = vadd.f32 %v2908, %v2920
  %v2922 = vpop.f32.mrf.mxu0
  %2923 = vdwg.mxu0
  %2924 = vmatpush.bf16.msra.mxu0 %v2037
  %2925 = vmatpush.bf16.msra.mxu0 %v2033
  %2926 = vmatpush.bf16.msra.mxu0 %v2029
  %2927 = vmatpush.bf16.msra.mxu0 %v2025
  %2928 = vmatpush.bf16.msra.mxu0 %v2021
  %2929 = vmatpush.bf16.msra.mxu0 %v2017
  %2930 = vmatpush.bf16.msra.mxu0 %v2013
  %2931 = vmatpush.bf16.msra.mxu0 %v2009
  %2932 = vmatmul.bf16.gmra.mxu0 %v465
  %v2933 = vpop.f32.mrf.mxu0
  %v2934 = vadd.f32 %v2921, %v2933
  %v2935 = vpop.f32.mrf.mxu0
  %2936 = vdwg.mxu0
  %2937 = vmatpush.bf16.msra.mxu0 0
  %2938 = vmatpush.bf16.msra.mxu0 0
  %2939 = vmatpush.bf16.msra.mxu0 0
  %2940 = vmatpush.bf16.msra.mxu0 0
  %2941 = vmatpush.bf16.msra.mxu0 0
  %2942 = vmatpush.bf16.msra.mxu0 0
  %2943 = vmatpush.bf16.msra.mxu0 %v2045
  %2944 = vmatpush.bf16.msra.mxu0 %v2041
  %2945 = vmatmul.bf16.gmra.mxu0 %v2441
  %v2946 = vpop.f32.mrf.mxu0
  %v2947 = vadd.f32 %v2934, %v2946
  %v2948 = vpop.f32.mrf.mxu0
  %2949 = vdwg.mxu0
  %2950 = vmatpush.bf16.msra.mxu0 %v1686
  %2951 = vmatpush.bf16.msra.mxu0 %v1682
  %2952 = vmatpush.bf16.msra.mxu0 %v1678
  %2953 = vmatpush.bf16.msra.mxu0 %v1674
  %2954 = vmatpush.bf16.msra.mxu0 %v1670
  %2955 = vmatpush.bf16.msra.mxu0 %v1666
  %2956 = vmatpush.bf16.msra.mxu0 %v1662
  %2957 = vmatpush.bf16.msra.mxu0 %v1658
  %2958 = vmatmul.bf16.gmra.mxu0 %v454
  %v2959 = vpop.f32.mrf.mxu0
  %v2960 = vadd.f32 %v429, %v2959
  %v2961 = vpop.f32.mrf.mxu0
  %2962 = vdwg.mxu0
  %2963 = vmatpush.bf16.msra.mxu0 %v1718
  %2964 = vmatpush.bf16.msra.mxu0 %v1714
  %2965 = vmatpush.bf16.msra.mxu0 %v1710
  %2966 = vmatpush.bf16.msra.mxu0 %v1706
  %2967 = vmatpush.bf16.msra.mxu0 %v1702
  %2968 = vmatpush.bf16.msra.mxu0 %v1698
  %2969 = vmatpush.bf16.msra.mxu0 %v1694
  %2970 = vmatpush.bf16.msra.mxu0 %v1690
  %2971 = vmatmul.bf16.gmra.mxu0 %v455
  %v2972 = vpop.f32.mrf.mxu0
  %v2973 = vadd.f32 %v2960, %v2972
  %v2974 = vpop.f32.mrf.mxu0
  %2975 = vdwg.mxu0
  %2976 = vmatpush.bf16.msra.mxu0 %v1750
  %2977 = vmatpush.bf16.msra.mxu0 %v1746
  %2978 = vmatpush.bf16.msra.mxu0 %v1742
  %2979 = vmatpush.bf16.msra.mxu0 %v1738
  %2980 = vmatpush.bf16.msra.mxu0 %v1734
  %2981 = vmatpush.bf16.msra.mxu0 %v1730
  %2982 = vmatpush.bf16.msra.mxu0 %v1726
  %2983 = vmatpush.bf16.msra.mxu0 %v1722
  %2984 = vmatmul.bf16.gmra.mxu0 %v456
  %v2985 = vpop.f32.mrf.mxu0
  %v2986 = vadd.f32 %v2973, %v2985
  %v2987 = vpop.f32.mrf.mxu0
  %2988 = vdwg.mxu0
  %2989 = vmatpush.bf16.msra.mxu0 %v1782
  %2990 = vmatpush.bf16.msra.mxu0 %v1778
  %2991 = vmatpush.bf16.msra.mxu0 %v1774
  %2992 = vmatpush.bf16.msra.mxu0 %v1770
  %2993 = vmatpush.bf16.msra.mxu0 %v1766
  %2994 = vmatpush.bf16.msra.mxu0 %v1762
  %2995 = vmatpush.bf16.msra.mxu0 %v1758
  %2996 = vmatpush.bf16.msra.mxu0 %v1754
  %2997 = vmatmul.bf16.gmra.mxu0 %v457
  %v2998 = vpop.f32.mrf.mxu0
  %v2999 = vadd.f32 %v2986, %v2998
  %v3000 = vpop.f32.mrf.mxu0
  %3001 = vdwg.mxu0
  %3002 = vmatpush.bf16.msra.mxu0 %v1814
  %3003 = vmatpush.bf16.msra.mxu0 %v1810
  %3004 = vmatpush.bf16.msra.mxu0 %v1806
  %3005 = vmatpush.bf16.msra.mxu0 %v1802
  %3006 = vmatpush.bf16.msra.mxu0 %v1798
  %3007 = vmatpush.bf16.msra.mxu0 %v1794
  %3008 = vmatpush.bf16.msra.mxu0 %v1790
  %3009 = vmatpush.bf16.msra.mxu0 %v1786
  %3010 = vmatmul.bf16.gmra.mxu0 %v458
  %v3011 = vpop.f32.mrf.mxu0
  %v3012 = vadd.f32 %v2999, %v3011
  %v3013 = vpop.f32.mrf.mxu0
  %3014 = vdwg.mxu0
  %3015 = vmatpush.bf16.msra.mxu0 %v1846
  %3016 = vmatpush.bf16.msra.mxu0 %v1842
  %3017 = vmatpush.bf16.msra.mxu0 %v1838
  %3018 = vmatpush.bf16.msra.mxu0 %v1834
  %3019 = vmatpush.bf16.msra.mxu0 %v1830
  %3020 = vmatpush.bf16.msra.mxu0 %v1826
  %3021 = vmatpush.bf16.msra.mxu0 %v1822
  %3022 = vmatpush.bf16.msra.mxu0 %v1818
  %3023 = vmatmul.bf16.gmra.mxu0 %v459
  %v3024 = vpop.f32.mrf.mxu0
  %v3025 = vadd.f32 %v3012, %v3024
  %v3026 = vpop.f32.mrf.mxu0
  %3027 = vdwg.mxu0
  %3028 = vmatpush.bf16.msra.mxu0 %v1878
  %3029 = vmatpush.bf16.msra.mxu0 %v1874
  %3030 = vmatpush.bf16.msra.mxu0 %v1870
  %3031 = vmatpush.bf16.msra.mxu0 %v1866
  %3032 = vmatpush.bf16.msra.mxu0 %v1862
  %3033 = vmatpush.bf16.msra.mxu0 %v1858
  %3034 = vmatpush.bf16.msra.mxu0 %v1854
  %3035 = vmatpush.bf16.msra.mxu0 %v1850
  %3036 = vmatmul.bf16.gmra.mxu0 %v460
  %v3037 = vpop.f32.mrf.mxu0
  %v3038 = vadd.f32 %v3025, %v3037
  %v3039 = vpop.f32.mrf.mxu0
  %3040 = vdwg.mxu0
  %3041 = vmatpush.bf16.msra.mxu0 %v1910
  %3042 = vmatpush.bf16.msra.mxu0 %v1906
  %3043 = vmatpush.bf16.msra.mxu0 %v1902
  %3044 = vmatpush.bf16.msra.mxu0 %v1898
  %3045 = vmatpush.bf16.msra.mxu0 %v1894
  %3046 = vmatpush.bf16.msra.mxu0 %v1890
  %3047 = vmatpush.bf16.msra.mxu0 %v1886
  %3048 = vmatpush.bf16.msra.mxu0 %v1882
  %3049 = vmatmul.bf16.gmra.mxu0 %v461
  %v3050 = vpop.f32.mrf.mxu0
  %v3051 = vadd.f32 %v3038, %v3050
  %v3052 = vpop.f32.mrf.mxu0
  %3053 = vdwg.mxu0
  %3054 = vmatpush.bf16.msra.mxu0 %v1942
  %3055 = vmatpush.bf16.msra.mxu0 %v1938
  %3056 = vmatpush.bf16.msra.mxu0 %v1934
  %3057 = vmatpush.bf16.msra.mxu0 %v1930
  %3058 = vmatpush.bf16.msra.mxu0 %v1926
  %3059 = vmatpush.bf16.msra.mxu0 %v1922
  %3060 = vmatpush.bf16.msra.mxu0 %v1918
  %3061 = vmatpush.bf16.msra.mxu0 %v1914
  %3062 = vmatmul.bf16.gmra.mxu0 %v462
  %v3063 = vpop.f32.mrf.mxu0
  %v3064 = vadd.f32 %v3051, %v3063
  %v3065 = vpop.f32.mrf.mxu0
  %3066 = vdwg.mxu0
  %3067 = vmatpush.bf16.msra.mxu0 %v1974
  %3068 = vmatpush.bf16.msra.mxu0 %v1970
  %3069 = vmatpush.bf16.msra.mxu0 %v1966
  %3070 = vmatpush.bf16.msra.mxu0 %v1962
  %3071 = vmatpush.bf16.msra.mxu0 %v1958
  %3072 = vmatpush.bf16.msra.mxu0 %v1954
  %3073 = vmatpush.bf16.msra.mxu0 %v1950
  %3074 = vmatpush.bf16.msra.mxu0 %v1946
  %3075 = vmatmul.bf16.gmra.mxu0 %v463
  %v3076 = vpop.f32.mrf.mxu0
  %v3077 = vadd.f32 %v3064, %v3076
  %v3078 = vpop.f32.mrf.mxu0
  %3079 = vdwg.mxu0
  %3080 = vmatpush.bf16.msra.mxu0 %v2006
  %3081 = vmatpush.bf16.msra.mxu0 %v2002
  %3082 = vmatpush.bf16.msra.mxu0 %v1998
  %3083 = vmatpush.bf16.msra.mxu0 %v1994
  %3084 = vmatpush.bf16.msra.mxu0 %v1990
  %3085 = vmatpush.bf16.msra.mxu0 %v1986
  %3086 = vmatpush.bf16.msra.mxu0 %v1982
  %3087 = vmatpush.bf16.msra.mxu0 %v1978
  %3088 = vmatmul.bf16.gmra.mxu0 %v464
  %v3089 = vpop.f32.mrf.mxu0
  %v3090 = vadd.f32 %v3077, %v3089
  %v3091 = vpop.f32.mrf.mxu0
  %3092 = vdwg.mxu0
  %3093 = vmatpush.bf16.msra.mxu0 %v2038
  %3094 = vmatpush.bf16.msra.mxu0 %v2034
  %3095 = vmatpush.bf16.msra.mxu0 %v2030
  %3096 = vmatpush.bf16.msra.mxu0 %v2026
  %3097 = vmatpush.bf16.msra.mxu0 %v2022
  %3098 = vmatpush.bf16.msra.mxu0 %v2018
  %3099 = vmatpush.bf16.msra.mxu0 %v2014
  %3100 = vmatpush.bf16.msra.mxu0 %v2010
  %3101 = vmatmul.bf16.gmra.mxu0 %v465
  %v3102 = vpop.f32.mrf.mxu0
  %v3103 = vadd.f32 %v3090, %v3102
  %v3104 = vpop.f32.mrf.mxu0
  %3105 = vdwg.mxu0
  %3106 = vmatpush.bf16.msra.mxu0 0
  %3107 = vmatpush.bf16.msra.mxu0 0
  %3108 = vmatpush.bf16.msra.mxu0 0
  %3109 = vmatpush.bf16.msra.mxu0 0
  %3110 = vmatpush.bf16.msra.mxu0 0
  %3111 = vmatpush.bf16.msra.mxu0 0
  %3112 = vmatpush.bf16.msra.mxu0 %v2046
  %3113 = vmatpush.bf16.msra.mxu0 %v2042
  %3114 = vmatmul.bf16.gmra.mxu0 %v2441
  %v3115 = vpop.f32.mrf.mxu0
  %v3116 = vadd.f32 %v3103, %v3115
  %v3117 = vpop.f32.mrf.mxu0
  %3118 = vdwg.mxu0
  %v3119 = vmax.f32 %v2609, 0.0
  %v3120 = vmax.f32 %v2778, 0.0
  %v3121 = vmax.f32 %v2947, 0.0
  %v3122 = vmax.f32 %v3116, 0.0
  %3123 = vst [vmem:[%s5] sm:$0xff] %v3119
  %3124 = vst [vmem:[%s5 + $0x8] sm:$0xff] %v3120
  %3125 = vst [vmem:[%s5 + $0x10] sm:$0xff] %v3121
  %3126 = vst [vmem:[%s5 + $0x18] sm:$0xff] %v3122
  %v3127 = vld [vmem:[%s3] sm:$0xff]
  %v3128 = vld [vmem:[%s3 + $0x8] sm:$0xff]
  %v3129 = vld [vmem:[%s3 + $0x10] sm:$0xff]
  %v3130 = vld [vmem:[%s3 + $0x18] sm:$0xff]
  %v3131 = vld [vmem:[%s3 + $0x20] sm:$0xff]
  %v3132 = vld [vmem:[%s3 + $0x28] sm:$0xff]
  %v3133 = vld [vmem:[%s3 + $0x30] sm:$0xff]
  %v3134 = vld [vmem:[%s3 + $0x38] sm:$0xff]
  %v3135 = vld [vmem:[%s3 + $0x40] sm:$0xff]
  %v3136 = vld [vmem:[%s3 + $0x48] sm:$0xff]
  %v3137 = vld [vmem:[%s3 + $0x50] sm:$0xff]
  %v3138 = vld [vmem:[%s3 + $0x58] sm:$0xff]
  %v3139 = vld [vmem:[%s3 + $0x60] sm:$0xff]
  %v3140 = vld [vmem:[%s3 + $0x68] sm:$0xff]
  %v3141 = vld [vmem:[%s3 + $0x70] sm:$0xff]
  %v3142 = vld [vmem:[%s3 + $0x78] sm:$0xff]
  %v3143 = vld [vmem:[%s3 + $0x80] sm:$0xff]
  %v3144 = vld [vmem:[%s3 + $0x88] sm:$0xff]
  %v3145 = vld [vmem:[%s3 + $0x90] sm:$0xff]
  %v3146 = vld [vmem:[%s3 + $0x98] sm:$0xff]
  %v3147 = vld [vmem:[%s3 + $0xa0] sm:$0xff]
  %v3148 = vld [vmem:[%s3 + $0xa8] sm:$0xff]
  %v3149 = vld [vmem:[%s3 + $0xb0] sm:$0xff]
  %v3150 = vld [vmem:[%s3 + $0xb8] sm:$0xff]
  %v3151 = vld [vmem:[%s3 + $0xc0] sm:$0xff]
  %v3152 = vld [vmem:[%s3 + $0xc8] sm:$0xff]
  %v3153 = vld [vmem:[%s3 + $0xd0] sm:$0xff]
  %v3154 = vld [vmem:[%s3 + $0xd8] sm:$0xff]
  %v3155 = vld [vmem:[%s3 + $0xe0] sm:$0xff]
  %v3156 = vld [vmem:[%s3 + $0xe8] sm:$0xff]
  %v3157 = vld [vmem:[%s3 + $0xf0] sm:$0xff]
  %v3158 = vld [vmem:[%s3 + $0xf8] sm:$0xff]
  %v3159 = vld [vmem:[%s3 + $0x100] sm:$0xff]
  %v3160 = vld [vmem:[%s3 + $0x108] sm:$0xff]
  %v3161 = vld [vmem:[%s3 + $0x110] sm:$0xff]
  %v3162 = vld [vmem:[%s3 + $0x118] sm:$0xff]
  %v3163 = vld [vmem:[%s3 + $0x120] sm:$0xff]
  %v3164 = vld [vmem:[%s3 + $0x128] sm:$0xff]
  %v3165 = vld [vmem:[%s3 + $0x130] sm:$0xff]
  %v3166 = vld [vmem:[%s3 + $0x138] sm:$0xff]
  %v3167 = vld [vmem:[%s3 + $0x140] sm:$0xff]
  %v3168 = vld [vmem:[%s3 + $0x148] sm:$0xff]
  %v3169 = vld [vmem:[%s3 + $0x150] sm:$0xff]
  %v3170 = vld [vmem:[%s3 + $0x158] sm:$0xff]
  %v3171 = vld [vmem:[%s3 + $0x160] sm:$0xff]
  %v3172 = vld [vmem:[%s3 + $0x168] sm:$0xff]
  %v3173 = vld [vmem:[%s3 + $0x170] sm:$0xff]
  %v3174 = vld [vmem:[%s3 + $0x178] sm:$0xff]
  %v3175 = vld [vmem:[%s3 + $0x180] sm:$0xff]
  %v3176 = vld [vmem:[%s3 + $0x188] sm:$0xff]
  %v3177 = vld [vmem:[%s3 + $0x190] sm:$0xff]
  %v3178 = vld [vmem:[%s3 + $0x198] sm:$0xff]
  %v3179 = vld [vmem:[%s3 + $0x1a0] sm:$0xff]
  %v3180 = vld [vmem:[%s3 + $0x1a8] sm:$0xff]
  %v3181 = vld [vmem:[%s3 + $0x1b0] sm:$0xff]
  %v3182 = vld [vmem:[%s3 + $0x1b8] sm:$0xff]
  %v3183 = vld [vmem:[%s3 + $0x1c0] sm:$0xff]
  %v3184 = vld [vmem:[%s3 + $0x1c8] sm:$0xff]
  %v3185 = vld [vmem:[%s3 + $0x1d0] sm:$0xff]
  %v3186 = vld [vmem:[%s3 + $0x1d8] sm:$0xff]
  %v3187 = vld [vmem:[%s3 + $0x1e0] sm:$0xff]
  %v3188 = vld [vmem:[%s3 + $0x1e8] sm:$0xff]
  %v3189 = vld [vmem:[%s3 + $0x1f0] sm:$0xff]
  %v3190 = vld [vmem:[%s3 + $0x1f8] sm:$0xff]
  %v3191 = vld [vmem:[#allocation2] sm:$0x1]
  %v3193 = vperm.slane %v3191, 0
  %3195 = vmatpush.msra.mxu0 %v3142
  %3196 = vmatpush.msra.mxu0 %v3141
  %3197 = vmatpush.msra.mxu0 %v3140
  %3198 = vmatpush.msra.mxu0 %v3139
  %3199 = vmatpush.msra.mxu0 %v3138
  %3200 = vmatpush.msra.mxu0 %v3137
  %3201 = vmatpush.msra.mxu0 %v3136
  %3202 = vmatpush.msra.mxu0 %v3135
  %3203 = vmatpush.msra.mxu0 %v3134
  %3204 = vmatpush.msra.mxu0 %v3133
  %3205 = vmatpush.msra.mxu0 %v3132
  %3206 = vmatpush.msra.mxu0 %v3131
  %3207 = vmatpush.msra.mxu0 %v3130
  %3208 = vmatpush.msra.mxu0 %v3129
  %3209 = vmatpush.msra.mxu0 %v3128
  %3210 = vmatpush.msra.mxu0 %v3127
  %3211 = vmatmul.f32.gmra.mxu0 %v3119
  %v3212 = vpop.f32.mrf.mxu0
  %v3213 = vadd.f32 %v3193, %v3212
  %3214 = vdwg.mxu0
  %3215 = vmatpush.msra.mxu0 %v3158
  %3216 = vmatpush.msra.mxu0 %v3157
  %3217 = vmatpush.msra.mxu0 %v3156
  %3218 = vmatpush.msra.mxu0 %v3155
  %3219 = vmatpush.msra.mxu0 %v3154
  %3220 = vmatpush.msra.mxu0 %v3153
  %3221 = vmatpush.msra.mxu0 %v3152
  %3222 = vmatpush.msra.mxu0 %v3151
  %3223 = vmatpush.msra.mxu0 %v3150
  %3224 = vmatpush.msra.mxu0 %v3149
  %3225 = vmatpush.msra.mxu0 %v3148
  %3226 = vmatpush.msra.mxu0 %v3147
  %3227 = vmatpush.msra.mxu0 %v3146
  %3228 = vmatpush.msra.mxu0 %v3145
  %3229 = vmatpush.msra.mxu0 %v3144
  %3230 = vmatpush.msra.mxu0 %v3143
  %3231 = vmatmul.f32.gmra.mxu0 %v3120
  %v3232 = vpop.f32.mrf.mxu0
  %v3233 = vadd.f32 %v3213, %v3232
  %3234 = vdwg.mxu0
  %3235 = vmatpush.msra.mxu0 %v3174
  %3236 = vmatpush.msra.mxu0 %v3173
  %3237 = vmatpush.msra.mxu0 %v3172
  %3238 = vmatpush.msra.mxu0 %v3171
  %3239 = vmatpush.msra.mxu0 %v3170
  %3240 = vmatpush.msra.mxu0 %v3169
  %3241 = vmatpush.msra.mxu0 %v3168
  %3242 = vmatpush.msra.mxu0 %v3167
  %3243 = vmatpush.msra.mxu0 %v3166
  %3244 = vmatpush.msra.mxu0 %v3165
  %3245 = vmatpush.msra.mxu0 %v3164
  %3246 = vmatpush.msra.mxu0 %v3163
  %3247 = vmatpush.msra.mxu0 %v3162
  %3248 = vmatpush.msra.mxu0 %v3161
  %3249 = vmatpush.msra.mxu0 %v3160
  %3250 = vmatpush.msra.mxu0 %v3159
  %3251 = vmatmul.f32.gmra.mxu0 %v3121
  %v3252 = vpop.f32.mrf.mxu0
  %v3253 = vadd.f32 %v3233, %v3252
  %3254 = vdwg.mxu0
  %3255 = vmatpush.msra.mxu0 %v3190
  %3256 = vmatpush.msra.mxu0 %v3189
  %3257 = vmatpush.msra.mxu0 %v3188
  %3258 = vmatpush.msra.mxu0 %v3187
  %3259 = vmatpush.msra.mxu0 %v3186
  %3260 = vmatpush.msra.mxu0 %v3185
  %3261 = vmatpush.msra.mxu0 %v3184
  %3262 = vmatpush.msra.mxu0 %v3183
  %3263 = vmatpush.msra.mxu0 %v3182
  %3264 = vmatpush.msra.mxu0 %v3181
  %3265 = vmatpush.msra.mxu0 %v3180
  %3266 = vmatpush.msra.mxu0 %v3179
  %3267 = vmatpush.msra.mxu0 %v3178
  %3268 = vmatpush.msra.mxu0 %v3177
  %3269 = vmatpush.msra.mxu0 %v3176
  %3270 = vmatpush.msra.mxu0 %v3175
  %3271 = vmatmul.f32.gmra.mxu0 %v3122
  %v3272 = vpop.f32.mrf.mxu0
  %v3273 = vadd.f32 %v3253, %v3272
  %3274 = vdwg.mxu0
  %vm3275 = vcmask 7168
  %3276 = vst.msk [vmem:[%s6] sm:$0xff] %vm3275, %v3273
  // Predicated region
  $region22: #{cnn_base_forward.7} parent=0 // pred_check
    _
  $region23: #{cnn_base_forward.7} parent=0 // pred_check_branch
    %3278 = sbr.rel (0) target = $region25
  $region24: #{cnn_base_forward.7} parent=0 // pred_region
    _
  $region25: #{cnn_base_forward.7} parent=0 // pred_fallthru
    _
  // Predicated region
  $region26: #{cnn_base_forward.7} parent=0 // pred_check
    _
  $region27: #{cnn_base_forward.7} parent=0 // pred_check_branch
    %3280 = sbr.rel (0) target = $region29
  $region28: #{cnn_base_forward.7} parent=0 // pred_region
    _
  $region29: #{cnn_base_forward.7} parent=0 // pred_fallthru
    _
  // Predicated region
  $region30: #{cnn_base_forward.7} parent=0 // pred_check
    _
  $region31: #{cnn_base_forward.7} parent=0 // pred_check_branch
    %3282 = sbr.rel (0) target = $region33
  $region32: #{cnn_base_forward.7} parent=0 // pred_region
    _
  $region33: #{cnn_base_forward.7} parent=0 // pred_fallthru
    _
  // Predicated region
  $region34: #{cnn_base_forward.7} parent=0 // pred_check
    _
  $region35: #{cnn_base_forward.7} parent=0 // pred_check_branch
    %3284 = sbr.rel (0) target = $region37
  $region36: #{cnn_base_forward.7} parent=0 // pred_region
    _
  $region37: #{cnn_base_forward.7} parent=0 // pred_fallthru
    _

</llo_original>
